<compile_context>
chip_gen: v7x
topology: tpu7x:2x2x1
jax: 0.10.0
libtpu: 0.0.40
codegen_flags: <defaults>
</compile_context>

<pallas_src>
import functools

import jax
import jax.numpy as jnp
from jax import lax
from jax.experimental import pallas as pl
from jax.experimental.pallas import tpu as pltpu


def _round_up(x, m):
    return (x + m - 1) // m * m


def _device_kind():
    try:
        return jax.devices()[0].device_kind.lower()
    except Exception:  # no devices / unusual backend: fall back to generic defaults
        return ""


def _default_block_m():
    # v5e: 128-wide MXU + single vst slot -> smaller tiles; v6e/v7x: bigger is better.
    return 256 if "v5" in _device_kind() else 512


def _vmem_limit_bytes():
    # Generation-aware scoped-VMEM budget: v7x has only 64 MiB/TC, v5e/v6e have 128 MiB.
    return 48 * 1024 * 1024 if "v7" in _device_kind() else 64 * 1024 * 1024


def _probe_buffered():
    """Construction-only probe for BlockSpec(pipeline_mode=pl.Buffered(1)) support."""
    if not hasattr(pl, "Buffered"):
        return False
    try:
        pl.BlockSpec((8, 128), lambda i, j: (0, 0), pipeline_mode=pl.Buffered(1))
        return True
    except TypeError:
        return False


_SINGLE_BUFFER_CONSTS = _probe_buffered()


def _scale_pred_kernel(x_hbm, w1_ref, shift_ref, w2_ref, b2_ref, o_ref, xbuf, sem,
                       *, W, TM, halo):
    """One (batch, pixel-tile) grid step.

    x_hbm:     (N, L_pad, Cin_p) flattened padded image, HBM resident (memory_space=pl.ANY).
               layout per image: [W+1 zeros][H*W pixels][tail zeros + W+1 zeros]
    w1_ref:    (9, Cin_p, Cmid_p)  3x3 conv weights (BN scale folded in), tap-major (ky*3+kx)
    shift_ref: (1, Cmid_p)         folded BN shift = beta - mean * scale
    w2_ref:    (Cmid_p, Cout_p)    1x1 conv weights
    b2_ref:    (1, Cout_p)         1x1 conv bias
    o_ref:     (1, TM, Cout_p)     output tile
    xbuf:      (2, TM + halo, Cin_p) VMEM double buffer for the halo'd input window
    sem:       (2,) DMA semaphores
    """
    n = pl.program_id(0)
    t = pl.program_id(1)
    n_tiles = pl.num_programs(1)
    rows = TM + halo

    def halo_copy(tile, slot):
        return pltpu.make_async_copy(
            x_hbm.at[n, pl.ds(tile * TM, rows), :],
            xbuf.at[slot],
            sem.at[slot])

    cur = t % 2

    # Prime the pipeline at the first tile of every image (safe under batch-axis megacore
    # sharding: each core starts its sub-grid at t == 0).
    @pl.when(t == 0)
    def _():
        halo_copy(0, 0).start()

    halo_copy(t, cur).wait()

    # Prefetch the next tile's window (within this image) while computing the current one.
    @pl.when(t + 1 < n_tiles)
    def _():
        halo_copy(t + 1, 1 - cur).start()

    # Column index of every pixel in this tile: zero the contributions of the horizontal halo
    # taps (kx=0 at x==0, kx=2 at x==W-1), which otherwise wrap into the neighbouring row of
    # the flattened image.  Masks are applied once per kx group (2 selects per step, not 6).
    col = (t * TM + lax.broadcasted_iota(jnp.int32, (TM, 1), 0)) % W
    not_left = col != 0
    not_right = col != (W - 1)

    def tap(ky, kx):
        patch = xbuf[cur, pl.ds(ky * W + kx, TM), :]          # (TM, Cin_p), static offsets
        return jnp.dot(patch, w1_ref[ky * 3 + kx],
                       preferred_element_type=jnp.float32)    # f32 accumulation on the MXU

    left = tap(0, 0) + tap(1, 0) + tap(2, 0)
    mid = tap(0, 1) + tap(1, 1) + tap(2, 1)
    right = tap(0, 2) + tap(1, 2) + tap(2, 2)
    acc = mid + jnp.where(not_left, left, 0.0) + jnp.where(not_right, right, 0.0)

    # BN scale already folded into w1; only shift + LeakyReLU(0.1) remain (f32 VPU math).
    y = acc + shift_ref[...]
    y = jnp.maximum(y, 0.1 * y)

    # 1x1 conv (pointwise matmul) + bias.
    out = jnp.dot(y.astype(w2_ref.dtype), w2_ref[...],
                  preferred_element_type=jnp.float32)
    out = out + b2_ref[...]

    o_ref[0] = out.astype(o_ref.dtype)


@functools.partial(
    jax.jit,
    static_argnames=("nclasses", "nanchors", "nbbvals", "block_m", "matmul_dtype",
                     "out_dtype", "data_format", "single_buffer_consts"))
def _scale_prediction_impl(x, w1, gamma, beta, run_mean, run_var, w2, b2, *,
                           nclasses, nanchors, nbbvals, block_m, matmul_dtype,
                           out_dtype, data_format, single_buffer_consts):
    if data_format == "NCHW":
        N, Cin, H, W = x.shape
        # TODO(synk): this transpose is a full HBM pass; feed NHWC (data_format="NHWC") when the
        # producing layer can stay channels-last.
        x_nhwc = jnp.transpose(x, (0, 2, 3, 1))
    else:
        N, H, W, Cin = x.shape
        x_nhwc = x

    Cmid = w1.shape[3]
    Cout = w2.shape[1]
    CB = nclasses + nbbvals
    assert Cout == CB * nanchors
    assert w1.shape[0] == 3 and w1.shape[1] == 3 and w1.shape[2] == Cin

    HW = H * W
    TM = max(8, _round_up(min(int(block_m), _round_up(HW, 8)), 8))
    HW_pad = _round_up(HW, TM)          # TM need not divide H*W: tail outputs are discarded
    halo = 2 * W + 2
    L_pad = HW_pad + halo
    n_tiles = HW_pad // TM

    # Lane-dense channel padding (multiples of 128).
    Cin_p = _round_up(Cin, 128)
    Cmid_p = _round_up(Cmid, 128)
    Cout_p = _round_up(Cout, 128)

    f32 = jnp.float32
    eps = 1e-5
    scale = gamma.astype(f32) * lax.rsqrt(run_var.astype(f32) + eps)
    shift = beta.astype(f32) - run_mean.astype(f32) * scale
    shift_p = jnp.zeros((1, Cmid_p), f32).at[0, :Cmid].set(shift)
    b2_p = jnp.zeros((1, Cout_p), f32).at[0, :Cout].set(b2.astype(f32))

    # Fold BN scale into conv1 weights IN F32, then cast once to the MXU dtype.
    w1_folded = w1.astype(f32) * scale[None, None, None, :]
    w1_p = jnp.zeros((3, 3, Cin_p, Cmid_p), matmul_dtype)
    w1_p = w1_p.at[:, :, :Cin, :Cmid].set(w1_folded.astype(matmul_dtype))
    w1_p = w1_p.reshape(9, Cin_p, Cmid_p)
    w2_p = jnp.zeros((Cmid_p, Cout_p), matmul_dtype).at[:Cmid, :Cout].set(
        w2.astype(matmul_dtype))

    # Flattened padded image: [W+1 zeros][H*W pixels][(HW_pad-HW) + W+1 zeros], channels padded.
    x_flat = x_nhwc.astype(matmul_dtype).reshape(N, HW, Cin)
    x_pad = jnp.pad(
        x_flat, ((0, 0), (W + 1, (HW_pad - HW) + W + 1), (0, Cin_p - Cin)))

    def const_spec(shape):
        imap = lambda n, t, _nd=len(shape): (0,) * _nd
        if single_buffer_consts:
            # Grid-invariant operands: single buffering saves VMEM exactly where v7x is tight.
            return pl.BlockSpec(shape, imap, pipeline_mode=pl.Buffered(1))
        return pl.BlockSpec(shape, imap)

    kernel = functools.partial(_scale_pred_kernel, W=W, TM=TM, halo=halo)

    out_flat = pl.pallas_call(
        kernel,
        out_shape=jax.ShapeDtypeStruct((N, HW_pad, Cout_p), out_dtype),
        grid_spec=pltpu.PrefetchScalarGridSpec(
            num_scalar_prefetch=0,
            grid=(N, n_tiles),
            in_specs=[
                # x stays in HBM; per-tile halo windows are DMA'd manually (double buffered),
                # so input VMEM scales with TM instead of H*W.
                pl.BlockSpec(memory_space=pl.ANY),
                const_spec((9, Cin_p, Cmid_p)),
                const_spec((1, Cmid_p)),
                const_spec((Cmid_p, Cout_p)),
                const_spec((1, Cout_p)),
            ],
            out_specs=pl.BlockSpec((1, TM, Cout_p), lambda n, t: (n, t, 0)),
            scratch_shapes=[
                pltpu.VMEM((2, TM + halo, Cin_p), matmul_dtype),
                pltpu.SemaphoreType.DMA((2,)),
            ],
        ),
        compiler_params=pltpu.CompilerParams(
            # Batch axis parallel (megacore-safe: each core's sub-grid starts at t == 0, where
            # the manual DMA chain is primed); tile axis is order-dependent -> "arbitrary".
            dimension_semantics=("parallel", "arbitrary"),
            vmem_limit_bytes=_vmem_limit_bytes(),
        ),
    )(x_pad, w1_p, shift_p, w2_p, b2_p)

    # Drop pixel-tail and channel padding, then (N,H,W,A*(C+B)) -> (N,A,H,W,C+B) like PyTorch.
    out = out_flat[:, :HW, :Cout].reshape(N, H, W, nanchors, CB)
    return jnp.transpose(out, (0, 3, 1, 2, 4))


def scale_prediction(x, params, *, nclasses, nanchors, nbbvals,
                     block_m=None, matmul_dtype=jnp.bfloat16, out_dtype=None,
                     data_format="NCHW"):
    """x: (N, Cin, H, W) [NCHW] or (N, H, W, Cin) [NHWC]
    -> (N, nanchors, H, W, nclasses + nbbvals)."""
    if data_format not in ("NCHW", "NHWC"):
        raise ValueError(f"data_format must be 'NCHW' or 'NHWC', got {data_format}")
    block_m = int(block_m) if block_m is not None else _default_block_m()
    out_dtype = out_dtype if out_dtype is not None else x.dtype
    return _scale_prediction_impl(
        x, params["w1"], params["gamma"], params["beta"],
        params["run_mean"], params["run_var"], params["w2"], params["b2"],
        nclasses=nclasses, nanchors=nanchors, nbbvals=nbbvals,
        block_m=block_m, matmul_dtype=matmul_dtype, out_dtype=out_dtype,
        data_format=data_format, single_buffer_consts=_SINGLE_BUFFER_CONSTS)


def _reference(x_nchw, params, *, nclasses, nanchors, nbbvals):
    """Pure-JAX reference (lax.conv) mimicking the PyTorch forward (BN in eval mode)."""
    w1, gamma, beta, run_mean, run_var, w2, b2 = (
        params["w1"], params["gamma"], params["beta"],
        params["run_mean"], params["run_var"], params["w2"], params["b2"])
    N, Cin, H, W = x_nchw.shape
    Cmid = w1.shape[3]
    Cout = w2.shape[1]
    CB = nclasses + nbbvals
    eps = 1e-5

    w1_oihw = jnp.transpose(w1, (3, 2, 0, 1))            # (Cmid, Cin, 3, 3)
    y = lax.conv_general_dilated(x_nchw, w1_oihw, (1, 1), "SAME",
                                 dimension_numbers=("NCHW", "OIHW", "NCHW"))
    y = (y - run_mean[None, :, None, None]) / jnp.sqrt(run_var + eps)[None, :, None, None]
    y = y * gamma[None, :, None, None] + beta[None, :, None, None]
    y = jnp.where(y > 0, y, 0.1 * y)
    w2_oihw = jnp.transpose(w2, (1, 0)).reshape(Cout, Cmid, 1, 1)
    z = lax.conv_general_dilated(y, w2_oihw, (1, 1), "SAME",
                                 dimension_numbers=("NCHW", "OIHW", "NCHW"))
    z = z + b2[None, :, None, None]
    z = z.reshape(N, nanchors, CB, H, W)
    return jnp.transpose(z, (0, 1, 3, 4, 2))


if __name__ == "__main__":
    # Small shapes consistent with the module (realistic heads have Cin >= 256; see note above).
    N, Cin, H, W = 2, 4, 16, 16
    nclasses, nanchors, nbbvals = 3, 2, 5
    Cmid = Cin // 2
    Cout = (nclasses + nbbvals) * nanchors
    head = dict(nclasses=nclasses, nanchors=nanchors, nbbvals=nbbvals)

    key = jax.random.PRNGKey(0)
    ks = jax.random.split(key, 8)

    x = jax.random.normal(ks[0], (N, Cin, H, W), jnp.float32)

    params = {
        # Conv1 weights in HWIO layout: (3, 3, Cin, Cmid)
        "w1": 0.1 * jax.random.normal(ks[1], (3, 3, Cin, Cmid), jnp.float32),
        "gamma": 1.0 + 0.1 * jax.random.normal(ks[2], (Cmid,), jnp.float32),
        "beta": 0.1 * jax.random.normal(ks[3], (Cmid,), jnp.float32),
        "run_mean": 0.1 * jax.random.normal(ks[4], (Cmid,), jnp.float32),
        "run_var": jnp.abs(jax.random.normal(ks[5], (Cmid,), jnp.float32)) + 0.5,
        # Conv2 (1x1) weights: (Cmid, Cout), bias (Cout,)
        "w2": 0.1 * jax.random.normal(ks[6], (Cmid, Cout), jnp.float32),
        "b2": 0.1 * jax.random.normal(ks[7], (Cout,), jnp.float32),
    }

    ref = jax.block_until_ready(_reference(x, params, **head))

    # f32 MXU path, block_m=128 -> 2 spatial tiles per image (exercises halo DMA
    # double-buffering, the consolidated column masks and the prefetch chain).
    out_f32 = scale_prediction(x, params, **head, block_m=128, matmul_dtype=jnp.float32)
    out_f32 = jax.block_until_ready(out_f32)
    assert out_f32.shape == (N, nanchors, H, W, nclasses + nbbvals), out_f32.shape
    assert jnp.allclose(out_f32, ref, atol=2e-4, rtol=2e-4), float(
        jnp.max(jnp.abs(out_f32 - ref)))

    # Default perf path: bf16 matmul operands (f32 accumulation), auto tile size.
    out_bf16 = scale_prediction(x, params, **head)
    out_bf16 = jax.block_until_ready(out_bf16)
    assert out_bf16.shape == (N, nanchors, H, W, nclasses + nbbvals), out_bf16.shape
    assert out_bf16.dtype == x.dtype
    assert jnp.allclose(out_bf16, ref, atol=3e-2, rtol=3e-2), float(
        jnp.max(jnp.abs(out_bf16.astype(jnp.float32) - ref)))

    # Channels-last input (skips the wrapper transpose) + bf16 output (halved writeback).
    x_nhwc = jnp.transpose(x, (0, 2, 3, 1))
    out_nhwc = scale_prediction(x_nhwc, params, **head, data_format="NHWC",
                                out_dtype=jnp.bfloat16)
    out_nhwc = jax.block_until_ready(out_nhwc)
    assert out_nhwc.shape == (N, nanchors, H, W, nclasses + nbbvals), out_nhwc.shape
    assert out_nhwc.dtype == jnp.bfloat16
    assert jnp.allclose(out_nhwc.astype(jnp.float32), ref, atol=3e-2, rtol=3e-2), float(
        jnp.max(jnp.abs(out_nhwc.astype(jnp.float32) - ref)))

    print("KERNEL_OK")
</pallas_src>

<mosaic_0001>
module attributes {stable_mosaic.version = 11 : i64} {
  func.func @_scale_pred_kernel(%arg0: i32, %arg1: i32, %arg2: memref<2x290x128xf32, #tpu.memory_space<any>>, %arg3: memref<9x128x128xf32, #tpu.memory_space<vmem>>, %arg4: memref<1x128xf32, #tpu.memory_space<vmem>>, %arg5: memref<128x128xf32, #tpu.memory_space<vmem>>, %arg6: memref<1x128xf32, #tpu.memory_space<vmem>>, %arg7: memref<1x128x128xf32, #tpu.memory_space<vmem>>, %arg8: memref<2x162x128xf32, #tpu.memory_space<vmem>>, %arg9: memref<2x!tpu.dma_semaphore, #tpu.memory_space<semaphore_mem>>) attributes {dimension_semantics = [#tpu.dimension_semantics<parallel>, #tpu.dimension_semantics<arbitrary>], iteration_bounds = array<i64: 2, 2>, scalar_prefetch = 0 : i64, scratch_operands = 2 : i64, tpu.core_type = #tpu.core_type<tc>, window_params = [{}, {pipeline_mode = #tpu.pipeline_mode<synchronous>, transform_indices = @transform_1, window_bounds = array<i64: 9, 128, 128>}, {pipeline_mode = #tpu.pipeline_mode<synchronous>, transform_indices = @transform_2, window_bounds = array<i64: 1, 128>}, {pipeline_mode = #tpu.pipeline_mode<synchronous>, transform_indices = @transform_3, window_bounds = array<i64: 128, 128>}, {pipeline_mode = #tpu.pipeline_mode<synchronous>, transform_indices = @transform_4, window_bounds = array<i64: 1, 128>}, {transform_indices = @transform_5, window_bounds = array<i64: 1, 128, 128>}]} {
    %c2_i32 = arith.constant 2 : i32
    %c0_i32 = arith.constant 0 : i32
    %0 = arith.cmpi eq, %c2_i32, %c0_i32 : i32
    %c1_i32 = arith.constant 1 : i32
    %1 = arith.select %0, %c1_i32, %c2_i32 : i32
    %2 = arith.remsi %arg1, %1 : i32
    %c0_i32_0 = arith.constant 0 : i32
    %3 = arith.cmpi ne, %2, %c0_i32_0 : i32
    %c0_i32_1 = arith.constant 0 : i32
    %4 = arith.cmpi slt, %2, %c0_i32_1 : i32
    %c0_i32_2 = arith.constant 0 : i32
    %5 = arith.cmpi slt, %1, %c0_i32_2 : i32
    %6 = arith.xori %4, %5 : i1
    %7 = arith.andi %6, %3 : i1
    %8 = arith.addi %2, %1 : i32
    %9 = arith.select %7, %8, %2 : i32
    %c0_i32_3 = arith.constant 0 : i32
    %10 = arith.cmpi eq, %arg1, %c0_i32_3 : i32
    %11 = arith.extui %10 : i1 to i32
    %c0_i32_4 = arith.constant 0 : i32
    %12 = arith.cmpi ne, %11, %c0_i32_4 : i32
    scf.if %12 {
      %c0_i32_69 = arith.constant 0 : i32
      %c0_i32_70 = arith.constant 0 : i32
      %c0_i32_71 = arith.constant 0 : i32
      %c0_i32_72 = arith.constant 0 : i32
      %132 = tpu.memref_slice %arg2[%arg0, %c0_i32_71, %c0_i32_72] : memref<2x290x128xf32, #tpu.memory_space<any>> -> memref<1x162x128xf32, #tpu.memory_space<any>>
      %133 = tpu.memref_squeeze %132 : memref<1x162x128xf32, #tpu.memory_space<any>> -> memref<162x128xf32, #tpu.memory_space<any>>
      %c0_i32_73 = arith.constant 0 : i32
      %c0_i32_74 = arith.constant 0 : i32
      %134 = tpu.memref_slice %arg8[%c0_i32_69, %c0_i32_73, %c0_i32_74] : memref<2x162x128xf32, #tpu.memory_space<vmem>> -> memref<1x162x128xf32, #tpu.memory_space<vmem>>
      %135 = tpu.memref_squeeze %134 : memref<1x162x128xf32, #tpu.memory_space<vmem>> -> memref<162x128xf32, #tpu.memory_space<vmem>>
      %136 = tpu.memref_slice %arg9[%c0_i32_70] : memref<2x!tpu.dma_semaphore, #tpu.memory_space<semaphore_mem>> -> memref<1x!tpu.dma_semaphore, #tpu.memory_space<semaphore_mem>>
      %137 = tpu.memref_squeeze %136 : memref<1x!tpu.dma_semaphore, #tpu.memory_space<semaphore_mem>> -> memref<!tpu.dma_semaphore, #tpu.memory_space<semaphore_mem>>
      tpu.enqueue_dma source(%133 : memref<162x128xf32, #tpu.memory_space<any>>) target(%135 : memref<162x128xf32, #tpu.memory_space<vmem>>) target_semaphore(%137 : memref<!tpu.dma_semaphore, #tpu.memory_space<semaphore_mem>>)
    } else {
    }
    %c128_i32 = arith.constant 128 : i32
    %13 = arith.muli %arg1, %c128_i32 : i32
    %c0_i32_5 = arith.constant 0 : i32
    %14 = tpu.memref_slice %arg2[%arg0, %13, %c0_i32_5] : memref<2x290x128xf32, #tpu.memory_space<any>> -> memref<1x162x128xf32, #tpu.memory_space<any>>
    %15 = tpu.memref_squeeze %14 : memref<1x162x128xf32, #tpu.memory_space<any>> -> memref<162x128xf32, #tpu.memory_space<any>>
    %c0_i32_6 = arith.constant 0 : i32
    %c0_i32_7 = arith.constant 0 : i32
    %16 = tpu.memref_slice %arg8[%9, %c0_i32_6, %c0_i32_7] : memref<2x162x128xf32, #tpu.memory_space<vmem>> -> memref<1x162x128xf32, #tpu.memory_space<vmem>>
    %17 = tpu.memref_squeeze %16 : memref<1x162x128xf32, #tpu.memory_space<vmem>> -> memref<162x128xf32, #tpu.memory_space<vmem>>
    %18 = tpu.memref_slice %arg9[%9] : memref<2x!tpu.dma_semaphore, #tpu.memory_space<semaphore_mem>> -> memref<1x!tpu.dma_semaphore, #tpu.memory_space<semaphore_mem>>
    %19 = tpu.memref_squeeze %18 : memref<1x!tpu.dma_semaphore, #tpu.memory_space<semaphore_mem>> -> memref<!tpu.dma_semaphore, #tpu.memory_space<semaphore_mem>>
    tpu.wait_dma2 semaphore(%19 : memref<!tpu.dma_semaphore, #tpu.memory_space<semaphore_mem>>) src(%15 : memref<162x128xf32, #tpu.memory_space<any>>) dst(%17 : memref<162x128xf32, #tpu.memory_space<vmem>>)
    %c1_i32_8 = arith.constant 1 : i32
    %20 = arith.addi %arg1, %c1_i32_8 : i32
    %c2_i32_9 = arith.constant 2 : i32
    %21 = arith.cmpi slt, %20, %c2_i32_9 : i32
    %22 = arith.extui %21 : i1 to i32
    %c0_i32_10 = arith.constant 0 : i32
    %23 = arith.cmpi ne, %22, %c0_i32_10 : i32
    scf.if %23 {
      %c1_i32_69 = arith.constant 1 : i32
      %132 = arith.addi %arg1, %c1_i32_69 : i32
      %c1_i32_70 = arith.constant 1 : i32
      %133 = arith.subi %c1_i32_70, %9 : i32
      %c128_i32_71 = arith.constant 128 : i32
      %134 = arith.muli %132, %c128_i32_71 : i32
      %c0_i32_72 = arith.constant 0 : i32
      %135 = tpu.memref_slice %arg2[%arg0, %134, %c0_i32_72] : memref<2x290x128xf32, #tpu.memory_space<any>> -> memref<1x162x128xf32, #tpu.memory_space<any>>
      %136 = tpu.memref_squeeze %135 : memref<1x162x128xf32, #tpu.memory_space<any>> -> memref<162x128xf32, #tpu.memory_space<any>>
      %c0_i32_73 = arith.constant 0 : i32
      %c0_i32_74 = arith.constant 0 : i32
      %137 = tpu.memref_slice %arg8[%133, %c0_i32_73, %c0_i32_74] : memref<2x162x128xf32, #tpu.memory_space<vmem>> -> memref<1x162x128xf32, #tpu.memory_space<vmem>>
      %138 = tpu.memref_squeeze %137 : memref<1x162x128xf32, #tpu.memory_space<vmem>> -> memref<162x128xf32, #tpu.memory_space<vmem>>
      %139 = tpu.memref_slice %arg9[%133] : memref<2x!tpu.dma_semaphore, #tpu.memory_space<semaphore_mem>> -> memref<1x!tpu.dma_semaphore, #tpu.memory_space<semaphore_mem>>
      %140 = tpu.memref_squeeze %139 : memref<1x!tpu.dma_semaphore, #tpu.memory_space<semaphore_mem>> -> memref<!tpu.dma_semaphore, #tpu.memory_space<semaphore_mem>>
      tpu.enqueue_dma source(%136 : memref<162x128xf32, #tpu.memory_space<any>>) target(%138 : memref<162x128xf32, #tpu.memory_space<vmem>>) target_semaphore(%140 : memref<!tpu.dma_semaphore, #tpu.memory_space<semaphore_mem>>)
    } else {
    }
    %c128_i32_11 = arith.constant 128 : i32
    %24 = arith.muli %arg1, %c128_i32_11 : i32
    %25 = tpu.iota {dimensions = array<i32: 0>} : vector<128x1xi32>
    %26 = vector.broadcast %24 : i32 to vector<128x1xi32>
    %27 = arith.addi %26, %25 : vector<128x1xi32>
    %c16_i32 = arith.constant 16 : i32
    %c0_i32_12 = arith.constant 0 : i32
    %28 = arith.cmpi eq, %c16_i32, %c0_i32_12 : i32
    %c1_i32_13 = arith.constant 1 : i32
    %29 = arith.select %28, %c1_i32_13, %c16_i32 : i32
    %30 = vector.broadcast %29 : i32 to vector<128x1xi32>
    %31 = arith.remsi %27, %30 : vector<128x1xi32>
    %c0_i32_14 = arith.constant 0 : i32
    %32 = vector.broadcast %c0_i32_14 : i32 to vector<128x1xi32>
    %33 = arith.cmpi ne, %31, %32 : vector<128x1xi32>
    %c0_i32_15 = arith.constant 0 : i32
    %34 = vector.broadcast %c0_i32_15 : i32 to vector<128x1xi32>
    %35 = arith.cmpi slt, %31, %34 : vector<128x1xi32>
    %c0_i32_16 = arith.constant 0 : i32
    %36 = arith.cmpi slt, %29, %c0_i32_16 : i32
    %37 = vector.broadcast %36 : i1 to vector<128x1xi1>
    %38 = vector.broadcast %37 : vector<128x1xi1> to vector<128x1xi1>
    %39 = arith.xori %35, %38 : vector<128x1xi1>
    %40 = arith.andi %39, %33 : vector<128x1xi1>
    %41 = vector.broadcast %29 : i32 to vector<128x1xi32>
    %42 = arith.addi %31, %41 : vector<128x1xi32>
    %43 = arith.select %40, %42, %31 : vector<128x1xi1>, vector<128x1xi32>
    %c0_i32_17 = arith.constant 0 : i32
    %44 = vector.broadcast %c0_i32_17 : i32 to vector<128x1xi32>
    %45 = arith.cmpi ne, %43, %44 : vector<128x1xi32>
    %c15_i32 = arith.constant 15 : i32
    %46 = vector.broadcast %c15_i32 : i32 to vector<128x1xi32>
    %47 = arith.cmpi ne, %43, %46 : vector<128x1xi32>
    %48 = arith.index_cast %9 : i32 to index
    %c0 = arith.constant 0 : index
    %c0_18 = arith.constant 0 : index
    %49 = vector.load %arg8[%48, %c0, %c0_18] : memref<2x162x128xf32, #tpu.memory_space<vmem>>, vector<1x128x128xf32>
    %50 = vector.shape_cast %49 : vector<1x128x128xf32> to vector<128x128xf32>
    %c0_19 = arith.constant 0 : index
    %c0_20 = arith.constant 0 : index
    %c0_21 = arith.constant 0 : index
    %51 = vector.load %arg3[%c0_19, %c0_20, %c0_21] : memref<9x128x128xf32, #tpu.memory_space<vmem>>, vector<1x128x128xf32>
    %52 = vector.shape_cast %51 : vector<1x128x128xf32> to vector<128x128xf32>
    %cst = arith.constant dense<0.000000e+00> : vector<128x128xf32>
    %53 = tpu.matmul %50, %52, %cst {dimension_numbers = #tpu.dot_dimension_numbers<[1], [0], [0], [1], [0, 0, 1, 1], [], []>} : vector<128x128xf32>, vector<128x128xf32>, vector<128x128xf32> -> vector<128x128xf32>
    %54 = arith.index_cast %9 : i32 to index
    %c16 = arith.constant 16 : index
    %c0_22 = arith.constant 0 : index
    %55 = vector.load %arg8[%54, %c16, %c0_22] : memref<2x162x128xf32, #tpu.memory_space<vmem>>, vector<1x128x128xf32>
    %56 = vector.shape_cast %55 : vector<1x128x128xf32> to vector<128x128xf32>
    %c3 = arith.constant 3 : index
    %c0_23 = arith.constant 0 : index
    %c0_24 = arith.constant 0 : index
    %57 = vector.load %arg3[%c3, %c0_23, %c0_24] : memref<9x128x128xf32, #tpu.memory_space<vmem>>, vector<1x128x128xf32>
    %58 = vector.shape_cast %57 : vector<1x128x128xf32> to vector<128x128xf32>
    %cst_25 = arith.constant dense<0.000000e+00> : vector<128x128xf32>
    %59 = tpu.matmul %56, %58, %cst_25 {dimension_numbers = #tpu.dot_dimension_numbers<[1], [0], [0], [1], [0, 0, 1, 1], [], []>} : vector<128x128xf32>, vector<128x128xf32>, vector<128x128xf32> -> vector<128x128xf32>
    %60 = arith.addf %53, %59 : vector<128x128xf32>
    %61 = arith.index_cast %9 : i32 to index
    %c32 = arith.constant 32 : index
    %c0_26 = arith.constant 0 : index
    %62 = vector.load %arg8[%61, %c32, %c0_26] : memref<2x162x128xf32, #tpu.memory_space<vmem>>, vector<1x128x128xf32>
    %63 = vector.shape_cast %62 : vector<1x128x128xf32> to vector<128x128xf32>
    %c6 = arith.constant 6 : index
    %c0_27 = arith.constant 0 : index
    %c0_28 = arith.constant 0 : index
    %64 = vector.load %arg3[%c6, %c0_27, %c0_28] : memref<9x128x128xf32, #tpu.memory_space<vmem>>, vector<1x128x128xf32>
    %65 = vector.shape_cast %64 : vector<1x128x128xf32> to vector<128x128xf32>
    %cst_29 = arith.constant dense<0.000000e+00> : vector<128x128xf32>
    %66 = tpu.matmul %63, %65, %cst_29 {dimension_numbers = #tpu.dot_dimension_numbers<[1], [0], [0], [1], [0, 0, 1, 1], [], []>} : vector<128x128xf32>, vector<128x128xf32>, vector<128x128xf32> -> vector<128x128xf32>
    %67 = arith.addf %60, %66 : vector<128x128xf32>
    %68 = arith.index_cast %9 : i32 to index
    %c1 = arith.constant 1 : index
    %c0_30 = arith.constant 0 : index
    %69 = vector.load %arg8[%68, %c1, %c0_30] : memref<2x162x128xf32, #tpu.memory_space<vmem>>, vector<1x128x128xf32>
    %70 = vector.shape_cast %69 : vector<1x128x128xf32> to vector<128x128xf32>
    %c1_31 = arith.constant 1 : index
    %c0_32 = arith.constant 0 : index
    %c0_33 = arith.constant 0 : index
    %71 = vector.load %arg3[%c1_31, %c0_32, %c0_33] : memref<9x128x128xf32, #tpu.memory_space<vmem>>, vector<1x128x128xf32>
    %72 = vector.shape_cast %71 : vector<1x128x128xf32> to vector<128x128xf32>
    %cst_34 = arith.constant dense<0.000000e+00> : vector<128x128xf32>
    %73 = tpu.matmul %70, %72, %cst_34 {dimension_numbers = #tpu.dot_dimension_numbers<[1], [0], [0], [1], [0, 0, 1, 1], [], []>} : vector<128x128xf32>, vector<128x128xf32>, vector<128x128xf32> -> vector<128x128xf32>
    %74 = arith.index_cast %9 : i32 to index
    %c17 = arith.constant 17 : index
    %c0_35 = arith.constant 0 : index
    %75 = vector.load %arg8[%74, %c17, %c0_35] : memref<2x162x128xf32, #tpu.memory_space<vmem>>, vector<1x128x128xf32>
    %76 = vector.shape_cast %75 : vector<1x128x128xf32> to vector<128x128xf32>
    %c4 = arith.constant 4 : index
    %c0_36 = arith.constant 0 : index
    %c0_37 = arith.constant 0 : index
    %77 = vector.load %arg3[%c4, %c0_36, %c0_37] : memref<9x128x128xf32, #tpu.memory_space<vmem>>, vector<1x128x128xf32>
    %78 = vector.shape_cast %77 : vector<1x128x128xf32> to vector<128x128xf32>
    %cst_38 = arith.constant dense<0.000000e+00> : vector<128x128xf32>
    %79 = tpu.matmul %76, %78, %cst_38 {dimension_numbers = #tpu.dot_dimension_numbers<[1], [0], [0], [1], [0, 0, 1, 1], [], []>} : vector<128x128xf32>, vector<128x128xf32>, vector<128x128xf32> -> vector<128x128xf32>
    %80 = arith.addf %73, %79 : vector<128x128xf32>
    %81 = arith.index_cast %9 : i32 to index
    %c33 = arith.constant 33 : index
    %c0_39 = arith.constant 0 : index
    %82 = vector.load %arg8[%81, %c33, %c0_39] : memref<2x162x128xf32, #tpu.memory_space<vmem>>, vector<1x128x128xf32>
    %83 = vector.shape_cast %82 : vector<1x128x128xf32> to vector<128x128xf32>
    %c7 = arith.constant 7 : index
    %c0_40 = arith.constant 0 : index
    %c0_41 = arith.constant 0 : index
    %84 = vector.load %arg3[%c7, %c0_40, %c0_41] : memref<9x128x128xf32, #tpu.memory_space<vmem>>, vector<1x128x128xf32>
    %85 = vector.shape_cast %84 : vector<1x128x128xf32> to vector<128x128xf32>
    %cst_42 = arith.constant dense<0.000000e+00> : vector<128x128xf32>
    %86 = tpu.matmul %83, %85, %cst_42 {dimension_numbers = #tpu.dot_dimension_numbers<[1], [0], [0], [1], [0, 0, 1, 1], [], []>} : vector<128x128xf32>, vector<128x128xf32>, vector<128x128xf32> -> vector<128x128xf32>
    %87 = arith.addf %80, %86 : vector<128x128xf32>
    %88 = arith.index_cast %9 : i32 to index
    %c2 = arith.constant 2 : index
    %c0_43 = arith.constant 0 : index
    %89 = vector.load %arg8[%88, %c2, %c0_43] : memref<2x162x128xf32, #tpu.memory_space<vmem>>, vector<1x128x128xf32>
    %90 = vector.shape_cast %89 : vector<1x128x128xf32> to vector<128x128xf32>
    %c2_44 = arith.constant 2 : index
    %c0_45 = arith.constant 0 : index
    %c0_46 = arith.constant 0 : index
    %91 = vector.load %arg3[%c2_44, %c0_45, %c0_46] : memref<9x128x128xf32, #tpu.memory_space<vmem>>, vector<1x128x128xf32>
    %92 = vector.shape_cast %91 : vector<1x128x128xf32> to vector<128x128xf32>
    %cst_47 = arith.constant dense<0.000000e+00> : vector<128x128xf32>
    %93 = tpu.matmul %90, %92, %cst_47 {dimension_numbers = #tpu.dot_dimension_numbers<[1], [0], [0], [1], [0, 0, 1, 1], [], []>} : vector<128x128xf32>, vector<128x128xf32>, vector<128x128xf32> -> vector<128x128xf32>
    %94 = arith.index_cast %9 : i32 to index
    %c18 = arith.constant 18 : index
    %c0_48 = arith.constant 0 : index
    %95 = vector.load %arg8[%94, %c18, %c0_48] : memref<2x162x128xf32, #tpu.memory_space<vmem>>, vector<1x128x128xf32>
    %96 = vector.shape_cast %95 : vector<1x128x128xf32> to vector<128x128xf32>
    %c5 = arith.constant 5 : index
    %c0_49 = arith.constant 0 : index
    %c0_50 = arith.constant 0 : index
    %97 = vector.load %arg3[%c5, %c0_49, %c0_50] : memref<9x128x128xf32, #tpu.memory_space<vmem>>, vector<1x128x128xf32>
    %98 = vector.shape_cast %97 : vector<1x128x128xf32> to vector<128x128xf32>
    %cst_51 = arith.constant dense<0.000000e+00> : vector<128x128xf32>
    %99 = tpu.matmul %96, %98, %cst_51 {dimension_numbers = #tpu.dot_dimension_numbers<[1], [0], [0], [1], [0, 0, 1, 1], [], []>} : vector<128x128xf32>, vector<128x128xf32>, vector<128x128xf32> -> vector<128x128xf32>
    %100 = arith.addf %93, %99 : vector<128x128xf32>
    %101 = arith.index_cast %9 : i32 to index
    %c34 = arith.constant 34 : index
    %c0_52 = arith.constant 0 : index
    %102 = vector.load %arg8[%101, %c34, %c0_52] : memref<2x162x128xf32, #tpu.memory_space<vmem>>, vector<1x128x128xf32>
    %103 = vector.shape_cast %102 : vector<1x128x128xf32> to vector<128x128xf32>
    %c8 = arith.constant 8 : index
    %c0_53 = arith.constant 0 : index
    %c0_54 = arith.constant 0 : index
    %104 = vector.load %arg3[%c8, %c0_53, %c0_54] : memref<9x128x128xf32, #tpu.memory_space<vmem>>, vector<1x128x128xf32>
    %105 = vector.shape_cast %104 : vector<1x128x128xf32> to vector<128x128xf32>
    %cst_55 = arith.constant dense<0.000000e+00> : vector<128x128xf32>
    %106 = tpu.matmul %103, %105, %cst_55 {dimension_numbers = #tpu.dot_dimension_numbers<[1], [0], [0], [1], [0, 0, 1, 1], [], []>} : vector<128x128xf32>, vector<128x128xf32>, vector<128x128xf32> -> vector<128x128xf32>
    %107 = arith.addf %100, %106 : vector<128x128xf32>
    %cst_56 = arith.constant 0.000000e+00 : f32
    %108 = vector.shape_cast %45 : vector<128x1xi1> to vector<128x1xi1>
    %109 = vector.broadcast %108 : vector<128x1xi1> to vector<128x128xi1>
    %110 = vector.broadcast %cst_56 : f32 to vector<128x128xf32>
    %111 = arith.select %109, %67, %110 : vector<128x128xi1>, vector<128x128xf32>
    %112 = arith.addf %87, %111 : vector<128x128xf32>
    %cst_57 = arith.constant 0.000000e+00 : f32
    %113 = vector.shape_cast %47 : vector<128x1xi1> to vector<128x1xi1>
    %114 = vector.broadcast %113 : vector<128x1xi1> to vector<128x128xi1>
    %115 = vector.broadcast %cst_57 : f32 to vector<128x128xf32>
    %116 = arith.select %114, %107, %115 : vector<128x128xi1>, vector<128x128xf32>
    %117 = arith.addf %112, %116 : vector<128x128xf32>
    %c0_58 = arith.constant 0 : index
    %c0_59 = arith.constant 0 : index
    %118 = vector.load %arg4[%c0_58, %c0_59] : memref<1x128xf32, #tpu.memory_space<vmem>>, vector<1x128xf32>
    %119 = vector.broadcast %118 : vector<1x128xf32> to vector<128x128xf32>
    %120 = arith.addf %117, %119 : vector<128x128xf32>
    %cst_60 = arith.constant 1.000000e-01 : f32
    %121 = vector.broadcast %cst_60 : f32 to vector<128x128xf32>
    %122 = arith.mulf %121, %120 : vector<128x128xf32>
    %123 = arith.maximumf %120, %122 : vector<128x128xf32>
    %c0_61 = arith.constant 0 : index
    %c0_62 = arith.constant 0 : index
    %124 = vector.load %arg5[%c0_61, %c0_62] : memref<128x128xf32, #tpu.memory_space<vmem>>, vector<128x128xf32>
    %cst_63 = arith.constant dense<0.000000e+00> : vector<128x128xf32>
    %125 = tpu.matmul %123, %124, %cst_63 {dimension_numbers = #tpu.dot_dimension_numbers<[1], [0], [0], [1], [0, 0, 1, 1], [], []>} : vector<128x128xf32>, vector<128x128xf32>, vector<128x128xf32> -> vector<128x128xf32>
    %c0_64 = arith.constant 0 : index
    %c0_65 = arith.constant 0 : index
    %126 = vector.load %arg6[%c0_64, %c0_65] : memref<1x128xf32, #tpu.memory_space<vmem>>, vector<1x128xf32>
    %127 = vector.broadcast %126 : vector<1x128xf32> to vector<128x128xf32>
    %128 = arith.addf %125, %127 : vector<128x128xf32>
    %c0_66 = arith.constant 0 : index
    %c0_67 = arith.constant 0 : index
    %c0_68 = arith.constant 0 : index
    %129 = vector.load %arg7[%c0_66, %c0_67, %c0_68] : memref<1x128x128xf32, #tpu.memory_space<vmem>>, vector<1x128x128xf32>
    %130 = vector.shape_cast %129 : vector<1x128x128xf32> to vector<128x128xf32>
    %131 = vector.shape_cast %128 : vector<128x128xf32> to vector<1x128x128xf32>
    tpu.vector_store %arg7[%c0_66, %c0_67, %c0_68], %131 {strides = array<i32>} : memref<1x128x128xf32, #tpu.memory_space<vmem>>, vector<1x128x128xf32>,
    return
  }
  func.func @transform_1(%arg0: i32, %arg1: i32) -> (i32, i32, i32) {
    %c0_i32 = arith.constant 0 : i32
    %c0_i32_0 = arith.constant 0 : i32
    %c0_i32_1 = arith.constant 0 : i32
    %c0_i32_2 = arith.constant 0 : i32
    return %c0_i32, %c0_i32_0, %c0_i32_1 : i32, i32, i32
  }
  func.func @transform_2(%arg0: i32, %arg1: i32) -> (i32, i32) {
    %c0_i32 = arith.constant 0 : i32
    %c0_i32_0 = arith.constant 0 : i32
    %c0_i32_1 = arith.constant 0 : i32
    return %c0_i32, %c0_i32_0 : i32, i32
  }
  func.func @transform_3(%arg0: i32, %arg1: i32) -> (i32, i32) {
    %c0_i32 = arith.constant 0 : i32
    %c0_i32_0 = arith.constant 0 : i32
    %c0_i32_1 = arith.constant 0 : i32
    return %c0_i32, %c0_i32_0 : i32, i32
  }
  func.func @transform_4(%arg0: i32, %arg1: i32) -> (i32, i32) {
    %c0_i32 = arith.constant 0 : i32
    %c0_i32_0 = arith.constant 0 : i32
    %c0_i32_1 = arith.constant 0 : i32
    return %c0_i32, %c0_i32_0 : i32, i32
  }
  func.func @transform_5(%arg0: i32, %arg1: i32) -> (i32, i32, i32) {
    %c0_i32 = arith.constant 0 : i32
    %c0_i32_0 = arith.constant 0 : i32
    return %arg0, %arg1, %c0_i32 : i32, i32, i32
  }
}

</mosaic_0001>

<llo_original>
// kernel: _scale_prediction_impl.1
$region0: #{_scale_prediction_impl.1}
  #allocation0 [shape = 'u32[]', space=smem, size = 0x4, offset = 0x4, fixed_abs, tag = 'smem constant byte address 0x4 - core index']
  #allocation1 [shape = 'u32[144,128]{1,0:T(1,128)}', space=vmem, size = 0x12000, scoped, tag = 'internal scratch']
  #allocation2 [shape = 'f32[2,162,128]{2,1,0:T(8,128)}', space=vmem, size = 0x2a000, scoped, tag = 'scratch operand']
  #allocation3 [shape = 's32[2]{0}', space=sflag, size = 0x8, scoped, tag = 'scratch operand']
  #allocation13 [shape = 's32[]', space=sflag, size = 0x4, offset = 0, fixed_abs, tag = 'sflag constant byte address 0x0 - dummy sync flag']
  #allocation14 [shape = 's32[]', space=sflag, size = 0x4, offset = 0, fixed_abs, tag = 'sflag constant byte address 0x0 - dummy sync flag']
  #allocation15 [shape = 'u32[]', space=smem, size = 0x4, offset = 0x44, fixed_abs, tag = 'smem constant byte address 0x44 - assertion arg 0']
  #allocation16 [shape = 'u32[]', space=smem, size = 0x4, offset = 0x48, fixed_abs, tag = 'smem constant byte address 0x48 - assertion arg 1']
  #allocation17 [shape = 's32[]', space=sflag, size = 0x4, offset = 0, fixed_abs, tag = 'sflag constant byte address 0x0 - dummy sync flag']
  #allocation18 [shape = 's32[]', space=sflag, size = 0x4, offset = 0, fixed_abs, tag = 'sflag constant byte address 0x0 - dummy sync flag']
  %s0 = inlined_call_operand.hbm [shape: f32[2,290,128], index: 0, kind: input, shape index: {}]
  %s1 = inlined_call_operand.hbm [shape: f32[9,128,128], index: 1, kind: input, shape index: {}]
  %s2 = inlined_call_operand.hbm [shape: f32[1,128], index: 2, kind: input, shape index: {}]
  %s3 = inlined_call_operand.hbm [shape: f32[128,128], index: 3, kind: input, shape index: {}]
  %s4 = inlined_call_operand.hbm [shape: f32[1,128], index: 4, kind: input, shape index: {}]
  %s5 = inlined_call_operand.hbm [shape: f32[2,256,128], index: 5, kind: output, shape index: {}]
  %s6 = sld [smem:[#allocation0]]
  $region81: #{_scale_prediction_impl.1} parent=0
    _
  %s8 = ssub.s32 1, %s6
  %s9 = scalar_select 0, %s8, %s6
  $region1: #{_scale_prediction_impl.1} parent=0
    #allocation4 [shape = 'u8[589824]{0}', space=vmem, size = 0x90000, scoped, tag = 'input window, operand 1, single buffered']
    #allocation5 [shape = 's32[2]{0}', space=sflag, size = 0x8, scoped, tag = 'scoped memory for _scale_prediction_impl.1']
    #allocation6 [shape = 's32[2]{0}', space=sflag, size = 0x8, scoped, tag = 'scoped memory for _scale_prediction_impl.1']
    #allocation7 [shape = 'u8[512]{0}', space=vmem, size = 0x400, scoped, tag = 'input window, operand 2, single buffered']
    #allocation8 [shape = 's32[1]{0}', space=sflag, size = 0x4, scoped, tag = 'scoped memory for _scale_prediction_impl.1']
    #allocation9 [shape = 'u8[65536]{0}', space=vmem, size = 0x10000, scoped, tag = 'input window, operand 3, single buffered']
    #allocation10 [shape = 'u8[512]{0}', space=vmem, size = 0x400, scoped, tag = 'input window, operand 4, single buffered']
    #allocation11 [shape = 's32[1]{0}', space=sflag, size = 0x4, scoped, tag = 'scoped memory for _scale_prediction_impl.1']
    #allocation12 [shape = 'u8[131072]{0}', space=vmem, size = 0x20000, scoped, tag = 'output window, operand 0']
    %10 = vsyncpa [#allocation5], 0
    %11 = vsyncpa [#allocation8], 0
    %12 = vsyncpa [#allocation11], 0
    %13 = vsyncpa [#allocation6], 0
    %s14 = scalar_lea.sflag [#allocation6], 1
    %15 = vsyncpa %s14, 0
    loop: start=0, step=1, limit=6
    $region2: #{_scale_prediction_impl.1} parent=1 // loop_pre_header
      _
    $region3: #{_scale_prediction_impl.1} parent=1 // loop_header
      %s17 = sphi 0, %s21
      %p18 = scmp.ge.s32.totalorder %s17, 6
      %s24 = sphi 0, %s36
      %s25 = sphi 0, %s32
      %s26 = sphi 0, %s24
      %s27 = sphi 0, %s25
      %s28 = sphi 0, %s26
      %s29 = sphi 0, %s27
      %s37 = sphi 0, %s37
      %s39 = sphi 0, %s37
      %s40 = sphi 0, %s39
      %s54 = sphi 0, %s40
      %s58 = sphi 0, %s58
      %s60 = sphi 0, %s58
      %s61 = sphi 0, %s60
      %s75 = sphi 0, %s61
      %s79 = sphi 0, %s79
      %s81 = sphi 0, %s79
      %s82 = sphi 0, %s81
      %s96 = sphi 0, %s82
      %s100 = sphi 0, %s100
      %s102 = sphi 0, %s100
      %s103 = sphi 0, %s102
      %s117 = sphi 0, %s103
      %s125 = sphi 0, %s127
      %s128 = sphi 0, %s125
      %s129 = sphi 0, %s128
      %s145 = sphi 0, %s129
    $region4: #{_scale_prediction_impl.1} parent=1 // loop_header_branch
      %20 = sbr.rel (%p18) target = $region8
    $region5: #{_scale_prediction_impl.1} parent=1 // loop_body
      %s22 = ssub.s32 %s17, 1
      %s23 = ssub.s32 %s17, 2
      %s30 = sadd.s32 1, %s25
      %p31 = scmp.ge.s32.totalorder %s30, 2
      %s32 = scalar_select %p31, 0, %s30
      %s33 = sadd.s32 1, %s24
      %s34 = scalar_select %p31, %s33, %s24
      %p35 = scmp.ge.s32.totalorder %s34, 2
      %s36 = scalar_select %p35, 0, %s34
      %s38 = sadd.s32 %s37, 1
      %p41 = scmp.eq.s32.totalorder %s17, 3
      %p42 = scmp.ne.s32.totalorder %s37, %s39
      %p43 = scmp.eq.s32.totalorder %s17, 0
      %p44 = por %p42, %p43
      %p45 = scmp.ne.s32.totalorder %s37, %s39
      %p46 = scmp.eq.s32.totalorder %s22, 3
      %p47 = por %p45, %p46
      %p48 = scmp.ne.s32.totalorder %s39, %s40
      %p49 = scmp.eq.s32.totalorder %s22, 0
      %p50 = por %p48, %p49
      %p51 = scmp.ne.s32.totalorder %s39, %s40
      %p52 = scmp.eq.s32.totalorder %s23, 3
      %p53 = por %p51, %p52
      %p55 = scmp.ne.s32.totalorder %s40, %s54
      %p56 = scmp.eq.s32.totalorder %s23, 0
      %p57 = por %p55, %p56
      %s59 = sadd.s32 %s58, 1
      %p62 = scmp.eq.s32.totalorder %s17, 3
      %p63 = scmp.ne.s32.totalorder %s58, %s60
      %p64 = scmp.eq.s32.totalorder %s17, 0
      %p65 = por %p63, %p64
      %p66 = scmp.ne.s32.totalorder %s58, %s60
      %p67 = scmp.eq.s32.totalorder %s22, 3
      %p68 = por %p66, %p67
      %p69 = scmp.ne.s32.totalorder %s60, %s61
      %p70 = scmp.eq.s32.totalorder %s22, 0
      %p71 = por %p69, %p70
      %p72 = scmp.ne.s32.totalorder %s60, %s61
      %p73 = scmp.eq.s32.totalorder %s23, 3
      %p74 = por %p72, %p73
      %p76 = scmp.ne.s32.totalorder %s61, %s75
      %p77 = scmp.eq.s32.totalorder %s23, 0
      %p78 = por %p76, %p77
      %s80 = sadd.s32 %s79, 1
      %p83 = scmp.eq.s32.totalorder %s17, 3
      %p84 = scmp.ne.s32.totalorder %s79, %s81
      %p85 = scmp.eq.s32.totalorder %s17, 0
      %p86 = por %p84, %p85
      %p87 = scmp.ne.s32.totalorder %s79, %s81
      %p88 = scmp.eq.s32.totalorder %s22, 3
      %p89 = por %p87, %p88
      %p90 = scmp.ne.s32.totalorder %s81, %s82
      %p91 = scmp.eq.s32.totalorder %s22, 0
      %p92 = por %p90, %p91
      %p93 = scmp.ne.s32.totalorder %s81, %s82
      %p94 = scmp.eq.s32.totalorder %s23, 3
      %p95 = por %p93, %p94
      %p97 = scmp.ne.s32.totalorder %s82, %s96
      %p98 = scmp.eq.s32.totalorder %s23, 0
      %p99 = por %p97, %p98
      %s101 = sadd.s32 %s100, 1
      %p104 = scmp.eq.s32.totalorder %s17, 3
      %p105 = scmp.ne.s32.totalorder %s100, %s102
      %p106 = scmp.eq.s32.totalorder %s17, 0
      %p107 = por %p105, %p106
      %p108 = scmp.ne.s32.totalorder %s100, %s102
      %p109 = scmp.eq.s32.totalorder %s22, 3
      %p110 = por %p108, %p109
      %p111 = scmp.ne.s32.totalorder %s102, %s103
      %p112 = scmp.eq.s32.totalorder %s22, 0
      %p113 = por %p111, %p112
      %p114 = scmp.ne.s32.totalorder %s102, %s103
      %p115 = scmp.eq.s32.totalorder %s23, 3
      %p116 = por %p114, %p115
      %p118 = scmp.ne.s32.totalorder %s103, %s117
      %p119 = scmp.eq.s32.totalorder %s23, 0
      %p120 = por %p118, %p119
      %s121 = ssub.s32 %s24, %s36
      %s122 = ssub.s32 %s25, %s32
      %s123 = sor.u32 %s121, %s122
      %p124 = scmp.eq.s32.totalorder %s123, 0
      %s126 = sadd.s32 %s125, 1
      %s127 = scalar_select %p124, %s125, %s126
      %p130 = pneg %p124
      %p131 = scmp.eq.s32.totalorder %s17, 3
      %p132 = por %p130, %p131
      %p133 = scmp.ne.s32.totalorder %s125, %s128
      %p134 = scmp.eq.s32.totalorder %s17, 0
      %p135 = por %p133, %p134
      %p136 = scmp.ne.s32.totalorder %s125, %s128
      %p137 = scmp.eq.s32.totalorder %s22, 3
      %p138 = por %p136, %p137
      %p139 = scmp.ne.s32.totalorder %s128, %s129
      %p140 = scmp.eq.s32.totalorder %s22, 0
      %p141 = por %p139, %p140
      %p142 = scmp.ne.s32.totalorder %s128, %s129
      %p143 = scmp.eq.s32.totalorder %s23, 3
      %p144 = por %p142, %p143
      %p146 = scmp.ne.s32.totalorder %s129, %s145
      %p147 = scmp.eq.s32.totalorder %s23, 0
      %p148 = por %p146, %p147
      %p149 = scmp.le.s32.totalorder 1, %s17
      %p150 = scmp.lt.s32.totalorder %s17, 5
      %p151 = pnand %p149, %p150
      %p152 = pneg %p151
      // Predicated region
      $region9: #{_scale_prediction_impl.1} parent=5 // pred_check
        _
      $region10: #{_scale_prediction_impl.1} parent=5 // pred_check_branch
        %154 = sbr.rel (%p151) target = $region12
      $region11: #{_scale_prediction_impl.1} parent=5 // pred_region
        %s155 = ssub.s32 %s17, 1
        // Predicated region
        $region13: #{_scale_prediction_impl.1} parent=11 // pred_check
          %p156 = pneg %p50
        $region14: #{_scale_prediction_impl.1} parent=11 // pred_check_branch
          %158 = sbr.rel (%p156) target = $region16
        $region15: #{_scale_prediction_impl.1} parent=11 // pred_region
          %s160 = ssub.s32 18432, 18432
          %161 = vsyncadd [#allocation5], %s160
          %s162 = sshll.u32 [#allocation4], 4
          %s163 = int_to_ptr.vmem [resolvable:$true] %s162
          %168 = dma.hbm_to_vmem [thread:$0]  %s1, 18432, %s163, [#allocation5], 128, 128, 8
        $region16: #{_scale_prediction_impl.1} parent=11 // pred_fallthru
          _
        // Predicated region
        $region17: #{_scale_prediction_impl.1} parent=11 // pred_check
          %p169 = pneg %p71
        $region18: #{_scale_prediction_impl.1} parent=11 // pred_check_branch
          %171 = sbr.rel (%p169) target = $region20
        $region19: #{_scale_prediction_impl.1} parent=11 // pred_region
          %s173 = ssub.s32 16, 16
          %174 = vsyncadd [#allocation8], %s173
          %s176 = sshll.u32 [#allocation7], 4
          %s177 = int_to_ptr.vmem [resolvable:$true] %s176
          %179 = dma.hbm_to_vmem [thread:$0]  %s2, 16, %s177, [#allocation8]
        $region20: #{_scale_prediction_impl.1} parent=11 // pred_fallthru
          _
        // Predicated region
        $region21: #{_scale_prediction_impl.1} parent=11 // pred_check
          %p180 = pneg %p92
        $region22: #{_scale_prediction_impl.1} parent=11 // pred_check_branch
          %182 = sbr.rel (%p180) target = $region24
        $region23: #{_scale_prediction_impl.1} parent=11 // pred_region
          %s184 = ssub.s32 2048, 2048
          %185 = vsyncadd [#allocation8], %s184
          %s186 = sshll.u32 [#allocation9], 4
          %s187 = int_to_ptr.vmem [resolvable:$true] %s186
          %192 = dma.hbm_to_vmem [thread:$0]  %s3, 2048, %s187, [#allocation8], 128, 128, 8
        $region24: #{_scale_prediction_impl.1} parent=11 // pred_fallthru
          _
        // Predicated region
        $region25: #{_scale_prediction_impl.1} parent=11 // pred_check
          %p193 = pneg %p113
        $region26: #{_scale_prediction_impl.1} parent=11 // pred_check_branch
          %195 = sbr.rel (%p193) target = $region28
        $region27: #{_scale_prediction_impl.1} parent=11 // pred_region
          %s197 = ssub.s32 16, 16
          %198 = vsyncadd [#allocation11], %s197
          %s200 = sshll.u32 [#allocation10], 4
          %s201 = int_to_ptr.vmem [resolvable:$true] %s200
          %203 = dma.hbm_to_vmem [thread:$0]  %s4, 16, %s201, [#allocation11]
        $region28: #{_scale_prediction_impl.1} parent=11 // pred_fallthru
          _
      $region12: #{_scale_prediction_impl.1} parent=5 // pred_fallthru
        _
      %p204 = scmp.lt.s32.totalorder %s17, 4
      // Predicated region
      $region29: #{_scale_prediction_impl.1} parent=5 // pred_check
        %p205 = pneg %p204
      $region30: #{_scale_prediction_impl.1} parent=5 // pred_check_branch
        %207 = sbr.rel (%p205) target = $region32
      $region31: #{_scale_prediction_impl.1} parent=5 // pred_region
        _
      $region32: #{_scale_prediction_impl.1} parent=5 // pred_fallthru
        _
      %p208 = scmp.le.s32.totalorder 1, %s17
      %p209 = scmp.lt.s32.totalorder %s17, 5
      %p210 = pnand %p208, %p209
      %p211 = pneg %p210
      // Predicated region
      $region33: #{_scale_prediction_impl.1} parent=5 // pred_check
        _
      $region34: #{_scale_prediction_impl.1} parent=5 // pred_check_branch
        %213 = sbr.rel (%p210) target = $region36
      $region35: #{_scale_prediction_impl.1} parent=5 // pred_region
        %s214 = ssub.s32 %s17, 1
        // Predicated region
        $region37: #{_scale_prediction_impl.1} parent=35 // pred_check
          %p215 = pneg %p50
        $region38: #{_scale_prediction_impl.1} parent=35 // pred_check_branch
          %217 = sbr.rel (%p215) target = $region40
        $region39: #{_scale_prediction_impl.1} parent=35 // pred_region
          %218 = dma.done [#allocation5], 18432
        $region40: #{_scale_prediction_impl.1} parent=35 // pred_fallthru
          _
        // Predicated region
        $region41: #{_scale_prediction_impl.1} parent=35 // pred_check
          %p219 = pneg %p71
        $region42: #{_scale_prediction_impl.1} parent=35 // pred_check_branch
          %221 = sbr.rel (%p219) target = $region44
        $region43: #{_scale_prediction_impl.1} parent=35 // pred_region
          %222 = dma.done [#allocation8], 16
        $region44: #{_scale_prediction_impl.1} parent=35 // pred_fallthru
          _
        // Predicated region
        $region45: #{_scale_prediction_impl.1} parent=35 // pred_check
          %p223 = pneg %p92
        $region46: #{_scale_prediction_impl.1} parent=35 // pred_check_branch
          %225 = sbr.rel (%p223) target = $region48
        $region47: #{_scale_prediction_impl.1} parent=35 // pred_region
          %226 = dma.done [#allocation8], 2048
        $region48: #{_scale_prediction_impl.1} parent=35 // pred_fallthru
          _
        // Predicated region
        $region49: #{_scale_prediction_impl.1} parent=35 // pred_check
          %p227 = pneg %p113
        $region50: #{_scale_prediction_impl.1} parent=35 // pred_check_branch
          %229 = sbr.rel (%p227) target = $region52
        $region51: #{_scale_prediction_impl.1} parent=35 // pred_region
          %230 = dma.done [#allocation11], 16
        $region52: #{_scale_prediction_impl.1} parent=35 // pred_fallthru
          _
        %p231 = pneg %p50
        %p232 = pneg %p47
        %p233 = pneg %p71
        %p234 = pneg %p68
        %p235 = pneg %p92
        %p236 = pneg %p89
        %p237 = pneg %p113
        %p238 = pneg %p110
        %p239 = pneg %p141
        %p240 = pneg %p138
        %s241 = sand.u32 %s128, 1
        %s242 = scalar_lea.sflag [#allocation6], %s241
        %s243 = sand.u32 %s128, 1
        %s244 = smul.addr %s243, 128
        %s245 = scalar_lea.vmem [#allocation12], %s244
        %s246 = smul.u32 16, %s27
        %p247 = scmp.lt.s32.totalorder %s27, 0
        %s248 = ssub.s32 0, %s27
        %s249 = scalar_select %p247, %s248, %s27
        %s250 = sand.u32 %s249, 1
        %s251 = ssub.s32 0, %s250
        %s252 = scalar_select %p247, %s251, %s250
        %p253 = scmp.ne.s32.totalorder %s252, 0
        %p254 = scmp.lt.s32.totalorder %s252, 0
        %p255 = pnand %p254, %p253
        %p256 = pneg %p255
        %s257 = sadd.s32 %s252, 2
        %s258 = scalar_select %p256, %s257, %s252
        %p259 = scmp.eq.s32.totalorder %s27, 0
        // Predicated region
        $region53: #{_scale_prediction_impl.1} parent=35 // pred_check
          %p260 = pneg %p259
        $region54: #{_scale_prediction_impl.1} parent=35 // pred_check_branch
          %262 = sbr.rel (%p260) target = $region56
        $region55: #{_scale_prediction_impl.1} parent=35 // pred_region
          %s263 = smul.u32 %s26, 296
          %s264 = smul.addr %s263, 16
          %s265 = scalar_lea.hbm %s0, %s264
          // Predicated region
          $region57: #{_scale_prediction_impl.1} parent=55 // pred_check
            _
          $region58: #{_scale_prediction_impl.1} parent=55 // pred_check_branch
            %267 = sbr.rel target = $region60
          $region59: #{_scale_prediction_impl.1} parent=55 // pred_region
            %268 = sst [smem:[#allocation15]] [#allocation14]
            %269 = sst [smem:[#allocation16]] [#allocation13]
          $region60: #{_scale_prediction_impl.1} parent=55 // pred_fallthru
            _
          %271 = shalt.err (0)
          %s273 = sshll.u32 [#allocation2], 4
          %s274 = int_to_ptr.vmem [resolvable:$true] %s273
          %276 = dma.hbm_to_vmem [thread:$0]  %s265, 2592, %s274, [#allocation3]
        $region56: #{_scale_prediction_impl.1} parent=35 // pred_fallthru
          _
        %s277 = smul.u32 %s27, 128
        %s278 = smul.u32 %s258, 168
        %s279 = scalar_lea.vmem [#allocation2], %s278
        %s280 = scalar_lea.sflag [#allocation3], %s258
        %s281 = smul.u32 162, 1
        %s282 = sshll.u32 %s281, 4
        %283 = dma.done %s280, %s282
        %s284 = sadd.s32 %s27, 1
        %p285 = scmp.lt.s32.totalorder %s284, 2
        // Predicated region
        $region61: #{_scale_prediction_impl.1} parent=35 // pred_check
          %p286 = pneg %p285
        $region62: #{_scale_prediction_impl.1} parent=35 // pred_check_branch
          %288 = sbr.rel (%p286) target = $region64
        $region63: #{_scale_prediction_impl.1} parent=35 // pred_region
          %s289 = ssub.s32 1, %s258
          %s290 = smul.u32 %s284, 128
          %s291 = smul.u32 %s26, 296
          %s292 = sadd.s32 %s290, %s291
          %s293 = smul.addr %s292, 16
          %s294 = scalar_lea.hbm %s0, %s293
          %s295 = smul.u32 %s289, 168
          %s296 = scalar_lea.vmem [#allocation2], %s295
          %s297 = scalar_lea.sflag [#allocation3], %s289
          // Predicated region
          $region65: #{_scale_prediction_impl.1} parent=63 // pred_check
            _
          $region66: #{_scale_prediction_impl.1} parent=63 // pred_check_branch
            %299 = sbr.rel target = $region68
          $region67: #{_scale_prediction_impl.1} parent=63 // pred_region
            %300 = sst [smem:[#allocation15]] [#allocation18]
            %301 = sst [smem:[#allocation16]] [#allocation17]
          $region68: #{_scale_prediction_impl.1} parent=63 // pred_fallthru
            _
          %303 = shalt.err (0)
          %s305 = sshll.u32 %s296, 4
          %s306 = int_to_ptr.vmem [resolvable:$true] %s305
          %308 = dma.hbm_to_vmem [thread:$0]  %s294, 2592, %s306, %s297
        $region64: #{_scale_prediction_impl.1} parent=35 // pred_fallthru
          _
        %v309 = vlaneseq
        %v310 = vshrl.u32 %v309, 7
        %v311 = vadd.s32 %v310, 8
        %v312 = vadd.s32 %v310, 16
        %v313 = vadd.s32 %v310, 24
        %v314 = vadd.s32 %v310, 32
        %v315 = vadd.s32 %v310, 40
        %v316 = vadd.s32 %v310, 48
        %v317 = vadd.s32 %v310, 56
        %v318 = vadd.s32 %v310, 64
        %v319 = vadd.s32 %v310, 72
        %v320 = vadd.s32 %v310, 80
        %v321 = vadd.s32 %v310, 88
        %v322 = vadd.s32 %v310, 96
        %v323 = vadd.s32 %v310, 104
        %v324 = vadd.s32 %v310, 112
        %v325 = vadd.s32 %v310, 120
        %v326 = vstv %s277
        %v327 = vadd.s32 %v326, %v310
        %v328 = vadd.s32 %v326, %v311
        %v329 = vadd.s32 %v326, %v312
        %v330 = vadd.s32 %v326, %v313
        %v331 = vadd.s32 %v326, %v314
        %v332 = vadd.s32 %v326, %v315
        %v333 = vadd.s32 %v326, %v316
        %v334 = vadd.s32 %v326, %v317
        %v335 = vadd.s32 %v326, %v318
        %v336 = vadd.s32 %v326, %v319
        %v337 = vadd.s32 %v326, %v320
        %v338 = vadd.s32 %v326, %v321
        %v339 = vadd.s32 %v326, %v322
        %v340 = vadd.s32 %v326, %v323
        %v341 = vadd.s32 %v326, %v324
        %v342 = vadd.s32 %v326, %v325
        %vm343 = vcmp.lt.s32.totalorder %v327, 0
        %v344 = vsub.s32 0, %v327
        %v345 = vsel %vm343, %v344, %v327
        %v346 = vshrl.u32 %v345, 4
        %v347 = vand.u32 %v345, 15
        %v348 = vsub.s32 0, %v347
        %v349 = vsel %vm343, %v348, %v347
        %vm350 = vcmp.lt.s32.totalorder %v328, 0
        %v351 = vsub.s32 0, %v328
        %v352 = vsel %vm350, %v351, %v328
        %v353 = vshrl.u32 %v352, 4
        %v354 = vand.u32 %v352, 15
        %v355 = vsub.s32 0, %v354
        %v356 = vsel %vm350, %v355, %v354
        %vm357 = vcmp.lt.s32.totalorder %v329, 0
        %v358 = vsub.s32 0, %v329
        %v359 = vsel %vm357, %v358, %v329
        %v360 = vshrl.u32 %v359, 4
        %v361 = vand.u32 %v359, 15
        %v362 = vsub.s32 0, %v361
        %v363 = vsel %vm357, %v362, %v361
        %vm364 = vcmp.lt.s32.totalorder %v330, 0
        %v365 = vsub.s32 0, %v330
        %v366 = vsel %vm364, %v365, %v330
        %v367 = vshrl.u32 %v366, 4
        %v368 = vand.u32 %v366, 15
        %v369 = vsub.s32 0, %v368
        %v370 = vsel %vm364, %v369, %v368
        %vm371 = vcmp.lt.s32.totalorder %v331, 0
        %v372 = vsub.s32 0, %v331
        %v373 = vsel %vm371, %v372, %v331
        %v374 = vshrl.u32 %v373, 4
        %v375 = vand.u32 %v373, 15
        %v376 = vsub.s32 0, %v375
        %v377 = vsel %vm371, %v376, %v375
        %vm378 = vcmp.lt.s32.totalorder %v332, 0
        %v379 = vsub.s32 0, %v332
        %v380 = vsel %vm378, %v379, %v332
        %v381 = vshrl.u32 %v380, 4
        %v382 = vand.u32 %v380, 15
        %v383 = vsub.s32 0, %v382
        %v384 = vsel %vm378, %v383, %v382
        %vm385 = vcmp.lt.s32.totalorder %v333, 0
        %v386 = vsub.s32 0, %v333
        %v387 = vsel %vm385, %v386, %v333
        %v388 = vshrl.u32 %v387, 4
        %v389 = vand.u32 %v387, 15
        %v390 = vsub.s32 0, %v389
        %v391 = vsel %vm385, %v390, %v389
        %vm392 = vcmp.lt.s32.totalorder %v334, 0
        %v393 = vsub.s32 0, %v334
        %v394 = vsel %vm392, %v393, %v334
        %v395 = vshrl.u32 %v394, 4
        %v396 = vand.u32 %v394, 15
        %v397 = vsub.s32 0, %v396
        %v398 = vsel %vm392, %v397, %v396
        %vm399 = vcmp.lt.s32.totalorder %v335, 0
        %v400 = vsub.s32 0, %v335
        %v401 = vsel %vm399, %v400, %v335
        %v402 = vshrl.u32 %v401, 4
        %v403 = vand.u32 %v401, 15
        %v404 = vsub.s32 0, %v403
        %v405 = vsel %vm399, %v404, %v403
        %vm406 = vcmp.lt.s32.totalorder %v336, 0
        %v407 = vsub.s32 0, %v336
        %v408 = vsel %vm406, %v407, %v336
        %v409 = vshrl.u32 %v408, 4
        %v410 = vand.u32 %v408, 15
        %v411 = vsub.s32 0, %v410
        %v412 = vsel %vm406, %v411, %v410
        %vm413 = vcmp.lt.s32.totalorder %v337, 0
        %v414 = vsub.s32 0, %v337
        %v415 = vsel %vm413, %v414, %v337
        %v416 = vshrl.u32 %v415, 4
        %v417 = vand.u32 %v415, 15
        %v418 = vsub.s32 0, %v417
        %v419 = vsel %vm413, %v418, %v417
        %vm420 = vcmp.lt.s32.totalorder %v338, 0
        %v421 = vsub.s32 0, %v338
        %v422 = vsel %vm420, %v421, %v338
        %v423 = vshrl.u32 %v422, 4
        %v424 = vand.u32 %v422, 15
        %v425 = vsub.s32 0, %v424
        %v426 = vsel %vm420, %v425, %v424
        %vm427 = vcmp.lt.s32.totalorder %v339, 0
        %v428 = vsub.s32 0, %v339
        %v429 = vsel %vm427, %v428, %v339
        %v430 = vshrl.u32 %v429, 4
        %v431 = vand.u32 %v429, 15
        %v432 = vsub.s32 0, %v431
        %v433 = vsel %vm427, %v432, %v431
        %vm434 = vcmp.lt.s32.totalorder %v340, 0
        %v435 = vsub.s32 0, %v340
        %v436 = vsel %vm434, %v435, %v340
        %v437 = vshrl.u32 %v436, 4
        %v438 = vand.u32 %v436, 15
        %v439 = vsub.s32 0, %v438
        %v440 = vsel %vm434, %v439, %v438
        %vm441 = vcmp.lt.s32.totalorder %v341, 0
        %v442 = vsub.s32 0, %v341
        %v443 = vsel %vm441, %v442, %v341
        %v444 = vshrl.u32 %v443, 4
        %v445 = vand.u32 %v443, 15
        %v446 = vsub.s32 0, %v445
        %v447 = vsel %vm441, %v446, %v445
        %vm448 = vcmp.lt.s32.totalorder %v342, 0
        %v449 = vsub.s32 0, %v342
        %v450 = vsel %vm448, %v449, %v342
        %v451 = vshrl.u32 %v450, 4
        %v452 = vand.u32 %v450, 15
        %v453 = vsub.s32 0, %v452
        %v454 = vsel %vm448, %v453, %v452
        %vm455 = vcmp.ne.s32.totalorder %v349, 0
        %vm456 = vcmp.ne.s32.totalorder %v356, 0
        %vm457 = vcmp.ne.s32.totalorder %v363, 0
        %vm458 = vcmp.ne.s32.totalorder %v370, 0
        %vm459 = vcmp.ne.s32.totalorder %v377, 0
        %vm460 = vcmp.ne.s32.totalorder %v384, 0
        %vm461 = vcmp.ne.s32.totalorder %v391, 0
        %vm462 = vcmp.ne.s32.totalorder %v398, 0
        %vm463 = vcmp.ne.s32.totalorder %v405, 0
        %vm464 = vcmp.ne.s32.totalorder %v412, 0
        %vm465 = vcmp.ne.s32.totalorder %v419, 0
        %vm466 = vcmp.ne.s32.totalorder %v426, 0
        %vm467 = vcmp.ne.s32.totalorder %v433, 0
        %vm468 = vcmp.ne.s32.totalorder %v440, 0
        %vm469 = vcmp.ne.s32.totalorder %v447, 0
        %vm470 = vcmp.ne.s32.totalorder %v454, 0
        %vm471 = vcmp.lt.s32.totalorder %v349, 0
        %vm472 = vcmp.lt.s32.totalorder %v356, 0
        %vm473 = vcmp.lt.s32.totalorder %v363, 0
        %vm474 = vcmp.lt.s32.totalorder %v370, 0
        %vm475 = vcmp.lt.s32.totalorder %v377, 0
        %vm476 = vcmp.lt.s32.totalorder %v384, 0
        %vm477 = vcmp.lt.s32.totalorder %v391, 0
        %vm478 = vcmp.lt.s32.totalorder %v398, 0
        %vm479 = vcmp.lt.s32.totalorder %v405, 0
        %vm480 = vcmp.lt.s32.totalorder %v412, 0
        %vm481 = vcmp.lt.s32.totalorder %v419, 0
        %vm482 = vcmp.lt.s32.totalorder %v426, 0
        %vm483 = vcmp.lt.s32.totalorder %v433, 0
        %vm484 = vcmp.lt.s32.totalorder %v440, 0
        %vm485 = vcmp.lt.s32.totalorder %v447, 0
        %vm486 = vcmp.lt.s32.totalorder %v454, 0
        %vm487 = vmand %vm471, %vm455
        %vm488 = vmand %vm472, %vm456
        %vm489 = vmand %vm473, %vm457
        %vm490 = vmand %vm474, %vm458
        %vm491 = vmand %vm475, %vm459
        %vm492 = vmand %vm476, %vm460
        %vm493 = vmand %vm477, %vm461
        %vm494 = vmand %vm478, %vm462
        %vm495 = vmand %vm479, %vm463
        %vm496 = vmand %vm480, %vm464
        %vm497 = vmand %vm481, %vm465
        %vm498 = vmand %vm482, %vm466
        %vm499 = vmand %vm483, %vm467
        %vm500 = vmand %vm484, %vm468
        %vm501 = vmand %vm485, %vm469
        %vm502 = vmand %vm486, %vm470
        %v503 = vadd.s32 %v349, 16
        %v504 = vadd.s32 %v356, 16
        %v505 = vadd.s32 %v363, 16
        %v506 = vadd.s32 %v370, 16
        %v507 = vadd.s32 %v377, 16
        %v508 = vadd.s32 %v384, 16
        %v509 = vadd.s32 %v391, 16
        %v510 = vadd.s32 %v398, 16
        %v511 = vadd.s32 %v405, 16
        %v512 = vadd.s32 %v412, 16
        %v513 = vadd.s32 %v419, 16
        %v514 = vadd.s32 %v426, 16
        %v515 = vadd.s32 %v433, 16
        %v516 = vadd.s32 %v440, 16
        %v517 = vadd.s32 %v447, 16
        %v518 = vadd.s32 %v454, 16
        %v519 = vsel %vm487, %v503, %v349
        %v520 = vsel %vm488, %v504, %v356
        %v521 = vsel %vm489, %v505, %v363
        %v522 = vsel %vm490, %v506, %v370
        %v523 = vsel %vm491, %v507, %v377
        %v524 = vsel %vm492, %v508, %v384
        %v525 = vsel %vm493, %v509, %v391
        %v526 = vsel %vm494, %v510, %v398
        %v527 = vsel %vm495, %v511, %v405
        %v528 = vsel %vm496, %v512, %v412
        %v529 = vsel %vm497, %v513, %v419
        %v530 = vsel %vm498, %v514, %v426
        %v531 = vsel %vm499, %v515, %v433
        %v532 = vsel %vm500, %v516, %v440
        %v533 = vsel %vm501, %v517, %v447
        %v534 = vsel %vm502, %v518, %v454
        %vm535 = vcmp.ne.s32.totalorder %v519, 0
        %vm536 = vcmp.ne.s32.totalorder %v520, 0
        %vm537 = vcmp.ne.s32.totalorder %v521, 0
        %vm538 = vcmp.ne.s32.totalorder %v522, 0
        %vm539 = vcmp.ne.s32.totalorder %v523, 0
        %vm540 = vcmp.ne.s32.totalorder %v524, 0
        %vm541 = vcmp.ne.s32.totalorder %v525, 0
        %vm542 = vcmp.ne.s32.totalorder %v526, 0
        %vm543 = vcmp.ne.s32.totalorder %v527, 0
        %vm544 = vcmp.ne.s32.totalorder %v528, 0
        %vm545 = vcmp.ne.s32.totalorder %v529, 0
        %vm546 = vcmp.ne.s32.totalorder %v530, 0
        %vm547 = vcmp.ne.s32.totalorder %v531, 0
        %vm548 = vcmp.ne.s32.totalorder %v532, 0
        %vm549 = vcmp.ne.s32.totalorder %v533, 0
        %vm550 = vcmp.ne.s32.totalorder %v534, 0
        %vm551 = vcmp.ne.s32.totalorder %v519, 15
        %vm552 = vcmp.ne.s32.totalorder %v520, 15
        %vm553 = vcmp.ne.s32.totalorder %v521, 15
        %vm554 = vcmp.ne.s32.totalorder %v522, 15
        %vm555 = vcmp.ne.s32.totalorder %v523, 15
        %vm556 = vcmp.ne.s32.totalorder %v524, 15
        %vm557 = vcmp.ne.s32.totalorder %v525, 15
        %vm558 = vcmp.ne.s32.totalorder %v526, 15
        %vm559 = vcmp.ne.s32.totalorder %v527, 15
        %vm560 = vcmp.ne.s32.totalorder %v528, 15
        %vm561 = vcmp.ne.s32.totalorder %v529, 15
        %vm562 = vcmp.ne.s32.totalorder %v530, 15
        %vm563 = vcmp.ne.s32.totalorder %v531, 15
        %vm564 = vcmp.ne.s32.totalorder %v532, 15
        %vm565 = vcmp.ne.s32.totalorder %v533, 15
        %vm566 = vcmp.ne.s32.totalorder %v534, 15
        %v567 = vld [vmem:[%s279] sm:$0xff]
        %v568 = vld [vmem:[%s279 + $0x8] sm:$0xff]
        %v569 = vld [vmem:[%s279 + $0x10] sm:$0xff]
        %v570 = vld [vmem:[%s279 + $0x18] sm:$0xff]
        %v571 = vld [vmem:[%s279 + $0x20] sm:$0xff]
        %v572 = vld [vmem:[%s279 + $0x28] sm:$0xff]
        %v573 = vld [vmem:[%s279 + $0x30] sm:$0xff]
        %v574 = vld [vmem:[%s279 + $0x38] sm:$0xff]
        %v575 = vld [vmem:[%s279 + $0x40] sm:$0xff]
        %v576 = vld [vmem:[%s279 + $0x48] sm:$0xff]
        %v577 = vld [vmem:[%s279 + $0x50] sm:$0xff]
        %v578 = vld [vmem:[%s279 + $0x58] sm:$0xff]
        %v579 = vld [vmem:[%s279 + $0x60] sm:$0xff]
        %v580 = vld [vmem:[%s279 + $0x68] sm:$0xff]
        %v581 = vld [vmem:[%s279 + $0x70] sm:$0xff]
        %v582 = vld [vmem:[%s279 + $0x78] sm:$0xff]
        %v583 = vld [vmem:[#allocation4] sm:$0xff]
        %v584 = vld [vmem:[#allocation4 + $0x8] sm:$0xff]
        %v585 = vld [vmem:[#allocation4 + $0x10] sm:$0xff]
        %v586 = vld [vmem:[#allocation4 + $0x18] sm:$0xff]
        %v587 = vld [vmem:[#allocation4 + $0x20] sm:$0xff]
        %v588 = vld [vmem:[#allocation4 + $0x28] sm:$0xff]
        %v589 = vld [vmem:[#allocation4 + $0x30] sm:$0xff]
        %v590 = vld [vmem:[#allocation4 + $0x38] sm:$0xff]
        %v591 = vld [vmem:[#allocation4 + $0x40] sm:$0xff]
        %v592 = vld [vmem:[#allocation4 + $0x48] sm:$0xff]
        %v593 = vld [vmem:[#allocation4 + $0x50] sm:$0xff]
        %v594 = vld [vmem:[#allocation4 + $0x58] sm:$0xff]
        %v595 = vld [vmem:[#allocation4 + $0x60] sm:$0xff]
        %v596 = vld [vmem:[#allocation4 + $0x68] sm:$0xff]
        %v597 = vld [vmem:[#allocation4 + $0x70] sm:$0xff]
        %v598 = vld [vmem:[#allocation4 + $0x78] sm:$0xff]
        %v599 = vld [vmem:[%s279 + $0x80] sm:$0xff]
        %v600 = vld [vmem:[%s279 + $0x88] sm:$0xff]
        %s601 = scalar_lea.vmem [#allocation4], 384
        %v602 = vld [vmem:[%s601] sm:$0xff]
        %v603 = vld [vmem:[%s601 + $0x8] sm:$0xff]
        %v604 = vld [vmem:[%s601 + $0x10] sm:$0xff]
        %v605 = vld [vmem:[%s601 + $0x18] sm:$0xff]
        %v606 = vld [vmem:[%s601 + $0x20] sm:$0xff]
        %v607 = vld [vmem:[%s601 + $0x28] sm:$0xff]
        %v608 = vld [vmem:[%s601 + $0x30] sm:$0xff]
        %v609 = vld [vmem:[%s601 + $0x38] sm:$0xff]
        %v610 = vld [vmem:[%s601 + $0x40] sm:$0xff]
        %v611 = vld [vmem:[%s601 + $0x48] sm:$0xff]
        %v612 = vld [vmem:[%s601 + $0x50] sm:$0xff]
        %v613 = vld [vmem:[%s601 + $0x58] sm:$0xff]
        %v614 = vld [vmem:[%s601 + $0x60] sm:$0xff]
        %v615 = vld [vmem:[%s601 + $0x68] sm:$0xff]
        %v616 = vld [vmem:[%s601 + $0x70] sm:$0xff]
        %v617 = vld [vmem:[%s601 + $0x78] sm:$0xff]
        %618 = vmatprep.subr.mxu0 0.0
        %619 = vmatpush1.msra.mxu0 %v602
        %620 = vmatprep.subr.mxu0 0.0
        %621 = vmatpush1.msra.mxu0 %v603
        %622 = vmatprep.subr.mxu0 0.0
        %623 = vmatpush1.msra.mxu0 %v604
        %624 = vmatprep.subr.mxu0 0.0
        %625 = vmatpush1.msra.mxu0 %v605
        %626 = vmatprep.subr.mxu0 0.0
        %627 = vmatpush1.msra.mxu0 %v606
        %628 = vmatprep.subr.mxu0 0.0
        %629 = vmatpush1.msra.mxu0 %v607
        %630 = vmatprep.subr.mxu0 0.0
        %631 = vmatpush1.msra.mxu0 %v608
        %632 = vmatprep.subr.mxu0 0.0
        %633 = vmatpush1.msra.mxu0 %v609
        %634 = vmatprep.subr.mxu0 0.0
        %635 = vmatpush1.msra.mxu0 %v610
        %636 = vmatprep.subr.mxu0 0.0
        %637 = vmatpush1.msra.mxu0 %v611
        %638 = vmatprep.subr.mxu0 0.0
        %639 = vmatpush1.msra.mxu0 %v612
        %640 = vmatprep.subr.mxu0 0.0
        %641 = vmatpush1.msra.mxu0 %v613
        %642 = vmatprep.subr.mxu0 0.0
        %643 = vmatpush1.msra.mxu0 %v614
        %644 = vmatprep.subr.mxu0 0.0
        %645 = vmatpush1.msra.mxu0 %v615
        %646 = vmatprep.subr.mxu0 0.0
        %647 = vmatpush1.msra.mxu0 %v616
        %648 = vmatprep.subr.mxu0 0.0
        %649 = vmatpush1.msra.mxu0 %v617
        %650 = vmatprep.subr.mxu0 0.0
        %651 = vmatpush1.msra.mxu0 0.0
        %652 = vmatprep.subr.mxu0 0.0
        %653 = vmatpush1.msra.mxu0 0.0
        %654 = vmatprep.subr.mxu0 0.0
        %655 = vmatpush1.msra.mxu0 0.0
        %656 = vmatprep.subr.mxu0 0.0
        %657 = vmatpush1.msra.mxu0 0.0
        %658 = vmatprep.subr.mxu0 0.0
        %659 = vmatpush1.msra.mxu0 0.0
        %660 = vmatprep.subr.mxu0 0.0
        %661 = vmatpush1.msra.mxu0 0.0
        %662 = vmatprep.subr.mxu0 0.0
        %663 = vmatpush1.msra.mxu0 0.0
        %664 = vmatprep.subr.mxu0 0.0
        %665 = vmatpush1.msra.mxu0 0.0
        %666 = vmatprep.subr.mxu0 0.0
        %667 = vmatpush1.msra.mxu0 0.0
        %668 = vmatprep.subr.mxu0 0.0
        %669 = vmatpush1.msra.mxu0 0.0
        %670 = vmatprep.subr.mxu0 0.0
        %671 = vmatpush1.msra.mxu0 0.0
        %672 = vmatprep.subr.mxu0 0.0
        %673 = vmatpush1.msra.mxu0 0.0
        %674 = vmatprep.subr.mxu0 0.0
        %675 = vmatpush1.msra.mxu0 0.0
        %676 = vmatprep.subr.mxu0 0.0
        %677 = vmatpush1.msra.mxu0 0.0
        %678 = vmatprep.subr.mxu0 0.0
        %679 = vmatpush1.msra.mxu0 0.0
        %680 = vmatprep.subr.mxu0 0.0
        %681 = vmatpush1.msra.mxu0 0.0
        %682 = vmatprep.mubr.f32.mxu0 0.0
        %683 = vmatmul.mubr.f32.gmra.mrb[0].mxu0 %v569
        %v684 = vpop.f32.mrb[0].mxu0
        %v685 = vadd.f32 0.0, %v684
        %v686 = vpop.f32.mrb[0].mxu0
        %687 = vmatprep.mubr.f32.mxu0 0.0
        %688 = vmatmul.mubr.f32.gmra.mrb[0].mxu0 %v570
        %v689 = vpop.f32.mrb[0].mxu0
        %v690 = vadd.f32 0.0, %v689
        %v691 = vpop.f32.mrb[0].mxu0
        %692 = vmatprep.mubr.f32.mxu0 0.0
        %693 = vmatmul.mubr.f32.gmra.mrb[0].mxu0 %v571
        %v694 = vpop.f32.mrb[0].mxu0
        %v695 = vadd.f32 0.0, %v694
        %v696 = vpop.f32.mrb[0].mxu0
        %697 = vmatprep.mubr.f32.mxu0 0.0
        %698 = vmatmul.mubr.f32.gmra.mrb[0].mxu0 %v572
        %v699 = vpop.f32.mrb[0].mxu0
        %v700 = vadd.f32 0.0, %v699
        %v701 = vpop.f32.mrb[0].mxu0
        %702 = vmatprep.mubr.f32.mxu0 0.0
        %703 = vmatmul.mubr.f32.gmra.mrb[0].mxu0 %v573
        %v704 = vpop.f32.mrb[0].mxu0
        %v705 = vadd.f32 0.0, %v704
        %v706 = vpop.f32.mrb[0].mxu0
        %707 = vmatprep.mubr.f32.mxu0 0.0
        %708 = vmatmul.mubr.f32.gmra.mrb[0].mxu0 %v574
        %v709 = vpop.f32.mrb[0].mxu0
        %v710 = vadd.f32 0.0, %v709
        %v711 = vpop.f32.mrb[0].mxu0
        %712 = vmatprep.mubr.f32.mxu0 0.0
        %713 = vmatmul.mubr.f32.gmra.mrb[0].mxu0 %v575
        %v714 = vpop.f32.mrb[0].mxu0
        %v715 = vadd.f32 0.0, %v714
        %v716 = vpop.f32.mrb[0].mxu0
        %717 = vmatprep.mubr.f32.mxu0 0.0
        %718 = vmatmul.mubr.f32.gmra.mrb[0].mxu0 %v576
        %v719 = vpop.f32.mrb[0].mxu0
        %v720 = vadd.f32 0.0, %v719
        %v721 = vpop.f32.mrb[0].mxu0
        %722 = vmatprep.mubr.f32.mxu0 0.0
        %723 = vmatmul.mubr.f32.gmra.mrb[0].mxu0 %v577
        %v724 = vpop.f32.mrb[0].mxu0
        %v725 = vadd.f32 0.0, %v724
        %v726 = vpop.f32.mrb[0].mxu0
        %727 = vmatprep.mubr.f32.mxu0 0.0
        %728 = vmatmul.mubr.f32.gmra.mrb[0].mxu0 %v578
        %v729 = vpop.f32.mrb[0].mxu0
        %v730 = vadd.f32 0.0, %v729
        %v731 = vpop.f32.mrb[0].mxu0
        %732 = vmatprep.mubr.f32.mxu0 0.0
        %733 = vmatmul.mubr.f32.gmra.mrb[0].mxu0 %v579
        %v734 = vpop.f32.mrb[0].mxu0
        %v735 = vadd.f32 0.0, %v734
        %v736 = vpop.f32.mrb[0].mxu0
        %737 = vmatprep.mubr.f32.mxu0 0.0
        %738 = vmatmul.mubr.f32.gmra.mrb[0].mxu0 %v580
        %v739 = vpop.f32.mrb[0].mxu0
        %v740 = vadd.f32 0.0, %v739
        %v741 = vpop.f32.mrb[0].mxu0
        %742 = vmatprep.mubr.f32.mxu0 0.0
        %743 = vmatmul.mubr.f32.gmra.mrb[0].mxu0 %v581
        %v744 = vpop.f32.mrb[0].mxu0
        %v745 = vadd.f32 0.0, %v744
        %v746 = vpop.f32.mrb[0].mxu0
        %747 = vmatprep.mubr.f32.mxu0 0.0
        %748 = vmatmul.mubr.f32.gmra.mrb[0].mxu0 %v582
        %v749 = vpop.f32.mrb[0].mxu0
        %v750 = vadd.f32 0.0, %v749
        %v751 = vpop.f32.mrb[0].mxu0
        %752 = vmatprep.mubr.f32.mxu0 0.0
        %753 = vmatmul.mubr.f32.gmra.mrb[0].mxu0 %v599
        %v754 = vpop.f32.mrb[0].mxu0
        %v755 = vadd.f32 0.0, %v754
        %v756 = vpop.f32.mrb[0].mxu0
        %757 = vmatprep.mubr.f32.mxu0 0.0
        %758 = vmatmul.mubr.f32.gmra.mrb[0].mxu0 %v600
        %v759 = vpop.f32.mrb[0].mxu0
        %v760 = vadd.f32 0.0, %v759
        %v761 = vpop.f32.mrb[0].mxu0
        %762 = vdwg.mxu0
        %763 = vmatprep.subr.mxu0 0.0
        %764 = vmatpush1.msra.mxu0 %v583
        %765 = vmatprep.subr.mxu0 0.0
        %766 = vmatpush1.msra.mxu0 %v584
        %767 = vmatprep.subr.mxu0 0.0
        %768 = vmatpush1.msra.mxu0 %v585
        %769 = vmatprep.subr.mxu0 0.0
        %770 = vmatpush1.msra.mxu0 %v586
        %771 = vmatprep.subr.mxu0 0.0
        %772 = vmatpush1.msra.mxu0 %v587
        %773 = vmatprep.subr.mxu0 0.0
        %774 = vmatpush1.msra.mxu0 %v588
        %775 = vmatprep.subr.mxu0 0.0
        %776 = vmatpush1.msra.mxu0 %v589
        %777 = vmatprep.subr.mxu0 0.0
        %778 = vmatpush1.msra.mxu0 %v590
        %779 = vmatprep.subr.mxu0 0.0
        %780 = vmatpush1.msra.mxu0 %v591
        %781 = vmatprep.subr.mxu0 0.0
        %782 = vmatpush1.msra.mxu0 %v592
        %783 = vmatprep.subr.mxu0 0.0
        %784 = vmatpush1.msra.mxu0 %v593
        %785 = vmatprep.subr.mxu0 0.0
        %786 = vmatpush1.msra.mxu0 %v594
        %787 = vmatprep.subr.mxu0 0.0
        %788 = vmatpush1.msra.mxu0 %v595
        %789 = vmatprep.subr.mxu0 0.0
        %790 = vmatpush1.msra.mxu0 %v596
        %791 = vmatprep.subr.mxu0 0.0
        %792 = vmatpush1.msra.mxu0 %v597
        %793 = vmatprep.subr.mxu0 0.0
        %794 = vmatpush1.msra.mxu0 %v598
        %795 = vmatprep.subr.mxu0 0.0
        %796 = vmatpush1.msra.mxu0 0.0
        %797 = vmatprep.subr.mxu0 0.0
        %798 = vmatpush1.msra.mxu0 0.0
        %799 = vmatprep.subr.mxu0 0.0
        %800 = vmatpush1.msra.mxu0 0.0
        %801 = vmatprep.subr.mxu0 0.0
        %802 = vmatpush1.msra.mxu0 0.0
        %803 = vmatprep.subr.mxu0 0.0
        %804 = vmatpush1.msra.mxu0 0.0
        %805 = vmatprep.subr.mxu0 0.0
        %806 = vmatpush1.msra.mxu0 0.0
        %807 = vmatprep.subr.mxu0 0.0
        %808 = vmatpush1.msra.mxu0 0.0
        %809 = vmatprep.subr.mxu0 0.0
        %810 = vmatpush1.msra.mxu0 0.0
        %811 = vmatprep.subr.mxu0 0.0
        %812 = vmatpush1.msra.mxu0 0.0
        %813 = vmatprep.subr.mxu0 0.0
        %814 = vmatpush1.msra.mxu0 0.0
        %815 = vmatprep.subr.mxu0 0.0
        %816 = vmatpush1.msra.mxu0 0.0
        %817 = vmatprep.subr.mxu0 0.0
        %818 = vmatpush1.msra.mxu0 0.0
        %819 = vmatprep.subr.mxu0 0.0
        %820 = vmatpush1.msra.mxu0 0.0
        %821 = vmatprep.subr.mxu0 0.0
        %822 = vmatpush1.msra.mxu0 0.0
        %823 = vmatprep.subr.mxu0 0.0
        %824 = vmatpush1.msra.mxu0 0.0
        %825 = vmatprep.subr.mxu0 0.0
        %826 = vmatpush1.msra.mxu0 0.0
        %827 = vmatprep.mubr.f32.mxu0 0.0
        %828 = vmatmul.mubr.f32.gmra.mrb[0].mxu0 %v567
        %v829 = vpop.f32.mrb[0].mxu0
        %v830 = vadd.f32 %v685, %v829
        %v831 = vpop.f32.mrb[0].mxu0
        %832 = vmatprep.mubr.f32.mxu0 0.0
        %833 = vmatmul.mubr.f32.gmra.mrb[0].mxu0 %v568
        %v834 = vpop.f32.mrb[0].mxu0
        %v835 = vadd.f32 %v690, %v834
        %v836 = vpop.f32.mrb[0].mxu0
        %837 = vmatprep.mubr.f32.mxu0 0.0
        %838 = vmatmul.mubr.f32.gmra.mrb[0].mxu0 %v569
        %v839 = vpop.f32.mrb[0].mxu0
        %v840 = vadd.f32 %v695, %v839
        %v841 = vpop.f32.mrb[0].mxu0
        %842 = vmatprep.mubr.f32.mxu0 0.0
        %843 = vmatmul.mubr.f32.gmra.mrb[0].mxu0 %v570
        %v844 = vpop.f32.mrb[0].mxu0
        %v845 = vadd.f32 %v700, %v844
        %v846 = vpop.f32.mrb[0].mxu0
        %847 = vmatprep.mubr.f32.mxu0 0.0
        %848 = vmatmul.mubr.f32.gmra.mrb[0].mxu0 %v571
        %v849 = vpop.f32.mrb[0].mxu0
        %v850 = vadd.f32 %v705, %v849
        %v851 = vpop.f32.mrb[0].mxu0
        %852 = vmatprep.mubr.f32.mxu0 0.0
        %853 = vmatmul.mubr.f32.gmra.mrb[0].mxu0 %v572
        %v854 = vpop.f32.mrb[0].mxu0
        %v855 = vadd.f32 %v710, %v854
        %v856 = vpop.f32.mrb[0].mxu0
        %857 = vmatprep.mubr.f32.mxu0 0.0
        %858 = vmatmul.mubr.f32.gmra.mrb[0].mxu0 %v573
        %v859 = vpop.f32.mrb[0].mxu0
        %v860 = vadd.f32 %v715, %v859
        %v861 = vpop.f32.mrb[0].mxu0
        %862 = vmatprep.mubr.f32.mxu0 0.0
        %863 = vmatmul.mubr.f32.gmra.mrb[0].mxu0 %v574
        %v864 = vpop.f32.mrb[0].mxu0
        %v865 = vadd.f32 %v720, %v864
        %v866 = vpop.f32.mrb[0].mxu0
        %867 = vmatprep.mubr.f32.mxu0 0.0
        %868 = vmatmul.mubr.f32.gmra.mrb[0].mxu0 %v575
        %v869 = vpop.f32.mrb[0].mxu0
        %v870 = vadd.f32 %v725, %v869
        %v871 = vpop.f32.mrb[0].mxu0
        %872 = vmatprep.mubr.f32.mxu0 0.0
        %873 = vmatmul.mubr.f32.gmra.mrb[0].mxu0 %v576
        %v874 = vpop.f32.mrb[0].mxu0
        %v875 = vadd.f32 %v730, %v874
        %v876 = vpop.f32.mrb[0].mxu0
        %877 = vmatprep.mubr.f32.mxu0 0.0
        %878 = vmatmul.mubr.f32.gmra.mrb[0].mxu0 %v577
        %v879 = vpop.f32.mrb[0].mxu0
        %v880 = vadd.f32 %v735, %v879
        %v881 = vpop.f32.mrb[0].mxu0
        %882 = vmatprep.mubr.f32.mxu0 0.0
        %883 = vmatmul.mubr.f32.gmra.mrb[0].mxu0 %v578
        %v884 = vpop.f32.mrb[0].mxu0
        %v885 = vadd.f32 %v740, %v884
        %v886 = vpop.f32.mrb[0].mxu0
        %887 = vmatprep.mubr.f32.mxu0 0.0
        %888 = vmatmul.mubr.f32.gmra.mrb[0].mxu0 %v579
        %v889 = vpop.f32.mrb[0].mxu0
        %v890 = vadd.f32 %v745, %v889
        %v891 = vpop.f32.mrb[0].mxu0
        %892 = vmatprep.mubr.f32.mxu0 0.0
        %893 = vmatmul.mubr.f32.gmra.mrb[0].mxu0 %v580
        %v894 = vpop.f32.mrb[0].mxu0
        %v895 = vadd.f32 %v750, %v894
        %v896 = vpop.f32.mrb[0].mxu0
        %897 = vmatprep.mubr.f32.mxu0 0.0
        %898 = vmatmul.mubr.f32.gmra.mrb[0].mxu0 %v581
        %v899 = vpop.f32.mrb[0].mxu0
        %v900 = vadd.f32 %v755, %v899
        %v901 = vpop.f32.mrb[0].mxu0
        %902 = vmatprep.mubr.f32.mxu0 0.0
        %903 = vmatmul.mubr.f32.gmra.mrb[0].mxu0 %v582
        %v904 = vpop.f32.mrb[0].mxu0
        %v905 = vadd.f32 %v760, %v904
        %v906 = vpop.f32.mrb[0].mxu0
        %907 = vdwg.mxu0
        %v908 = vld [vmem:[%s279 + $0x20] sm:$0xff]
        %v909 = vld [vmem:[%s279 + $0x28] sm:$0xff]
        %v910 = vld [vmem:[%s279 + $0x30] sm:$0xff]
        %v911 = vld [vmem:[%s279 + $0x38] sm:$0xff]
        %v912 = vld [vmem:[%s279 + $0x40] sm:$0xff]
        %v913 = vld [vmem:[%s279 + $0x48] sm:$0xff]
        %v914 = vld [vmem:[%s279 + $0x50] sm:$0xff]
        %v915 = vld [vmem:[%s279 + $0x58] sm:$0xff]
        %v916 = vld [vmem:[%s279 + $0x60] sm:$0xff]
        %v917 = vld [vmem:[%s279 + $0x68] sm:$0xff]
        %v918 = vld [vmem:[%s279 + $0x70] sm:$0xff]
        %v919 = vld [vmem:[%s279 + $0x78] sm:$0xff]
        %v920 = vld [vmem:[%s279 + $0x80] sm:$0xff]
        %v921 = vld [vmem:[%s279 + $0x88] sm:$0xff]
        %v922 = vld [vmem:[%s279 + $0x90] sm:$0xff]
        %v923 = vld [vmem:[%s279 + $0x98] sm:$0xff]
        %s924 = scalar_lea.vmem [#allocation4], 768
        %v925 = vld [vmem:[%s924] sm:$0xff]
        %v926 = vld [vmem:[%s924 + $0x8] sm:$0xff]
        %v927 = vld [vmem:[%s924 + $0x10] sm:$0xff]
        %v928 = vld [vmem:[%s924 + $0x18] sm:$0xff]
        %v929 = vld [vmem:[%s924 + $0x20] sm:$0xff]
        %v930 = vld [vmem:[%s924 + $0x28] sm:$0xff]
        %v931 = vld [vmem:[%s924 + $0x30] sm:$0xff]
        %v932 = vld [vmem:[%s924 + $0x38] sm:$0xff]
        %v933 = vld [vmem:[%s924 + $0x40] sm:$0xff]
        %v934 = vld [vmem:[%s924 + $0x48] sm:$0xff]
        %v935 = vld [vmem:[%s924 + $0x50] sm:$0xff]
        %v936 = vld [vmem:[%s924 + $0x58] sm:$0xff]
        %v937 = vld [vmem:[%s924 + $0x60] sm:$0xff]
        %v938 = vld [vmem:[%s924 + $0x68] sm:$0xff]
        %v939 = vld [vmem:[%s924 + $0x70] sm:$0xff]
        %v940 = vld [vmem:[%s924 + $0x78] sm:$0xff]
        %941 = vmatprep.subr.mxu0 0.0
        %942 = vmatpush1.msra.mxu0 %v925
        %943 = vmatprep.subr.mxu0 0.0
        %944 = vmatpush1.msra.mxu0 %v926
        %945 = vmatprep.subr.mxu0 0.0
        %946 = vmatpush1.msra.mxu0 %v927
        %947 = vmatprep.subr.mxu0 0.0
        %948 = vmatpush1.msra.mxu0 %v928
        %949 = vmatprep.subr.mxu0 0.0
        %950 = vmatpush1.msra.mxu0 %v929
        %951 = vmatprep.subr.mxu0 0.0
        %952 = vmatpush1.msra.mxu0 %v930
        %953 = vmatprep.subr.mxu0 0.0
        %954 = vmatpush1.msra.mxu0 %v931
        %955 = vmatprep.subr.mxu0 0.0
        %956 = vmatpush1.msra.mxu0 %v932
        %957 = vmatprep.subr.mxu0 0.0
        %958 = vmatpush1.msra.mxu0 %v933
        %959 = vmatprep.subr.mxu0 0.0
        %960 = vmatpush1.msra.mxu0 %v934
        %961 = vmatprep.subr.mxu0 0.0
        %962 = vmatpush1.msra.mxu0 %v935
        %963 = vmatprep.subr.mxu0 0.0
        %964 = vmatpush1.msra.mxu0 %v936
        %965 = vmatprep.subr.mxu0 0.0
        %966 = vmatpush1.msra.mxu0 %v937
        %967 = vmatprep.subr.mxu0 0.0
        %968 = vmatpush1.msra.mxu0 %v938
        %969 = vmatprep.subr.mxu0 0.0
        %970 = vmatpush1.msra.mxu0 %v939
        %971 = vmatprep.subr.mxu0 0.0
        %972 = vmatpush1.msra.mxu0 %v940
        %973 = vmatprep.subr.mxu0 0.0
        %974 = vmatpush1.msra.mxu0 0.0
        %975 = vmatprep.subr.mxu0 0.0
        %976 = vmatpush1.msra.mxu0 0.0
        %977 = vmatprep.subr.mxu0 0.0
        %978 = vmatpush1.msra.mxu0 0.0
        %979 = vmatprep.subr.mxu0 0.0
        %980 = vmatpush1.msra.mxu0 0.0
        %981 = vmatprep.subr.mxu0 0.0
        %982 = vmatpush1.msra.mxu0 0.0
        %983 = vmatprep.subr.mxu0 0.0
        %984 = vmatpush1.msra.mxu0 0.0
        %985 = vmatprep.subr.mxu0 0.0
        %986 = vmatpush1.msra.mxu0 0.0
        %987 = vmatprep.subr.mxu0 0.0
        %988 = vmatpush1.msra.mxu0 0.0
        %989 = vmatprep.subr.mxu0 0.0
        %990 = vmatpush1.msra.mxu0 0.0
        %991 = vmatprep.subr.mxu0 0.0
        %992 = vmatpush1.msra.mxu0 0.0
        %993 = vmatprep.subr.mxu0 0.0
        %994 = vmatpush1.msra.mxu0 0.0
        %995 = vmatprep.subr.mxu0 0.0
        %996 = vmatpush1.msra.mxu0 0.0
        %997 = vmatprep.subr.mxu0 0.0
        %998 = vmatpush1.msra.mxu0 0.0
        %999 = vmatprep.subr.mxu0 0.0
        %1000 = vmatpush1.msra.mxu0 0.0
        %1001 = vmatprep.subr.mxu0 0.0
        %1002 = vmatpush1.msra.mxu0 0.0
        %1003 = vmatprep.subr.mxu0 0.0
        %1004 = vmatpush1.msra.mxu0 0.0
        %1005 = vmatprep.mubr.f32.mxu0 0.0
        %1006 = vmatmul.mubr.f32.gmra.mrb[0].mxu0 %v908
        %v1007 = vpop.f32.mrb[0].mxu0
        %v1008 = vadd.f32 0.0, %v1007
        %v1009 = vpop.f32.mrb[0].mxu0
        %1010 = vmatprep.mubr.f32.mxu0 0.0
        %1011 = vmatmul.mubr.f32.gmra.mrb[0].mxu0 %v909
        %v1012 = vpop.f32.mrb[0].mxu0
        %v1013 = vadd.f32 0.0, %v1012
        %v1014 = vpop.f32.mrb[0].mxu0
        %1015 = vmatprep.mubr.f32.mxu0 0.0
        %1016 = vmatmul.mubr.f32.gmra.mrb[0].mxu0 %v910
        %v1017 = vpop.f32.mrb[0].mxu0
        %v1018 = vadd.f32 0.0, %v1017
        %v1019 = vpop.f32.mrb[0].mxu0
        %1020 = vmatprep.mubr.f32.mxu0 0.0
        %1021 = vmatmul.mubr.f32.gmra.mrb[0].mxu0 %v911
        %v1022 = vpop.f32.mrb[0].mxu0
        %v1023 = vadd.f32 0.0, %v1022
        %v1024 = vpop.f32.mrb[0].mxu0
        %1025 = vmatprep.mubr.f32.mxu0 0.0
        %1026 = vmatmul.mubr.f32.gmra.mrb[0].mxu0 %v912
        %v1027 = vpop.f32.mrb[0].mxu0
        %v1028 = vadd.f32 0.0, %v1027
        %v1029 = vpop.f32.mrb[0].mxu0
        %1030 = vmatprep.mubr.f32.mxu0 0.0
        %1031 = vmatmul.mubr.f32.gmra.mrb[0].mxu0 %v913
        %v1032 = vpop.f32.mrb[0].mxu0
        %v1033 = vadd.f32 0.0, %v1032
        %v1034 = vpop.f32.mrb[0].mxu0
        %1035 = vmatprep.mubr.f32.mxu0 0.0
        %1036 = vmatmul.mubr.f32.gmra.mrb[0].mxu0 %v914
        %v1037 = vpop.f32.mrb[0].mxu0
        %v1038 = vadd.f32 0.0, %v1037
        %v1039 = vpop.f32.mrb[0].mxu0
        %1040 = vmatprep.mubr.f32.mxu0 0.0
        %1041 = vmatmul.mubr.f32.gmra.mrb[0].mxu0 %v915
        %v1042 = vpop.f32.mrb[0].mxu0
        %v1043 = vadd.f32 0.0, %v1042
        %v1044 = vpop.f32.mrb[0].mxu0
        %1045 = vmatprep.mubr.f32.mxu0 0.0
        %1046 = vmatmul.mubr.f32.gmra.mrb[0].mxu0 %v916
        %v1047 = vpop.f32.mrb[0].mxu0
        %v1048 = vadd.f32 0.0, %v1047
        %v1049 = vpop.f32.mrb[0].mxu0
        %1050 = vmatprep.mubr.f32.mxu0 0.0
        %1051 = vmatmul.mubr.f32.gmra.mrb[0].mxu0 %v917
        %v1052 = vpop.f32.mrb[0].mxu0
        %v1053 = vadd.f32 0.0, %v1052
        %v1054 = vpop.f32.mrb[0].mxu0
        %1055 = vmatprep.mubr.f32.mxu0 0.0
        %1056 = vmatmul.mubr.f32.gmra.mrb[0].mxu0 %v918
        %v1057 = vpop.f32.mrb[0].mxu0
        %v1058 = vadd.f32 0.0, %v1057
        %v1059 = vpop.f32.mrb[0].mxu0
        %1060 = vmatprep.mubr.f32.mxu0 0.0
        %1061 = vmatmul.mubr.f32.gmra.mrb[0].mxu0 %v919
        %v1062 = vpop.f32.mrb[0].mxu0
        %v1063 = vadd.f32 0.0, %v1062
        %v1064 = vpop.f32.mrb[0].mxu0
        %1065 = vmatprep.mubr.f32.mxu0 0.0
        %1066 = vmatmul.mubr.f32.gmra.mrb[0].mxu0 %v920
        %v1067 = vpop.f32.mrb[0].mxu0
        %v1068 = vadd.f32 0.0, %v1067
        %v1069 = vpop.f32.mrb[0].mxu0
        %1070 = vmatprep.mubr.f32.mxu0 0.0
        %1071 = vmatmul.mubr.f32.gmra.mrb[0].mxu0 %v921
        %v1072 = vpop.f32.mrb[0].mxu0
        %v1073 = vadd.f32 0.0, %v1072
        %v1074 = vpop.f32.mrb[0].mxu0
        %1075 = vmatprep.mubr.f32.mxu0 0.0
        %1076 = vmatmul.mubr.f32.gmra.mrb[0].mxu0 %v922
        %v1077 = vpop.f32.mrb[0].mxu0
        %v1078 = vadd.f32 0.0, %v1077
        %v1079 = vpop.f32.mrb[0].mxu0
        %1080 = vmatprep.mubr.f32.mxu0 0.0
        %1081 = vmatmul.mubr.f32.gmra.mrb[0].mxu0 %v923
        %v1082 = vpop.f32.mrb[0].mxu0
        %v1083 = vadd.f32 0.0, %v1082
        %v1084 = vpop.f32.mrb[0].mxu0
        %1085 = vdwg.mxu0
        %v1086 = vadd.f32 %v830, %v1008
        %v1087 = vadd.f32 %v835, %v1013
        %v1088 = vadd.f32 %v840, %v1018
        %v1089 = vadd.f32 %v845, %v1023
        %v1090 = vadd.f32 %v850, %v1028
        %v1091 = vadd.f32 %v855, %v1033
        %v1092 = vadd.f32 %v860, %v1038
        %v1093 = vadd.f32 %v865, %v1043
        %v1094 = vadd.f32 %v870, %v1048
        %v1095 = vadd.f32 %v875, %v1053
        %v1096 = vadd.f32 %v880, %v1058
        %v1097 = vadd.f32 %v885, %v1063
        %v1098 = vadd.f32 %v890, %v1068
        %v1099 = vadd.f32 %v895, %v1073
        %v1100 = vadd.f32 %v900, %v1078
        %v1101 = vadd.f32 %v905, %v1083
        %v1102 = vld [vmem:[%s279 + $0x1] sm:$0xff]
        %v1103 = vld [vmem:[%s279 + $0x9] sm:$0xff]
        %v1104 = vld [vmem:[%s279 + $0x11] sm:$0xff]
        %v1105 = vld [vmem:[%s279 + $0x19] sm:$0xff]
        %v1106 = vld [vmem:[%s279 + $0x21] sm:$0xff]
        %v1107 = vld [vmem:[%s279 + $0x29] sm:$0xff]
        %v1108 = vld [vmem:[%s279 + $0x31] sm:$0xff]
        %v1109 = vld [vmem:[%s279 + $0x39] sm:$0xff]
        %v1110 = vld [vmem:[%s279 + $0x41] sm:$0xff]
        %v1111 = vld [vmem:[%s279 + $0x49] sm:$0xff]
        %v1112 = vld [vmem:[%s279 + $0x51] sm:$0xff]
        %v1113 = vld [vmem:[%s279 + $0x59] sm:$0xff]
        %v1114 = vld [vmem:[%s279 + $0x61] sm:$0xff]
        %v1115 = vld [vmem:[%s279 + $0x69] sm:$0xff]
        %v1116 = vld [vmem:[%s279 + $0x71] sm:$0xff]
        %v1117 = vld [vmem:[%s279 + $0x79] sm:$0xff]
        %s1118 = scalar_lea.vmem [#allocation4], 128
        %v1119 = vld [vmem:[%s1118] sm:$0xff]
        %v1120 = vld [vmem:[%s1118 + $0x8] sm:$0xff]
        %v1121 = vld [vmem:[%s1118 + $0x10] sm:$0xff]
        %v1122 = vld [vmem:[%s1118 + $0x18] sm:$0xff]
        %v1123 = vld [vmem:[%s1118 + $0x20] sm:$0xff]
        %v1124 = vld [vmem:[%s1118 + $0x28] sm:$0xff]
        %v1125 = vld [vmem:[%s1118 + $0x30] sm:$0xff]
        %v1126 = vld [vmem:[%s1118 + $0x38] sm:$0xff]
        %v1127 = vld [vmem:[%s1118 + $0x40] sm:$0xff]
        %v1128 = vld [vmem:[%s1118 + $0x48] sm:$0xff]
        %v1129 = vld [vmem:[%s1118 + $0x50] sm:$0xff]
        %v1130 = vld [vmem:[%s1118 + $0x58] sm:$0xff]
        %v1131 = vld [vmem:[%s1118 + $0x60] sm:$0xff]
        %v1132 = vld [vmem:[%s1118 + $0x68] sm:$0xff]
        %v1133 = vld [vmem:[%s1118 + $0x70] sm:$0xff]
        %v1134 = vld [vmem:[%s1118 + $0x78] sm:$0xff]
        %v1135 = vld [vmem:[%s279 + $0x81] sm:$0xff]
        %v1136 = vld [vmem:[%s279 + $0x89] sm:$0xff]
        %s1137 = scalar_lea.vmem [#allocation4], 512
        %v1138 = vld [vmem:[%s1137] sm:$0xff]
        %v1139 = vld [vmem:[%s1137 + $0x8] sm:$0xff]
        %v1140 = vld [vmem:[%s1137 + $0x10] sm:$0xff]
        %v1141 = vld [vmem:[%s1137 + $0x18] sm:$0xff]
        %v1142 = vld [vmem:[%s1137 + $0x20] sm:$0xff]
        %v1143 = vld [vmem:[%s1137 + $0x28] sm:$0xff]
        %v1144 = vld [vmem:[%s1137 + $0x30] sm:$0xff]
        %v1145 = vld [vmem:[%s1137 + $0x38] sm:$0xff]
        %v1146 = vld [vmem:[%s1137 + $0x40] sm:$0xff]
        %v1147 = vld [vmem:[%s1137 + $0x48] sm:$0xff]
        %v1148 = vld [vmem:[%s1137 + $0x50] sm:$0xff]
        %v1149 = vld [vmem:[%s1137 + $0x58] sm:$0xff]
        %v1150 = vld [vmem:[%s1137 + $0x60] sm:$0xff]
        %v1151 = vld [vmem:[%s1137 + $0x68] sm:$0xff]
        %v1152 = vld [vmem:[%s1137 + $0x70] sm:$0xff]
        %v1153 = vld [vmem:[%s1137 + $0x78] sm:$0xff]
        %1154 = vmatprep.subr.mxu0 0.0
        %1155 = vmatpush1.msra.mxu0 %v1138
        %1156 = vmatprep.subr.mxu0 0.0
        %1157 = vmatpush1.msra.mxu0 %v1139
        %1158 = vmatprep.subr.mxu0 0.0
        %1159 = vmatpush1.msra.mxu0 %v1140
        %1160 = vmatprep.subr.mxu0 0.0
        %1161 = vmatpush1.msra.mxu0 %v1141
        %1162 = vmatprep.subr.mxu0 0.0
        %1163 = vmatpush1.msra.mxu0 %v1142
        %1164 = vmatprep.subr.mxu0 0.0
        %1165 = vmatpush1.msra.mxu0 %v1143
        %1166 = vmatprep.subr.mxu0 0.0
        %1167 = vmatpush1.msra.mxu0 %v1144
        %1168 = vmatprep.subr.mxu0 0.0
        %1169 = vmatpush1.msra.mxu0 %v1145
        %1170 = vmatprep.subr.mxu0 0.0
        %1171 = vmatpush1.msra.mxu0 %v1146
        %1172 = vmatprep.subr.mxu0 0.0
        %1173 = vmatpush1.msra.mxu0 %v1147
        %1174 = vmatprep.subr.mxu0 0.0
        %1175 = vmatpush1.msra.mxu0 %v1148
        %1176 = vmatprep.subr.mxu0 0.0
        %1177 = vmatpush1.msra.mxu0 %v1149
        %1178 = vmatprep.subr.mxu0 0.0
        %1179 = vmatpush1.msra.mxu0 %v1150
        %1180 = vmatprep.subr.mxu0 0.0
        %1181 = vmatpush1.msra.mxu0 %v1151
        %1182 = vmatprep.subr.mxu0 0.0
        %1183 = vmatpush1.msra.mxu0 %v1152
        %1184 = vmatprep.subr.mxu0 0.0
        %1185 = vmatpush1.msra.mxu0 %v1153
        %1186 = vmatprep.subr.mxu0 0.0
        %1187 = vmatpush1.msra.mxu0 0.0
        %1188 = vmatprep.subr.mxu0 0.0
        %1189 = vmatpush1.msra.mxu0 0.0
        %1190 = vmatprep.subr.mxu0 0.0
        %1191 = vmatpush1.msra.mxu0 0.0
        %1192 = vmatprep.subr.mxu0 0.0
        %1193 = vmatpush1.msra.mxu0 0.0
        %1194 = vmatprep.subr.mxu0 0.0
        %1195 = vmatpush1.msra.mxu0 0.0
        %1196 = vmatprep.subr.mxu0 0.0
        %1197 = vmatpush1.msra.mxu0 0.0
        %1198 = vmatprep.subr.mxu0 0.0
        %1199 = vmatpush1.msra.mxu0 0.0
        %1200 = vmatprep.subr.mxu0 0.0
        %1201 = vmatpush1.msra.mxu0 0.0
        %1202 = vmatprep.subr.mxu0 0.0
        %1203 = vmatpush1.msra.mxu0 0.0
        %1204 = vmatprep.subr.mxu0 0.0
        %1205 = vmatpush1.msra.mxu0 0.0
        %1206 = vmatprep.subr.mxu0 0.0
        %1207 = vmatpush1.msra.mxu0 0.0
        %1208 = vmatprep.subr.mxu0 0.0
        %1209 = vmatpush1.msra.mxu0 0.0
        %1210 = vmatprep.subr.mxu0 0.0
        %1211 = vmatpush1.msra.mxu0 0.0
        %1212 = vmatprep.subr.mxu0 0.0
        %1213 = vmatpush1.msra.mxu0 0.0
        %1214 = vmatprep.subr.mxu0 0.0
        %1215 = vmatpush1.msra.mxu0 0.0
        %1216 = vmatprep.subr.mxu0 0.0
        %1217 = vmatpush1.msra.mxu0 0.0
        %1218 = vmatprep.mubr.f32.mxu0 0.0
        %1219 = vmatmul.mubr.f32.gmra.mrb[0].mxu0 %v1104
        %v1220 = vpop.f32.mrb[0].mxu0
        %v1221 = vadd.f32 0.0, %v1220
        %v1222 = vpop.f32.mrb[0].mxu0
        %1223 = vmatprep.mubr.f32.mxu0 0.0
        %1224 = vmatmul.mubr.f32.gmra.mrb[0].mxu0 %v1105
        %v1225 = vpop.f32.mrb[0].mxu0
        %v1226 = vadd.f32 0.0, %v1225
        %v1227 = vpop.f32.mrb[0].mxu0
        %1228 = vmatprep.mubr.f32.mxu0 0.0
        %1229 = vmatmul.mubr.f32.gmra.mrb[0].mxu0 %v1106
        %v1230 = vpop.f32.mrb[0].mxu0
        %v1231 = vadd.f32 0.0, %v1230
        %v1232 = vpop.f32.mrb[0].mxu0
        %1233 = vmatprep.mubr.f32.mxu0 0.0
        %1234 = vmatmul.mubr.f32.gmra.mrb[0].mxu0 %v1107
        %v1235 = vpop.f32.mrb[0].mxu0
        %v1236 = vadd.f32 0.0, %v1235
        %v1237 = vpop.f32.mrb[0].mxu0
        %1238 = vmatprep.mubr.f32.mxu0 0.0
        %1239 = vmatmul.mubr.f32.gmra.mrb[0].mxu0 %v1108
        %v1240 = vpop.f32.mrb[0].mxu0
        %v1241 = vadd.f32 0.0, %v1240
        %v1242 = vpop.f32.mrb[0].mxu0
        %1243 = vmatprep.mubr.f32.mxu0 0.0
        %1244 = vmatmul.mubr.f32.gmra.mrb[0].mxu0 %v1109
        %v1245 = vpop.f32.mrb[0].mxu0
        %v1246 = vadd.f32 0.0, %v1245
        %v1247 = vpop.f32.mrb[0].mxu0
        %1248 = vmatprep.mubr.f32.mxu0 0.0
        %1249 = vmatmul.mubr.f32.gmra.mrb[0].mxu0 %v1110
        %v1250 = vpop.f32.mrb[0].mxu0
        %v1251 = vadd.f32 0.0, %v1250
        %v1252 = vpop.f32.mrb[0].mxu0
        %1253 = vmatprep.mubr.f32.mxu0 0.0
        %1254 = vmatmul.mubr.f32.gmra.mrb[0].mxu0 %v1111
        %v1255 = vpop.f32.mrb[0].mxu0
        %v1256 = vadd.f32 0.0, %v1255
        %v1257 = vpop.f32.mrb[0].mxu0
        %1258 = vmatprep.mubr.f32.mxu0 0.0
        %1259 = vmatmul.mubr.f32.gmra.mrb[0].mxu0 %v1112
        %v1260 = vpop.f32.mrb[0].mxu0
        %v1261 = vadd.f32 0.0, %v1260
        %v1262 = vpop.f32.mrb[0].mxu0
        %1263 = vmatprep.mubr.f32.mxu0 0.0
        %1264 = vmatmul.mubr.f32.gmra.mrb[0].mxu0 %v1113
        %v1265 = vpop.f32.mrb[0].mxu0
        %v1266 = vadd.f32 0.0, %v1265
        %v1267 = vpop.f32.mrb[0].mxu0
        %1268 = vmatprep.mubr.f32.mxu0 0.0
        %1269 = vmatmul.mubr.f32.gmra.mrb[0].mxu0 %v1114
        %v1270 = vpop.f32.mrb[0].mxu0
        %v1271 = vadd.f32 0.0, %v1270
        %v1272 = vpop.f32.mrb[0].mxu0
        %1273 = vmatprep.mubr.f32.mxu0 0.0
        %1274 = vmatmul.mubr.f32.gmra.mrb[0].mxu0 %v1115
        %v1275 = vpop.f32.mrb[0].mxu0
        %v1276 = vadd.f32 0.0, %v1275
        %v1277 = vpop.f32.mrb[0].mxu0
        %1278 = vmatprep.mubr.f32.mxu0 0.0
        %1279 = vmatmul.mubr.f32.gmra.mrb[0].mxu0 %v1116
        %v1280 = vpop.f32.mrb[0].mxu0
        %v1281 = vadd.f32 0.0, %v1280
        %v1282 = vpop.f32.mrb[0].mxu0
        %1283 = vmatprep.mubr.f32.mxu0 0.0
        %1284 = vmatmul.mubr.f32.gmra.mrb[0].mxu0 %v1117
        %v1285 = vpop.f32.mrb[0].mxu0
        %v1286 = vadd.f32 0.0, %v1285
        %v1287 = vpop.f32.mrb[0].mxu0
        %1288 = vmatprep.mubr.f32.mxu0 0.0
        %1289 = vmatmul.mubr.f32.gmra.mrb[0].mxu0 %v1135
        %v1290 = vpop.f32.mrb[0].mxu0
        %v1291 = vadd.f32 0.0, %v1290
        %v1292 = vpop.f32.mrb[0].mxu0
        %1293 = vmatprep.mubr.f32.mxu0 0.0
        %1294 = vmatmul.mubr.f32.gmra.mrb[0].mxu0 %v1136
        %v1295 = vpop.f32.mrb[0].mxu0
        %v1296 = vadd.f32 0.0, %v1295
        %v1297 = vpop.f32.mrb[0].mxu0
        %1298 = vdwg.mxu0
        %1299 = vmatprep.subr.mxu0 0.0
        %1300 = vmatpush1.msra.mxu0 %v1119
        %1301 = vmatprep.subr.mxu0 0.0
        %1302 = vmatpush1.msra.mxu0 %v1120
        %1303 = vmatprep.subr.mxu0 0.0
        %1304 = vmatpush1.msra.mxu0 %v1121
        %1305 = vmatprep.subr.mxu0 0.0
        %1306 = vmatpush1.msra.mxu0 %v1122
        %1307 = vmatprep.subr.mxu0 0.0
        %1308 = vmatpush1.msra.mxu0 %v1123
        %1309 = vmatprep.subr.mxu0 0.0
        %1310 = vmatpush1.msra.mxu0 %v1124
        %1311 = vmatprep.subr.mxu0 0.0
        %1312 = vmatpush1.msra.mxu0 %v1125
        %1313 = vmatprep.subr.mxu0 0.0
        %1314 = vmatpush1.msra.mxu0 %v1126
        %1315 = vmatprep.subr.mxu0 0.0
        %1316 = vmatpush1.msra.mxu0 %v1127
        %1317 = vmatprep.subr.mxu0 0.0
        %1318 = vmatpush1.msra.mxu0 %v1128
        %1319 = vmatprep.subr.mxu0 0.0
        %1320 = vmatpush1.msra.mxu0 %v1129
        %1321 = vmatprep.subr.mxu0 0.0
        %1322 = vmatpush1.msra.mxu0 %v1130
        %1323 = vmatprep.subr.mxu0 0.0
        %1324 = vmatpush1.msra.mxu0 %v1131
        %1325 = vmatprep.subr.mxu0 0.0
        %1326 = vmatpush1.msra.mxu0 %v1132
        %1327 = vmatprep.subr.mxu0 0.0
        %1328 = vmatpush1.msra.mxu0 %v1133
        %1329 = vmatprep.subr.mxu0 0.0
        %1330 = vmatpush1.msra.mxu0 %v1134
        %1331 = vmatprep.subr.mxu0 0.0
        %1332 = vmatpush1.msra.mxu0 0.0
        %1333 = vmatprep.subr.mxu0 0.0
        %1334 = vmatpush1.msra.mxu0 0.0
        %1335 = vmatprep.subr.mxu0 0.0
        %1336 = vmatpush1.msra.mxu0 0.0
        %1337 = vmatprep.subr.mxu0 0.0
        %1338 = vmatpush1.msra.mxu0 0.0
        %1339 = vmatprep.subr.mxu0 0.0
        %1340 = vmatpush1.msra.mxu0 0.0
        %1341 = vmatprep.subr.mxu0 0.0
        %1342 = vmatpush1.msra.mxu0 0.0
        %1343 = vmatprep.subr.mxu0 0.0
        %1344 = vmatpush1.msra.mxu0 0.0
        %1345 = vmatprep.subr.mxu0 0.0
        %1346 = vmatpush1.msra.mxu0 0.0
        %1347 = vmatprep.subr.mxu0 0.0
        %1348 = vmatpush1.msra.mxu0 0.0
        %1349 = vmatprep.subr.mxu0 0.0
        %1350 = vmatpush1.msra.mxu0 0.0
        %1351 = vmatprep.subr.mxu0 0.0
        %1352 = vmatpush1.msra.mxu0 0.0
        %1353 = vmatprep.subr.mxu0 0.0
        %1354 = vmatpush1.msra.mxu0 0.0
        %1355 = vmatprep.subr.mxu0 0.0
        %1356 = vmatpush1.msra.mxu0 0.0
        %1357 = vmatprep.subr.mxu0 0.0
        %1358 = vmatpush1.msra.mxu0 0.0
        %1359 = vmatprep.subr.mxu0 0.0
        %1360 = vmatpush1.msra.mxu0 0.0
        %1361 = vmatprep.subr.mxu0 0.0
        %1362 = vmatpush1.msra.mxu0 0.0
        %1363 = vmatprep.mubr.f32.mxu0 0.0
        %1364 = vmatmul.mubr.f32.gmra.mrb[0].mxu0 %v1102
        %v1365 = vpop.f32.mrb[0].mxu0
        %v1366 = vadd.f32 %v1221, %v1365
        %v1367 = vpop.f32.mrb[0].mxu0
        %1368 = vmatprep.mubr.f32.mxu0 0.0
        %1369 = vmatmul.mubr.f32.gmra.mrb[0].mxu0 %v1103
        %v1370 = vpop.f32.mrb[0].mxu0
        %v1371 = vadd.f32 %v1226, %v1370
        %v1372 = vpop.f32.mrb[0].mxu0
        %1373 = vmatprep.mubr.f32.mxu0 0.0
        %1374 = vmatmul.mubr.f32.gmra.mrb[0].mxu0 %v1104
        %v1375 = vpop.f32.mrb[0].mxu0
        %v1376 = vadd.f32 %v1231, %v1375
        %v1377 = vpop.f32.mrb[0].mxu0
        %1378 = vmatprep.mubr.f32.mxu0 0.0
        %1379 = vmatmul.mubr.f32.gmra.mrb[0].mxu0 %v1105
        %v1380 = vpop.f32.mrb[0].mxu0
        %v1381 = vadd.f32 %v1236, %v1380
        %v1382 = vpop.f32.mrb[0].mxu0
        %1383 = vmatprep.mubr.f32.mxu0 0.0
        %1384 = vmatmul.mubr.f32.gmra.mrb[0].mxu0 %v1106
        %v1385 = vpop.f32.mrb[0].mxu0
        %v1386 = vadd.f32 %v1241, %v1385
        %v1387 = vpop.f32.mrb[0].mxu0
        %1388 = vmatprep.mubr.f32.mxu0 0.0
        %1389 = vmatmul.mubr.f32.gmra.mrb[0].mxu0 %v1107
        %v1390 = vpop.f32.mrb[0].mxu0
        %v1391 = vadd.f32 %v1246, %v1390
        %v1392 = vpop.f32.mrb[0].mxu0
        %1393 = vmatprep.mubr.f32.mxu0 0.0
        %1394 = vmatmul.mubr.f32.gmra.mrb[0].mxu0 %v1108
        %v1395 = vpop.f32.mrb[0].mxu0
        %v1396 = vadd.f32 %v1251, %v1395
        %v1397 = vpop.f32.mrb[0].mxu0
        %1398 = vmatprep.mubr.f32.mxu0 0.0
        %1399 = vmatmul.mubr.f32.gmra.mrb[0].mxu0 %v1109
        %v1400 = vpop.f32.mrb[0].mxu0
        %v1401 = vadd.f32 %v1256, %v1400
        %v1402 = vpop.f32.mrb[0].mxu0
        %1403 = vmatprep.mubr.f32.mxu0 0.0
        %1404 = vmatmul.mubr.f32.gmra.mrb[0].mxu0 %v1110
        %v1405 = vpop.f32.mrb[0].mxu0
        %v1406 = vadd.f32 %v1261, %v1405
        %v1407 = vpop.f32.mrb[0].mxu0
        %1408 = vmatprep.mubr.f32.mxu0 0.0
        %1409 = vmatmul.mubr.f32.gmra.mrb[0].mxu0 %v1111
        %v1410 = vpop.f32.mrb[0].mxu0
        %v1411 = vadd.f32 %v1266, %v1410
        %v1412 = vpop.f32.mrb[0].mxu0
        %1413 = vmatprep.mubr.f32.mxu0 0.0
        %1414 = vmatmul.mubr.f32.gmra.mrb[0].mxu0 %v1112
        %v1415 = vpop.f32.mrb[0].mxu0
        %v1416 = vadd.f32 %v1271, %v1415
        %v1417 = vpop.f32.mrb[0].mxu0
        %1418 = vmatprep.mubr.f32.mxu0 0.0
        %1419 = vmatmul.mubr.f32.gmra.mrb[0].mxu0 %v1113
        %v1420 = vpop.f32.mrb[0].mxu0
        %v1421 = vadd.f32 %v1276, %v1420
        %v1422 = vpop.f32.mrb[0].mxu0
        %1423 = vmatprep.mubr.f32.mxu0 0.0
        %1424 = vmatmul.mubr.f32.gmra.mrb[0].mxu0 %v1114
        %v1425 = vpop.f32.mrb[0].mxu0
        %v1426 = vadd.f32 %v1281, %v1425
        %v1427 = vpop.f32.mrb[0].mxu0
        %1428 = vmatprep.mubr.f32.mxu0 0.0
        %1429 = vmatmul.mubr.f32.gmra.mrb[0].mxu0 %v1115
        %v1430 = vpop.f32.mrb[0].mxu0
        %v1431 = vadd.f32 %v1286, %v1430
        %v1432 = vpop.f32.mrb[0].mxu0
        %1433 = vmatprep.mubr.f32.mxu0 0.0
        %1434 = vmatmul.mubr.f32.gmra.mrb[0].mxu0 %v1116
        %v1435 = vpop.f32.mrb[0].mxu0
        %v1436 = vadd.f32 %v1291, %v1435
        %v1437 = vpop.f32.mrb[0].mxu0
        %1438 = vmatprep.mubr.f32.mxu0 0.0
        %1439 = vmatmul.mubr.f32.gmra.mrb[0].mxu0 %v1117
        %v1440 = vpop.f32.mrb[0].mxu0
        %v1441 = vadd.f32 %v1296, %v1440
        %v1442 = vpop.f32.mrb[0].mxu0
        %1443 = vdwg.mxu0
        %v1444 = vld [vmem:[%s279 + $0x21] sm:$0xff]
        %v1445 = vld [vmem:[%s279 + $0x29] sm:$0xff]
        %v1446 = vld [vmem:[%s279 + $0x31] sm:$0xff]
        %v1447 = vld [vmem:[%s279 + $0x39] sm:$0xff]
        %v1448 = vld [vmem:[%s279 + $0x41] sm:$0xff]
        %v1449 = vld [vmem:[%s279 + $0x49] sm:$0xff]
        %v1450 = vld [vmem:[%s279 + $0x51] sm:$0xff]
        %v1451 = vld [vmem:[%s279 + $0x59] sm:$0xff]
        %v1452 = vld [vmem:[%s279 + $0x61] sm:$0xff]
        %v1453 = vld [vmem:[%s279 + $0x69] sm:$0xff]
        %v1454 = vld [vmem:[%s279 + $0x71] sm:$0xff]
        %v1455 = vld [vmem:[%s279 + $0x79] sm:$0xff]
        %v1456 = vld [vmem:[%s279 + $0x81] sm:$0xff]
        %v1457 = vld [vmem:[%s279 + $0x89] sm:$0xff]
        %v1458 = vld [vmem:[%s279 + $0x91] sm:$0xff]
        %v1459 = vld [vmem:[%s279 + $0x99] sm:$0xff]
        %s1460 = scalar_lea.vmem [#allocation4], 896
        %v1461 = vld [vmem:[%s1460] sm:$0xff]
        %v1462 = vld [vmem:[%s1460 + $0x8] sm:$0xff]
        %v1463 = vld [vmem:[%s1460 + $0x10] sm:$0xff]
        %v1464 = vld [vmem:[%s1460 + $0x18] sm:$0xff]
        %v1465 = vld [vmem:[%s1460 + $0x20] sm:$0xff]
        %v1466 = vld [vmem:[%s1460 + $0x28] sm:$0xff]
        %v1467 = vld [vmem:[%s1460 + $0x30] sm:$0xff]
        %v1468 = vld [vmem:[%s1460 + $0x38] sm:$0xff]
        %v1469 = vld [vmem:[%s1460 + $0x40] sm:$0xff]
        %v1470 = vld [vmem:[%s1460 + $0x48] sm:$0xff]
        %v1471 = vld [vmem:[%s1460 + $0x50] sm:$0xff]
        %v1472 = vld [vmem:[%s1460 + $0x58] sm:$0xff]
        %v1473 = vld [vmem:[%s1460 + $0x60] sm:$0xff]
        %v1474 = vld [vmem:[%s1460 + $0x68] sm:$0xff]
        %v1475 = vld [vmem:[%s1460 + $0x70] sm:$0xff]
        %v1476 = vld [vmem:[%s1460 + $0x78] sm:$0xff]
        %1477 = vmatprep.subr.mxu0 0.0
        %1478 = vmatpush1.msra.mxu0 %v1461
        %1479 = vmatprep.subr.mxu0 0.0
        %1480 = vmatpush1.msra.mxu0 %v1462
        %1481 = vmatprep.subr.mxu0 0.0
        %1482 = vmatpush1.msra.mxu0 %v1463
        %1483 = vmatprep.subr.mxu0 0.0
        %1484 = vmatpush1.msra.mxu0 %v1464
        %1485 = vmatprep.subr.mxu0 0.0
        %1486 = vmatpush1.msra.mxu0 %v1465
        %1487 = vmatprep.subr.mxu0 0.0
        %1488 = vmatpush1.msra.mxu0 %v1466
        %1489 = vmatprep.subr.mxu0 0.0
        %1490 = vmatpush1.msra.mxu0 %v1467
        %1491 = vmatprep.subr.mxu0 0.0
        %1492 = vmatpush1.msra.mxu0 %v1468
        %1493 = vmatprep.subr.mxu0 0.0
        %1494 = vmatpush1.msra.mxu0 %v1469
        %1495 = vmatprep.subr.mxu0 0.0
        %1496 = vmatpush1.msra.mxu0 %v1470
        %1497 = vmatprep.subr.mxu0 0.0
        %1498 = vmatpush1.msra.mxu0 %v1471
        %1499 = vmatprep.subr.mxu0 0.0
        %1500 = vmatpush1.msra.mxu0 %v1472
        %1501 = vmatprep.subr.mxu0 0.0
        %1502 = vmatpush1.msra.mxu0 %v1473
        %1503 = vmatprep.subr.mxu0 0.0
        %1504 = vmatpush1.msra.mxu0 %v1474
        %1505 = vmatprep.subr.mxu0 0.0
        %1506 = vmatpush1.msra.mxu0 %v1475
        %1507 = vmatprep.subr.mxu0 0.0
        %1508 = vmatpush1.msra.mxu0 %v1476
        %1509 = vmatprep.subr.mxu0 0.0
        %1510 = vmatpush1.msra.mxu0 0.0
        %1511 = vmatprep.subr.mxu0 0.0
        %1512 = vmatpush1.msra.mxu0 0.0
        %1513 = vmatprep.subr.mxu0 0.0
        %1514 = vmatpush1.msra.mxu0 0.0
        %1515 = vmatprep.subr.mxu0 0.0
        %1516 = vmatpush1.msra.mxu0 0.0
        %1517 = vmatprep.subr.mxu0 0.0
        %1518 = vmatpush1.msra.mxu0 0.0
        %1519 = vmatprep.subr.mxu0 0.0
        %1520 = vmatpush1.msra.mxu0 0.0
        %1521 = vmatprep.subr.mxu0 0.0
        %1522 = vmatpush1.msra.mxu0 0.0
        %1523 = vmatprep.subr.mxu0 0.0
        %1524 = vmatpush1.msra.mxu0 0.0
        %1525 = vmatprep.subr.mxu0 0.0
        %1526 = vmatpush1.msra.mxu0 0.0
        %1527 = vmatprep.subr.mxu0 0.0
        %1528 = vmatpush1.msra.mxu0 0.0
        %1529 = vmatprep.subr.mxu0 0.0
        %1530 = vmatpush1.msra.mxu0 0.0
        %1531 = vmatprep.subr.mxu0 0.0
        %1532 = vmatpush1.msra.mxu0 0.0
        %1533 = vmatprep.subr.mxu0 0.0
        %1534 = vmatpush1.msra.mxu0 0.0
        %1535 = vmatprep.subr.mxu0 0.0
        %1536 = vmatpush1.msra.mxu0 0.0
        %1537 = vmatprep.subr.mxu0 0.0
        %1538 = vmatpush1.msra.mxu0 0.0
        %1539 = vmatprep.subr.mxu0 0.0
        %1540 = vmatpush1.msra.mxu0 0.0
        %1541 = vmatprep.mubr.f32.mxu0 0.0
        %1542 = vmatmul.mubr.f32.gmra.mrb[0].mxu0 %v1444
        %v1543 = vpop.f32.mrb[0].mxu0
        %v1544 = vadd.f32 0.0, %v1543
        %v1545 = vpop.f32.mrb[0].mxu0
        %1546 = vmatprep.mubr.f32.mxu0 0.0
        %1547 = vmatmul.mubr.f32.gmra.mrb[0].mxu0 %v1445
        %v1548 = vpop.f32.mrb[0].mxu0
        %v1549 = vadd.f32 0.0, %v1548
        %v1550 = vpop.f32.mrb[0].mxu0
        %1551 = vmatprep.mubr.f32.mxu0 0.0
        %1552 = vmatmul.mubr.f32.gmra.mrb[0].mxu0 %v1446
        %v1553 = vpop.f32.mrb[0].mxu0
        %v1554 = vadd.f32 0.0, %v1553
        %v1555 = vpop.f32.mrb[0].mxu0
        %1556 = vmatprep.mubr.f32.mxu0 0.0
        %1557 = vmatmul.mubr.f32.gmra.mrb[0].mxu0 %v1447
        %v1558 = vpop.f32.mrb[0].mxu0
        %v1559 = vadd.f32 0.0, %v1558
        %v1560 = vpop.f32.mrb[0].mxu0
        %1561 = vmatprep.mubr.f32.mxu0 0.0
        %1562 = vmatmul.mubr.f32.gmra.mrb[0].mxu0 %v1448
        %v1563 = vpop.f32.mrb[0].mxu0
        %v1564 = vadd.f32 0.0, %v1563
        %v1565 = vpop.f32.mrb[0].mxu0
        %1566 = vmatprep.mubr.f32.mxu0 0.0
        %1567 = vmatmul.mubr.f32.gmra.mrb[0].mxu0 %v1449
        %v1568 = vpop.f32.mrb[0].mxu0
        %v1569 = vadd.f32 0.0, %v1568
        %v1570 = vpop.f32.mrb[0].mxu0
        %1571 = vmatprep.mubr.f32.mxu0 0.0
        %1572 = vmatmul.mubr.f32.gmra.mrb[0].mxu0 %v1450
        %v1573 = vpop.f32.mrb[0].mxu0
        %v1574 = vadd.f32 0.0, %v1573
        %v1575 = vpop.f32.mrb[0].mxu0
        %1576 = vmatprep.mubr.f32.mxu0 0.0
        %1577 = vmatmul.mubr.f32.gmra.mrb[0].mxu0 %v1451
        %v1578 = vpop.f32.mrb[0].mxu0
        %v1579 = vadd.f32 0.0, %v1578
        %v1580 = vpop.f32.mrb[0].mxu0
        %1581 = vmatprep.mubr.f32.mxu0 0.0
        %1582 = vmatmul.mubr.f32.gmra.mrb[0].mxu0 %v1452
        %v1583 = vpop.f32.mrb[0].mxu0
        %v1584 = vadd.f32 0.0, %v1583
        %v1585 = vpop.f32.mrb[0].mxu0
        %1586 = vmatprep.mubr.f32.mxu0 0.0
        %1587 = vmatmul.mubr.f32.gmra.mrb[0].mxu0 %v1453
        %v1588 = vpop.f32.mrb[0].mxu0
        %v1589 = vadd.f32 0.0, %v1588
        %v1590 = vpop.f32.mrb[0].mxu0
        %1591 = vmatprep.mubr.f32.mxu0 0.0
        %1592 = vmatmul.mubr.f32.gmra.mrb[0].mxu0 %v1454
        %v1593 = vpop.f32.mrb[0].mxu0
        %v1594 = vadd.f32 0.0, %v1593
        %v1595 = vpop.f32.mrb[0].mxu0
        %1596 = vmatprep.mubr.f32.mxu0 0.0
        %1597 = vmatmul.mubr.f32.gmra.mrb[0].mxu0 %v1455
        %v1598 = vpop.f32.mrb[0].mxu0
        %v1599 = vadd.f32 0.0, %v1598
        %v1600 = vpop.f32.mrb[0].mxu0
        %1601 = vmatprep.mubr.f32.mxu0 0.0
        %1602 = vmatmul.mubr.f32.gmra.mrb[0].mxu0 %v1456
        %v1603 = vpop.f32.mrb[0].mxu0
        %v1604 = vadd.f32 0.0, %v1603
        %v1605 = vpop.f32.mrb[0].mxu0
        %1606 = vmatprep.mubr.f32.mxu0 0.0
        %1607 = vmatmul.mubr.f32.gmra.mrb[0].mxu0 %v1457
        %v1608 = vpop.f32.mrb[0].mxu0
        %v1609 = vadd.f32 0.0, %v1608
        %v1610 = vpop.f32.mrb[0].mxu0
        %1611 = vmatprep.mubr.f32.mxu0 0.0
        %1612 = vmatmul.mubr.f32.gmra.mrb[0].mxu0 %v1458
        %v1613 = vpop.f32.mrb[0].mxu0
        %v1614 = vadd.f32 0.0, %v1613
        %v1615 = vpop.f32.mrb[0].mxu0
        %1616 = vmatprep.mubr.f32.mxu0 0.0
        %1617 = vmatmul.mubr.f32.gmra.mrb[0].mxu0 %v1459
        %v1618 = vpop.f32.mrb[0].mxu0
        %v1619 = vadd.f32 0.0, %v1618
        %v1620 = vpop.f32.mrb[0].mxu0
        %1621 = vdwg.mxu0
        %v1622 = vadd.f32 %v1366, %v1544
        %v1623 = vadd.f32 %v1371, %v1549
        %v1624 = vadd.f32 %v1376, %v1554
        %v1625 = vadd.f32 %v1381, %v1559
        %v1626 = vadd.f32 %v1386, %v1564
        %v1627 = vadd.f32 %v1391, %v1569
        %v1628 = vadd.f32 %v1396, %v1574
        %v1629 = vadd.f32 %v1401, %v1579
        %v1630 = vadd.f32 %v1406, %v1584
        %v1631 = vadd.f32 %v1411, %v1589
        %v1632 = vadd.f32 %v1416, %v1594
        %v1633 = vadd.f32 %v1421, %v1599
        %v1634 = vadd.f32 %v1426, %v1604
        %v1635 = vadd.f32 %v1431, %v1609
        %v1636 = vadd.f32 %v1436, %v1614
        %v1637 = vadd.f32 %v1441, %v1619
        %v1638 = vld [vmem:[%s279 + $0x2] sm:$0xff]
        %v1639 = vld [vmem:[%s279 + $0xa] sm:$0xff]
        %v1640 = vld [vmem:[%s279 + $0x12] sm:$0xff]
        %v1641 = vld [vmem:[%s279 + $0x1a] sm:$0xff]
        %v1642 = vld [vmem:[%s279 + $0x22] sm:$0xff]
        %v1643 = vld [vmem:[%s279 + $0x2a] sm:$0xff]
        %v1644 = vld [vmem:[%s279 + $0x32] sm:$0xff]
        %v1645 = vld [vmem:[%s279 + $0x3a] sm:$0xff]
        %v1646 = vld [vmem:[%s279 + $0x42] sm:$0xff]
        %v1647 = vld [vmem:[%s279 + $0x4a] sm:$0xff]
        %v1648 = vld [vmem:[%s279 + $0x52] sm:$0xff]
        %v1649 = vld [vmem:[%s279 + $0x5a] sm:$0xff]
        %v1650 = vld [vmem:[%s279 + $0x62] sm:$0xff]
        %v1651 = vld [vmem:[%s279 + $0x6a] sm:$0xff]
        %v1652 = vld [vmem:[%s279 + $0x72] sm:$0xff]
        %v1653 = vld [vmem:[%s279 + $0x7a] sm:$0xff]
        %s1654 = scalar_lea.vmem [#allocation4], 256
        %v1655 = vld [vmem:[%s1654] sm:$0xff]
        %v1656 = vld [vmem:[%s1654 + $0x8] sm:$0xff]
        %v1657 = vld [vmem:[%s1654 + $0x10] sm:$0xff]
        %v1658 = vld [vmem:[%s1654 + $0x18] sm:$0xff]
        %v1659 = vld [vmem:[%s1654 + $0x20] sm:$0xff]
        %v1660 = vld [vmem:[%s1654 + $0x28] sm:$0xff]
        %v1661 = vld [vmem:[%s1654 + $0x30] sm:$0xff]
        %v1662 = vld [vmem:[%s1654 + $0x38] sm:$0xff]
        %v1663 = vld [vmem:[%s1654 + $0x40] sm:$0xff]
        %v1664 = vld [vmem:[%s1654 + $0x48] sm:$0xff]
        %v1665 = vld [vmem:[%s1654 + $0x50] sm:$0xff]
        %v1666 = vld [vmem:[%s1654 + $0x58] sm:$0xff]
        %v1667 = vld [vmem:[%s1654 + $0x60] sm:$0xff]
        %v1668 = vld [vmem:[%s1654 + $0x68] sm:$0xff]
        %v1669 = vld [vmem:[%s1654 + $0x70] sm:$0xff]
        %v1670 = vld [vmem:[%s1654 + $0x78] sm:$0xff]
        %v1671 = vld [vmem:[%s279 + $0x82] sm:$0xff]
        %v1672 = vld [vmem:[%s279 + $0x8a] sm:$0xff]
        %s1673 = scalar_lea.vmem [#allocation4], 640
        %v1674 = vld [vmem:[%s1673] sm:$0xff]
        %v1675 = vld [vmem:[%s1673 + $0x8] sm:$0xff]
        %v1676 = vld [vmem:[%s1673 + $0x10] sm:$0xff]
        %v1677 = vld [vmem:[%s1673 + $0x18] sm:$0xff]
        %v1678 = vld [vmem:[%s1673 + $0x20] sm:$0xff]
        %v1679 = vld [vmem:[%s1673 + $0x28] sm:$0xff]
        %v1680 = vld [vmem:[%s1673 + $0x30] sm:$0xff]
        %v1681 = vld [vmem:[%s1673 + $0x38] sm:$0xff]
        %v1682 = vld [vmem:[%s1673 + $0x40] sm:$0xff]
        %v1683 = vld [vmem:[%s1673 + $0x48] sm:$0xff]
        %v1684 = vld [vmem:[%s1673 + $0x50] sm:$0xff]
        %v1685 = vld [vmem:[%s1673 + $0x58] sm:$0xff]
        %v1686 = vld [vmem:[%s1673 + $0x60] sm:$0xff]
        %v1687 = vld [vmem:[%s1673 + $0x68] sm:$0xff]
        %v1688 = vld [vmem:[%s1673 + $0x70] sm:$0xff]
        %v1689 = vld [vmem:[%s1673 + $0x78] sm:$0xff]
        %1690 = vmatprep.subr.mxu0 0.0
        %1691 = vmatpush1.msra.mxu0 %v1674
        %1692 = vmatprep.subr.mxu0 0.0
        %1693 = vmatpush1.msra.mxu0 %v1675
        %1694 = vmatprep.subr.mxu0 0.0
        %1695 = vmatpush1.msra.mxu0 %v1676
        %1696 = vmatprep.subr.mxu0 0.0
        %1697 = vmatpush1.msra.mxu0 %v1677
        %1698 = vmatprep.subr.mxu0 0.0
        %1699 = vmatpush1.msra.mxu0 %v1678
        %1700 = vmatprep.subr.mxu0 0.0
        %1701 = vmatpush1.msra.mxu0 %v1679
        %1702 = vmatprep.subr.mxu0 0.0
        %1703 = vmatpush1.msra.mxu0 %v1680
        %1704 = vmatprep.subr.mxu0 0.0
        %1705 = vmatpush1.msra.mxu0 %v1681
        %1706 = vmatprep.subr.mxu0 0.0
        %1707 = vmatpush1.msra.mxu0 %v1682
        %1708 = vmatprep.subr.mxu0 0.0
        %1709 = vmatpush1.msra.mxu0 %v1683
        %1710 = vmatprep.subr.mxu0 0.0
        %1711 = vmatpush1.msra.mxu0 %v1684
        %1712 = vmatprep.subr.mxu0 0.0
        %1713 = vmatpush1.msra.mxu0 %v1685
        %1714 = vmatprep.subr.mxu0 0.0
        %1715 = vmatpush1.msra.mxu0 %v1686
        %1716 = vmatprep.subr.mxu0 0.0
        %1717 = vmatpush1.msra.mxu0 %v1687
        %1718 = vmatprep.subr.mxu0 0.0
        %1719 = vmatpush1.msra.mxu0 %v1688
        %1720 = vmatprep.subr.mxu0 0.0
        %1721 = vmatpush1.msra.mxu0 %v1689
        %1722 = vmatprep.subr.mxu0 0.0
        %1723 = vmatpush1.msra.mxu0 0.0
        %1724 = vmatprep.subr.mxu0 0.0
        %1725 = vmatpush1.msra.mxu0 0.0
        %1726 = vmatprep.subr.mxu0 0.0
        %1727 = vmatpush1.msra.mxu0 0.0
        %1728 = vmatprep.subr.mxu0 0.0
        %1729 = vmatpush1.msra.mxu0 0.0
        %1730 = vmatprep.subr.mxu0 0.0
        %1731 = vmatpush1.msra.mxu0 0.0
        %1732 = vmatprep.subr.mxu0 0.0
        %1733 = vmatpush1.msra.mxu0 0.0
        %1734 = vmatprep.subr.mxu0 0.0
        %1735 = vmatpush1.msra.mxu0 0.0
        %1736 = vmatprep.subr.mxu0 0.0
        %1737 = vmatpush1.msra.mxu0 0.0
        %1738 = vmatprep.subr.mxu0 0.0
        %1739 = vmatpush1.msra.mxu0 0.0
        %1740 = vmatprep.subr.mxu0 0.0
        %1741 = vmatpush1.msra.mxu0 0.0
        %1742 = vmatprep.subr.mxu0 0.0
        %1743 = vmatpush1.msra.mxu0 0.0
        %1744 = vmatprep.subr.mxu0 0.0
        %1745 = vmatpush1.msra.mxu0 0.0
        %1746 = vmatprep.subr.mxu0 0.0
        %1747 = vmatpush1.msra.mxu0 0.0
        %1748 = vmatprep.subr.mxu0 0.0
        %1749 = vmatpush1.msra.mxu0 0.0
        %1750 = vmatprep.subr.mxu0 0.0
        %1751 = vmatpush1.msra.mxu0 0.0
        %1752 = vmatprep.subr.mxu0 0.0
        %1753 = vmatpush1.msra.mxu0 0.0
        %1754 = vmatprep.mubr.f32.mxu0 0.0
        %1755 = vmatmul.mubr.f32.gmra.mrb[0].mxu0 %v1640
        %v1756 = vpop.f32.mrb[0].mxu0
        %v1757 = vadd.f32 0.0, %v1756
        %v1758 = vpop.f32.mrb[0].mxu0
        %1759 = vmatprep.mubr.f32.mxu0 0.0
        %1760 = vmatmul.mubr.f32.gmra.mrb[0].mxu0 %v1641
        %v1761 = vpop.f32.mrb[0].mxu0
        %v1762 = vadd.f32 0.0, %v1761
        %v1763 = vpop.f32.mrb[0].mxu0
        %1764 = vmatprep.mubr.f32.mxu0 0.0
        %1765 = vmatmul.mubr.f32.gmra.mrb[0].mxu0 %v1642
        %v1766 = vpop.f32.mrb[0].mxu0
        %v1767 = vadd.f32 0.0, %v1766
        %v1768 = vpop.f32.mrb[0].mxu0
        %1769 = vmatprep.mubr.f32.mxu0 0.0
        %1770 = vmatmul.mubr.f32.gmra.mrb[0].mxu0 %v1643
        %v1771 = vpop.f32.mrb[0].mxu0
        %v1772 = vadd.f32 0.0, %v1771
        %v1773 = vpop.f32.mrb[0].mxu0
        %1774 = vmatprep.mubr.f32.mxu0 0.0
        %1775 = vmatmul.mubr.f32.gmra.mrb[0].mxu0 %v1644
        %v1776 = vpop.f32.mrb[0].mxu0
        %v1777 = vadd.f32 0.0, %v1776
        %v1778 = vpop.f32.mrb[0].mxu0
        %1779 = vmatprep.mubr.f32.mxu0 0.0
        %1780 = vmatmul.mubr.f32.gmra.mrb[0].mxu0 %v1645
        %v1781 = vpop.f32.mrb[0].mxu0
        %v1782 = vadd.f32 0.0, %v1781
        %v1783 = vpop.f32.mrb[0].mxu0
        %1784 = vmatprep.mubr.f32.mxu0 0.0
        %1785 = vmatmul.mubr.f32.gmra.mrb[0].mxu0 %v1646
        %v1786 = vpop.f32.mrb[0].mxu0
        %v1787 = vadd.f32 0.0, %v1786
        %v1788 = vpop.f32.mrb[0].mxu0
        %1789 = vmatprep.mubr.f32.mxu0 0.0
        %1790 = vmatmul.mubr.f32.gmra.mrb[0].mxu0 %v1647
        %v1791 = vpop.f32.mrb[0].mxu0
        %v1792 = vadd.f32 0.0, %v1791
        %v1793 = vpop.f32.mrb[0].mxu0
        %1794 = vmatprep.mubr.f32.mxu0 0.0
        %1795 = vmatmul.mubr.f32.gmra.mrb[0].mxu0 %v1648
        %v1796 = vpop.f32.mrb[0].mxu0
        %v1797 = vadd.f32 0.0, %v1796
        %v1798 = vpop.f32.mrb[0].mxu0
        %1799 = vmatprep.mubr.f32.mxu0 0.0
        %1800 = vmatmul.mubr.f32.gmra.mrb[0].mxu0 %v1649
        %v1801 = vpop.f32.mrb[0].mxu0
        %v1802 = vadd.f32 0.0, %v1801
        %v1803 = vpop.f32.mrb[0].mxu0
        %1804 = vmatprep.mubr.f32.mxu0 0.0
        %1805 = vmatmul.mubr.f32.gmra.mrb[0].mxu0 %v1650
        %v1806 = vpop.f32.mrb[0].mxu0
        %v1807 = vadd.f32 0.0, %v1806
        %v1808 = vpop.f32.mrb[0].mxu0
        %1809 = vmatprep.mubr.f32.mxu0 0.0
        %1810 = vmatmul.mubr.f32.gmra.mrb[0].mxu0 %v1651
        %v1811 = vpop.f32.mrb[0].mxu0
        %v1812 = vadd.f32 0.0, %v1811
        %v1813 = vpop.f32.mrb[0].mxu0
        %1814 = vmatprep.mubr.f32.mxu0 0.0
        %1815 = vmatmul.mubr.f32.gmra.mrb[0].mxu0 %v1652
        %v1816 = vpop.f32.mrb[0].mxu0
        %v1817 = vadd.f32 0.0, %v1816
        %v1818 = vpop.f32.mrb[0].mxu0
        %1819 = vmatprep.mubr.f32.mxu0 0.0
        %1820 = vmatmul.mubr.f32.gmra.mrb[0].mxu0 %v1653
        %v1821 = vpop.f32.mrb[0].mxu0
        %v1822 = vadd.f32 0.0, %v1821
        %v1823 = vpop.f32.mrb[0].mxu0
        %1824 = vmatprep.mubr.f32.mxu0 0.0
        %1825 = vmatmul.mubr.f32.gmra.mrb[0].mxu0 %v1671
        %v1826 = vpop.f32.mrb[0].mxu0
        %v1827 = vadd.f32 0.0, %v1826
        %v1828 = vpop.f32.mrb[0].mxu0
        %1829 = vmatprep.mubr.f32.mxu0 0.0
        %1830 = vmatmul.mubr.f32.gmra.mrb[0].mxu0 %v1672
        %v1831 = vpop.f32.mrb[0].mxu0
        %v1832 = vadd.f32 0.0, %v1831
        %v1833 = vpop.f32.mrb[0].mxu0
        %1834 = vdwg.mxu0
        %1835 = vmatprep.subr.mxu0 0.0
        %1836 = vmatpush1.msra.mxu0 %v1655
        %1837 = vmatprep.subr.mxu0 0.0
        %1838 = vmatpush1.msra.mxu0 %v1656
        %1839 = vmatprep.subr.mxu0 0.0
        %1840 = vmatpush1.msra.mxu0 %v1657
        %1841 = vmatprep.subr.mxu0 0.0
        %1842 = vmatpush1.msra.mxu0 %v1658
        %1843 = vmatprep.subr.mxu0 0.0
        %1844 = vmatpush1.msra.mxu0 %v1659
        %1845 = vmatprep.subr.mxu0 0.0
        %1846 = vmatpush1.msra.mxu0 %v1660
        %1847 = vmatprep.subr.mxu0 0.0
        %1848 = vmatpush1.msra.mxu0 %v1661
        %1849 = vmatprep.subr.mxu0 0.0
        %1850 = vmatpush1.msra.mxu0 %v1662
        %1851 = vmatprep.subr.mxu0 0.0
        %1852 = vmatpush1.msra.mxu0 %v1663
        %1853 = vmatprep.subr.mxu0 0.0
        %1854 = vmatpush1.msra.mxu0 %v1664
        %1855 = vmatprep.subr.mxu0 0.0
        %1856 = vmatpush1.msra.mxu0 %v1665
        %1857 = vmatprep.subr.mxu0 0.0
        %1858 = vmatpush1.msra.mxu0 %v1666
        %1859 = vmatprep.subr.mxu0 0.0
        %1860 = vmatpush1.msra.mxu0 %v1667
        %1861 = vmatprep.subr.mxu0 0.0
        %1862 = vmatpush1.msra.mxu0 %v1668
        %1863 = vmatprep.subr.mxu0 0.0
        %1864 = vmatpush1.msra.mxu0 %v1669
        %1865 = vmatprep.subr.mxu0 0.0
        %1866 = vmatpush1.msra.mxu0 %v1670
        %1867 = vmatprep.subr.mxu0 0.0
        %1868 = vmatpush1.msra.mxu0 0.0
        %1869 = vmatprep.subr.mxu0 0.0
        %1870 = vmatpush1.msra.mxu0 0.0
        %1871 = vmatprep.subr.mxu0 0.0
        %1872 = vmatpush1.msra.mxu0 0.0
        %1873 = vmatprep.subr.mxu0 0.0
        %1874 = vmatpush1.msra.mxu0 0.0
        %1875 = vmatprep.subr.mxu0 0.0
        %1876 = vmatpush1.msra.mxu0 0.0
        %1877 = vmatprep.subr.mxu0 0.0
        %1878 = vmatpush1.msra.mxu0 0.0
        %1879 = vmatprep.subr.mxu0 0.0
        %1880 = vmatpush1.msra.mxu0 0.0
        %1881 = vmatprep.subr.mxu0 0.0
        %1882 = vmatpush1.msra.mxu0 0.0
        %1883 = vmatprep.subr.mxu0 0.0
        %1884 = vmatpush1.msra.mxu0 0.0
        %1885 = vmatprep.subr.mxu0 0.0
        %1886 = vmatpush1.msra.mxu0 0.0
        %1887 = vmatprep.subr.mxu0 0.0
        %1888 = vmatpush1.msra.mxu0 0.0
        %1889 = vmatprep.subr.mxu0 0.0
        %1890 = vmatpush1.msra.mxu0 0.0
        %1891 = vmatprep.subr.mxu0 0.0
        %1892 = vmatpush1.msra.mxu0 0.0
        %1893 = vmatprep.subr.mxu0 0.0
        %1894 = vmatpush1.msra.mxu0 0.0
        %1895 = vmatprep.subr.mxu0 0.0
        %1896 = vmatpush1.msra.mxu0 0.0
        %1897 = vmatprep.subr.mxu0 0.0
        %1898 = vmatpush1.msra.mxu0 0.0
        %1899 = vmatprep.mubr.f32.mxu0 0.0
        %1900 = vmatmul.mubr.f32.gmra.mrb[0].mxu0 %v1638
        %v1901 = vpop.f32.mrb[0].mxu0
        %v1902 = vadd.f32 %v1757, %v1901
        %v1903 = vpop.f32.mrb[0].mxu0
        %1904 = vmatprep.mubr.f32.mxu0 0.0
        %1905 = vmatmul.mubr.f32.gmra.mrb[0].mxu0 %v1639
        %v1906 = vpop.f32.mrb[0].mxu0
        %v1907 = vadd.f32 %v1762, %v1906
        %v1908 = vpop.f32.mrb[0].mxu0
        %1909 = vmatprep.mubr.f32.mxu0 0.0
        %1910 = vmatmul.mubr.f32.gmra.mrb[0].mxu0 %v1640
        %v1911 = vpop.f32.mrb[0].mxu0
        %v1912 = vadd.f32 %v1767, %v1911
        %v1913 = vpop.f32.mrb[0].mxu0
        %1914 = vmatprep.mubr.f32.mxu0 0.0
        %1915 = vmatmul.mubr.f32.gmra.mrb[0].mxu0 %v1641
        %v1916 = vpop.f32.mrb[0].mxu0
        %v1917 = vadd.f32 %v1772, %v1916
        %v1918 = vpop.f32.mrb[0].mxu0
        %1919 = vmatprep.mubr.f32.mxu0 0.0
        %1920 = vmatmul.mubr.f32.gmra.mrb[0].mxu0 %v1642
        %v1921 = vpop.f32.mrb[0].mxu0
        %v1922 = vadd.f32 %v1777, %v1921
        %v1923 = vpop.f32.mrb[0].mxu0
        %1924 = vmatprep.mubr.f32.mxu0 0.0
        %1925 = vmatmul.mubr.f32.gmra.mrb[0].mxu0 %v1643
        %v1926 = vpop.f32.mrb[0].mxu0
        %v1927 = vadd.f32 %v1782, %v1926
        %v1928 = vpop.f32.mrb[0].mxu0
        %1929 = vmatprep.mubr.f32.mxu0 0.0
        %1930 = vmatmul.mubr.f32.gmra.mrb[0].mxu0 %v1644
        %v1931 = vpop.f32.mrb[0].mxu0
        %v1932 = vadd.f32 %v1787, %v1931
        %v1933 = vpop.f32.mrb[0].mxu0
        %1934 = vmatprep.mubr.f32.mxu0 0.0
        %1935 = vmatmul.mubr.f32.gmra.mrb[0].mxu0 %v1645
        %v1936 = vpop.f32.mrb[0].mxu0
        %v1937 = vadd.f32 %v1792, %v1936
        %v1938 = vpop.f32.mrb[0].mxu0
        %1939 = vmatprep.mubr.f32.mxu0 0.0
        %1940 = vmatmul.mubr.f32.gmra.mrb[0].mxu0 %v1646
        %v1941 = vpop.f32.mrb[0].mxu0
        %v1942 = vadd.f32 %v1797, %v1941
        %v1943 = vpop.f32.mrb[0].mxu0
        %1944 = vmatprep.mubr.f32.mxu0 0.0
        %1945 = vmatmul.mubr.f32.gmra.mrb[0].mxu0 %v1647
        %v1946 = vpop.f32.mrb[0].mxu0
        %v1947 = vadd.f32 %v1802, %v1946
        %v1948 = vpop.f32.mrb[0].mxu0
        %1949 = vmatprep.mubr.f32.mxu0 0.0
        %1950 = vmatmul.mubr.f32.gmra.mrb[0].mxu0 %v1648
        %v1951 = vpop.f32.mrb[0].mxu0
        %v1952 = vadd.f32 %v1807, %v1951
        %v1953 = vpop.f32.mrb[0].mxu0
        %1954 = vmatprep.mubr.f32.mxu0 0.0
        %1955 = vmatmul.mubr.f32.gmra.mrb[0].mxu0 %v1649
        %v1956 = vpop.f32.mrb[0].mxu0
        %v1957 = vadd.f32 %v1812, %v1956
        %v1958 = vpop.f32.mrb[0].mxu0
        %1959 = vmatprep.mubr.f32.mxu0 0.0
        %1960 = vmatmul.mubr.f32.gmra.mrb[0].mxu0 %v1650
        %v1961 = vpop.f32.mrb[0].mxu0
        %v1962 = vadd.f32 %v1817, %v1961
        %v1963 = vpop.f32.mrb[0].mxu0
        %1964 = vmatprep.mubr.f32.mxu0 0.0
        %1965 = vmatmul.mubr.f32.gmra.mrb[0].mxu0 %v1651
        %v1966 = vpop.f32.mrb[0].mxu0
        %v1967 = vadd.f32 %v1822, %v1966
        %v1968 = vpop.f32.mrb[0].mxu0
        %1969 = vmatprep.mubr.f32.mxu0 0.0
        %1970 = vmatmul.mubr.f32.gmra.mrb[0].mxu0 %v1652
        %v1971 = vpop.f32.mrb[0].mxu0
        %v1972 = vadd.f32 %v1827, %v1971
        %v1973 = vpop.f32.mrb[0].mxu0
        %1974 = vmatprep.mubr.f32.mxu0 0.0
        %1975 = vmatmul.mubr.f32.gmra.mrb[0].mxu0 %v1653
        %v1976 = vpop.f32.mrb[0].mxu0
        %v1977 = vadd.f32 %v1832, %v1976
        %v1978 = vpop.f32.mrb[0].mxu0
        %1979 = vdwg.mxu0
        %v1980 = vld [vmem:[%s279 + $0x22] sm:$0xff]
        %v1981 = vld [vmem:[%s279 + $0x2a] sm:$0xff]
        %v1982 = vld [vmem:[%s279 + $0x32] sm:$0xff]
        %v1983 = vld [vmem:[%s279 + $0x3a] sm:$0xff]
        %v1984 = vld [vmem:[%s279 + $0x42] sm:$0xff]
        %v1985 = vld [vmem:[%s279 + $0x4a] sm:$0xff]
        %v1986 = vld [vmem:[%s279 + $0x52] sm:$0xff]
        %v1987 = vld [vmem:[%s279 + $0x5a] sm:$0xff]
        %v1988 = vld [vmem:[%s279 + $0x62] sm:$0xff]
        %v1989 = vld [vmem:[%s279 + $0x6a] sm:$0xff]
        %v1990 = vld [vmem:[%s279 + $0x72] sm:$0xff]
        %v1991 = vld [vmem:[%s279 + $0x7a] sm:$0xff]
        %v1992 = vld [vmem:[%s279 + $0x82] sm:$0xff]
        %v1993 = vld [vmem:[%s279 + $0x8a] sm:$0xff]
        %v1994 = vld [vmem:[%s279 + $0x92] sm:$0xff]
        %v1995 = vld [vmem:[%s279 + $0x9a] sm:$0xff]
        %s1996 = scalar_lea.vmem [#allocation4], 1024
        %v1997 = vld [vmem:[%s1996] sm:$0xff]
        %v1998 = vld [vmem:[%s1996 + $0x8] sm:$0xff]
        %v1999 = vld [vmem:[%s1996 + $0x10] sm:$0xff]
        %v2000 = vld [vmem:[%s1996 + $0x18] sm:$0xff]
        %v2001 = vld [vmem:[%s1996 + $0x20] sm:$0xff]
        %v2002 = vld [vmem:[%s1996 + $0x28] sm:$0xff]
        %v2003 = vld [vmem:[%s1996 + $0x30] sm:$0xff]
        %v2004 = vld [vmem:[%s1996 + $0x38] sm:$0xff]
        %v2005 = vld [vmem:[%s1996 + $0x40] sm:$0xff]
        %v2006 = vld [vmem:[%s1996 + $0x48] sm:$0xff]
        %v2007 = vld [vmem:[%s1996 + $0x50] sm:$0xff]
        %v2008 = vld [vmem:[%s1996 + $0x58] sm:$0xff]
        %v2009 = vld [vmem:[%s1996 + $0x60] sm:$0xff]
        %v2010 = vld [vmem:[%s1996 + $0x68] sm:$0xff]
        %v2011 = vld [vmem:[%s1996 + $0x70] sm:$0xff]
        %v2012 = vld [vmem:[%s1996 + $0x78] sm:$0xff]
        %2013 = vmatprep.subr.mxu0 0.0
        %2014 = vmatpush1.msra.mxu0 %v1997
        %2015 = vmatprep.subr.mxu0 0.0
        %2016 = vmatpush1.msra.mxu0 %v1998
        %2017 = vmatprep.subr.mxu0 0.0
        %2018 = vmatpush1.msra.mxu0 %v1999
        %2019 = vmatprep.subr.mxu0 0.0
        %2020 = vmatpush1.msra.mxu0 %v2000
        %2021 = vmatprep.subr.mxu0 0.0
        %2022 = vmatpush1.msra.mxu0 %v2001
        %2023 = vmatprep.subr.mxu0 0.0
        %2024 = vmatpush1.msra.mxu0 %v2002
        %2025 = vmatprep.subr.mxu0 0.0
        %2026 = vmatpush1.msra.mxu0 %v2003
        %2027 = vmatprep.subr.mxu0 0.0
        %2028 = vmatpush1.msra.mxu0 %v2004
        %2029 = vmatprep.subr.mxu0 0.0
        %2030 = vmatpush1.msra.mxu0 %v2005
        %2031 = vmatprep.subr.mxu0 0.0
        %2032 = vmatpush1.msra.mxu0 %v2006
        %2033 = vmatprep.subr.mxu0 0.0
        %2034 = vmatpush1.msra.mxu0 %v2007
        %2035 = vmatprep.subr.mxu0 0.0
        %2036 = vmatpush1.msra.mxu0 %v2008
        %2037 = vmatprep.subr.mxu0 0.0
        %2038 = vmatpush1.msra.mxu0 %v2009
        %2039 = vmatprep.subr.mxu0 0.0
        %2040 = vmatpush1.msra.mxu0 %v2010
        %2041 = vmatprep.subr.mxu0 0.0
        %2042 = vmatpush1.msra.mxu0 %v2011
        %2043 = vmatprep.subr.mxu0 0.0
        %2044 = vmatpush1.msra.mxu0 %v2012
        %2045 = vmatprep.subr.mxu0 0.0
        %2046 = vmatpush1.msra.mxu0 0.0
        %2047 = vmatprep.subr.mxu0 0.0
        %2048 = vmatpush1.msra.mxu0 0.0
        %2049 = vmatprep.subr.mxu0 0.0
        %2050 = vmatpush1.msra.mxu0 0.0
        %2051 = vmatprep.subr.mxu0 0.0
        %2052 = vmatpush1.msra.mxu0 0.0
        %2053 = vmatprep.subr.mxu0 0.0
        %2054 = vmatpush1.msra.mxu0 0.0
        %2055 = vmatprep.subr.mxu0 0.0
        %2056 = vmatpush1.msra.mxu0 0.0
        %2057 = vmatprep.subr.mxu0 0.0
        %2058 = vmatpush1.msra.mxu0 0.0
        %2059 = vmatprep.subr.mxu0 0.0
        %2060 = vmatpush1.msra.mxu0 0.0
        %2061 = vmatprep.subr.mxu0 0.0
        %2062 = vmatpush1.msra.mxu0 0.0
        %2063 = vmatprep.subr.mxu0 0.0
        %2064 = vmatpush1.msra.mxu0 0.0
        %2065 = vmatprep.subr.mxu0 0.0
        %2066 = vmatpush1.msra.mxu0 0.0
        %2067 = vmatprep.subr.mxu0 0.0
        %2068 = vmatpush1.msra.mxu0 0.0
        %2069 = vmatprep.subr.mxu0 0.0
        %2070 = vmatpush1.msra.mxu0 0.0
        %2071 = vmatprep.subr.mxu0 0.0
        %2072 = vmatpush1.msra.mxu0 0.0
        %2073 = vmatprep.subr.mxu0 0.0
        %2074 = vmatpush1.msra.mxu0 0.0
        %2075 = vmatprep.subr.mxu0 0.0
        %2076 = vmatpush1.msra.mxu0 0.0
        %2077 = vmatprep.mubr.f32.mxu0 0.0
        %2078 = vmatmul.mubr.f32.gmra.mrb[0].mxu0 %v1980
        %v2079 = vpop.f32.mrb[0].mxu0
        %v2080 = vadd.f32 0.0, %v2079
        %v2081 = vpop.f32.mrb[0].mxu0
        %2082 = vmatprep.mubr.f32.mxu0 0.0
        %2083 = vmatmul.mubr.f32.gmra.mrb[0].mxu0 %v1981
        %v2084 = vpop.f32.mrb[0].mxu0
        %v2085 = vadd.f32 0.0, %v2084
        %v2086 = vpop.f32.mrb[0].mxu0
        %2087 = vmatprep.mubr.f32.mxu0 0.0
        %2088 = vmatmul.mubr.f32.gmra.mrb[0].mxu0 %v1982
        %v2089 = vpop.f32.mrb[0].mxu0
        %v2090 = vadd.f32 0.0, %v2089
        %v2091 = vpop.f32.mrb[0].mxu0
        %2092 = vmatprep.mubr.f32.mxu0 0.0
        %2093 = vmatmul.mubr.f32.gmra.mrb[0].mxu0 %v1983
        %v2094 = vpop.f32.mrb[0].mxu0
        %v2095 = vadd.f32 0.0, %v2094
        %v2096 = vpop.f32.mrb[0].mxu0
        %2097 = vmatprep.mubr.f32.mxu0 0.0
        %2098 = vmatmul.mubr.f32.gmra.mrb[0].mxu0 %v1984
        %v2099 = vpop.f32.mrb[0].mxu0
        %v2100 = vadd.f32 0.0, %v2099
        %v2101 = vpop.f32.mrb[0].mxu0
        %2102 = vmatprep.mubr.f32.mxu0 0.0
        %2103 = vmatmul.mubr.f32.gmra.mrb[0].mxu0 %v1985
        %v2104 = vpop.f32.mrb[0].mxu0
        %v2105 = vadd.f32 0.0, %v2104
        %v2106 = vpop.f32.mrb[0].mxu0
        %2107 = vmatprep.mubr.f32.mxu0 0.0
        %2108 = vmatmul.mubr.f32.gmra.mrb[0].mxu0 %v1986
        %v2109 = vpop.f32.mrb[0].mxu0
        %v2110 = vadd.f32 0.0, %v2109
        %v2111 = vpop.f32.mrb[0].mxu0
        %2112 = vmatprep.mubr.f32.mxu0 0.0
        %2113 = vmatmul.mubr.f32.gmra.mrb[0].mxu0 %v1987
        %v2114 = vpop.f32.mrb[0].mxu0
        %v2115 = vadd.f32 0.0, %v2114
        %v2116 = vpop.f32.mrb[0].mxu0
        %2117 = vmatprep.mubr.f32.mxu0 0.0
        %2118 = vmatmul.mubr.f32.gmra.mrb[0].mxu0 %v1988
        %v2119 = vpop.f32.mrb[0].mxu0
        %v2120 = vadd.f32 0.0, %v2119
        %v2121 = vpop.f32.mrb[0].mxu0
        %2122 = vmatprep.mubr.f32.mxu0 0.0
        %2123 = vmatmul.mubr.f32.gmra.mrb[0].mxu0 %v1989
        %v2124 = vpop.f32.mrb[0].mxu0
        %v2125 = vadd.f32 0.0, %v2124
        %v2126 = vpop.f32.mrb[0].mxu0
        %2127 = vmatprep.mubr.f32.mxu0 0.0
        %2128 = vmatmul.mubr.f32.gmra.mrb[0].mxu0 %v1990
        %v2129 = vpop.f32.mrb[0].mxu0
        %v2130 = vadd.f32 0.0, %v2129
        %v2131 = vpop.f32.mrb[0].mxu0
        %2132 = vmatprep.mubr.f32.mxu0 0.0
        %2133 = vmatmul.mubr.f32.gmra.mrb[0].mxu0 %v1991
        %v2134 = vpop.f32.mrb[0].mxu0
        %v2135 = vadd.f32 0.0, %v2134
        %v2136 = vpop.f32.mrb[0].mxu0
        %2137 = vmatprep.mubr.f32.mxu0 0.0
        %2138 = vmatmul.mubr.f32.gmra.mrb[0].mxu0 %v1992
        %v2139 = vpop.f32.mrb[0].mxu0
        %v2140 = vadd.f32 0.0, %v2139
        %v2141 = vpop.f32.mrb[0].mxu0
        %2142 = vmatprep.mubr.f32.mxu0 0.0
        %2143 = vmatmul.mubr.f32.gmra.mrb[0].mxu0 %v1993
        %v2144 = vpop.f32.mrb[0].mxu0
        %v2145 = vadd.f32 0.0, %v2144
        %v2146 = vpop.f32.mrb[0].mxu0
        %2147 = vmatprep.mubr.f32.mxu0 0.0
        %2148 = vmatmul.mubr.f32.gmra.mrb[0].mxu0 %v1994
        %v2149 = vpop.f32.mrb[0].mxu0
        %v2150 = vadd.f32 0.0, %v2149
        %v2151 = vpop.f32.mrb[0].mxu0
        %2152 = vmatprep.mubr.f32.mxu0 0.0
        %2153 = vmatmul.mubr.f32.gmra.mrb[0].mxu0 %v1995
        %v2154 = vpop.f32.mrb[0].mxu0
        %v2155 = vadd.f32 0.0, %v2154
        %v2156 = vpop.f32.mrb[0].mxu0
        %2157 = vdwg.mxu0
        %v2158 = vadd.f32 %v1902, %v2080
        %v2159 = vadd.f32 %v1907, %v2085
        %v2160 = vadd.f32 %v1912, %v2090
        %v2161 = vadd.f32 %v1917, %v2095
        %v2162 = vadd.f32 %v1922, %v2100
        %v2163 = vadd.f32 %v1927, %v2105
        %v2164 = vadd.f32 %v1932, %v2110
        %v2165 = vadd.f32 %v1937, %v2115
        %v2166 = vadd.f32 %v1942, %v2120
        %v2167 = vadd.f32 %v1947, %v2125
        %v2168 = vadd.f32 %v1952, %v2130
        %v2169 = vadd.f32 %v1957, %v2135
        %v2170 = vadd.f32 %v1962, %v2140
        %v2171 = vadd.f32 %v1967, %v2145
        %v2172 = vadd.f32 %v1972, %v2150
        %v2173 = vadd.f32 %v1977, %v2155
        %v2174 = vsel %vm535, 1, 0
        %v2175 = vsel %vm536, 1, 0
        %v2176 = vsel %vm537, 1, 0
        %v2177 = vsel %vm538, 1, 0
        %v2178 = vsel %vm539, 1, 0
        %v2179 = vsel %vm540, 1, 0
        %v2180 = vsel %vm541, 1, 0
        %v2181 = vsel %vm542, 1, 0
        %v2182 = vsel %vm543, 1, 0
        %v2183 = vsel %vm544, 1, 0
        %v2184 = vsel %vm545, 1, 0
        %v2185 = vsel %vm546, 1, 0
        %v2186 = vsel %vm547, 1, 0
        %v2187 = vsel %vm548, 1, 0
        %v2188 = vsel %vm549, 1, 0
        %v2189 = vsel %vm550, 1, 0
        %vm2190 = vcmp.eq.s32.totalorder %v2174, 1
        %vm2191 = vcmp.eq.s32.totalorder %v2175, 1
        %vm2192 = vcmp.eq.s32.totalorder %v2176, 1
        %vm2193 = vcmp.eq.s32.totalorder %v2177, 1
        %vm2194 = vcmp.eq.s32.totalorder %v2178, 1
        %vm2195 = vcmp.eq.s32.totalorder %v2179, 1
        %vm2196 = vcmp.eq.s32.totalorder %v2180, 1
        %vm2197 = vcmp.eq.s32.totalorder %v2181, 1
        %vm2198 = vcmp.eq.s32.totalorder %v2182, 1
        %vm2199 = vcmp.eq.s32.totalorder %v2183, 1
        %vm2200 = vcmp.eq.s32.totalorder %v2184, 1
        %vm2201 = vcmp.eq.s32.totalorder %v2185, 1
        %vm2202 = vcmp.eq.s32.totalorder %v2186, 1
        %vm2203 = vcmp.eq.s32.totalorder %v2187, 1
        %vm2204 = vcmp.eq.s32.totalorder %v2188, 1
        %vm2205 = vcmp.eq.s32.totalorder %v2189, 1
        %v2206 = vsel %vm2190, %v1086, 0.0
        %v2207 = vsel %vm2191, %v1087, 0.0
        %v2208 = vsel %vm2192, %v1088, 0.0
        %v2209 = vsel %vm2193, %v1089, 0.0
        %v2210 = vsel %vm2194, %v1090, 0.0
        %v2211 = vsel %vm2195, %v1091, 0.0
        %v2212 = vsel %vm2196, %v1092, 0.0
        %v2213 = vsel %vm2197, %v1093, 0.0
        %v2214 = vsel %vm2198, %v1094, 0.0
        %v2215 = vsel %vm2199, %v1095, 0.0
        %v2216 = vsel %vm2200, %v1096, 0.0
        %v2217 = vsel %vm2201, %v1097, 0.0
        %v2218 = vsel %vm2202, %v1098, 0.0
        %v2219 = vsel %vm2203, %v1099, 0.0
        %v2220 = vsel %vm2204, %v1100, 0.0
        %v2221 = vsel %vm2205, %v1101, 0.0
        %v2222 = vadd.f32 %v1622, %v2206
        %v2223 = vadd.f32 %v1623, %v2207
        %v2224 = vadd.f32 %v1624, %v2208
        %v2225 = vadd.f32 %v1625, %v2209
        %v2226 = vadd.f32 %v1626, %v2210
        %v2227 = vadd.f32 %v1627, %v2211
        %v2228 = vadd.f32 %v1628, %v2212
        %v2229 = vadd.f32 %v1629, %v2213
        %v2230 = vadd.f32 %v1630, %v2214
        %v2231 = vadd.f32 %v1631, %v2215
        %v2232 = vadd.f32 %v1632, %v2216
        %v2233 = vadd.f32 %v1633, %v2217
        %v2234 = vadd.f32 %v1634, %v2218
        %v2235 = vadd.f32 %v1635, %v2219
        %v2236 = vadd.f32 %v1636, %v2220
        %v2237 = vadd.f32 %v1637, %v2221
        %v2238 = vsel %vm551, 1, 0
        %v2239 = vsel %vm552, 1, 0
        %v2240 = vsel %vm553, 1, 0
        %v2241 = vsel %vm554, 1, 0
        %v2242 = vsel %vm555, 1, 0
        %v2243 = vsel %vm556, 1, 0
        %v2244 = vsel %vm557, 1, 0
        %v2245 = vsel %vm558, 1, 0
        %v2246 = vsel %vm559, 1, 0
        %v2247 = vsel %vm560, 1, 0
        %v2248 = vsel %vm561, 1, 0
        %v2249 = vsel %vm562, 1, 0
        %v2250 = vsel %vm563, 1, 0
        %v2251 = vsel %vm564, 1, 0
        %v2252 = vsel %vm565, 1, 0
        %v2253 = vsel %vm566, 1, 0
        %vm2254 = vcmp.eq.s32.totalorder %v2238, 1
        %vm2255 = vcmp.eq.s32.totalorder %v2239, 1
        %vm2256 = vcmp.eq.s32.totalorder %v2240, 1
        %vm2257 = vcmp.eq.s32.totalorder %v2241, 1
        %vm2258 = vcmp.eq.s32.totalorder %v2242, 1
        %vm2259 = vcmp.eq.s32.totalorder %v2243, 1
        %vm2260 = vcmp.eq.s32.totalorder %v2244, 1
        %vm2261 = vcmp.eq.s32.totalorder %v2245, 1
        %vm2262 = vcmp.eq.s32.totalorder %v2246, 1
        %vm2263 = vcmp.eq.s32.totalorder %v2247, 1
        %vm2264 = vcmp.eq.s32.totalorder %v2248, 1
        %vm2265 = vcmp.eq.s32.totalorder %v2249, 1
        %vm2266 = vcmp.eq.s32.totalorder %v2250, 1
        %vm2267 = vcmp.eq.s32.totalorder %v2251, 1
        %vm2268 = vcmp.eq.s32.totalorder %v2252, 1
        %vm2269 = vcmp.eq.s32.totalorder %v2253, 1
        %v2270 = vsel %vm2254, %v2158, 0.0
        %v2271 = vsel %vm2255, %v2159, 0.0
        %v2272 = vsel %vm2256, %v2160, 0.0
        %v2273 = vsel %vm2257, %v2161, 0.0
        %v2274 = vsel %vm2258, %v2162, 0.0
        %v2275 = vsel %vm2259, %v2163, 0.0
        %v2276 = vsel %vm2260, %v2164, 0.0
        %v2277 = vsel %vm2261, %v2165, 0.0
        %v2278 = vsel %vm2262, %v2166, 0.0
        %v2279 = vsel %vm2263, %v2167, 0.0
        %v2280 = vsel %vm2264, %v2168, 0.0
        %v2281 = vsel %vm2265, %v2169, 0.0
        %v2282 = vsel %vm2266, %v2170, 0.0
        %v2283 = vsel %vm2267, %v2171, 0.0
        %v2284 = vsel %vm2268, %v2172, 0.0
        %v2285 = vsel %vm2269, %v2173, 0.0
        %v2286 = vadd.f32 %v2222, %v2270
        %v2287 = vadd.f32 %v2223, %v2271
        %v2288 = vadd.f32 %v2224, %v2272
        %v2289 = vadd.f32 %v2225, %v2273
        %v2290 = vadd.f32 %v2226, %v2274
        %v2291 = vadd.f32 %v2227, %v2275
        %v2292 = vadd.f32 %v2228, %v2276
        %v2293 = vadd.f32 %v2229, %v2277
        %v2294 = vadd.f32 %v2230, %v2278
        %v2295 = vadd.f32 %v2231, %v2279
        %v2296 = vadd.f32 %v2232, %v2280
        %v2297 = vadd.f32 %v2233, %v2281
        %v2298 = vadd.f32 %v2234, %v2282
        %v2299 = vadd.f32 %v2235, %v2283
        %v2300 = vadd.f32 %v2236, %v2284
        %v2301 = vadd.f32 %v2237, %v2285
        %v2302 = vld [vmem:[#allocation7] sm:$0x1]
        %v2304 = vlaneseq
        %v2305 = vshrl.u32 %v2304, 7
        %v2306 = vsub.s32 0, %v2305
        %v2307 = vrot.slane %v2302, %v2306
        %v2309 = vadd.f32 %v2286, %v2307
        %v2310 = vadd.f32 %v2287, %v2307
        %v2311 = vadd.f32 %v2288, %v2307
        %v2312 = vadd.f32 %v2289, %v2307
        %v2313 = vadd.f32 %v2290, %v2307
        %v2314 = vadd.f32 %v2291, %v2307
        %v2315 = vadd.f32 %v2292, %v2307
        %v2316 = vadd.f32 %v2293, %v2307
        %v2317 = vadd.f32 %v2294, %v2307
        %v2318 = vadd.f32 %v2295, %v2307
        %v2319 = vadd.f32 %v2296, %v2307
        %v2320 = vadd.f32 %v2297, %v2307
        %v2321 = vadd.f32 %v2298, %v2307
        %v2322 = vadd.f32 %v2299, %v2307
        %v2323 = vadd.f32 %v2300, %v2307
        %v2324 = vadd.f32 %v2301, %v2307
        %v2325 = vmul.f32 %v2309, 0.1
        %v2326 = vmul.f32 %v2310, 0.1
        %v2327 = vmul.f32 %v2311, 0.1
        %v2328 = vmul.f32 %v2312, 0.1
        %v2329 = vmul.f32 %v2313, 0.1
        %v2330 = vmul.f32 %v2314, 0.1
        %v2331 = vmul.f32 %v2315, 0.1
        %v2332 = vmul.f32 %v2316, 0.1
        %v2333 = vmul.f32 %v2317, 0.1
        %v2334 = vmul.f32 %v2318, 0.1
        %v2335 = vmul.f32 %v2319, 0.1
        %v2336 = vmul.f32 %v2320, 0.1
        %v2337 = vmul.f32 %v2321, 0.1
        %v2338 = vmul.f32 %v2322, 0.1
        %v2339 = vmul.f32 %v2323, 0.1
        %v2340 = vmul.f32 %v2324, 0.1
        %v2341 = vmax.f32 %v2309, %v2325
        %v2342 = vmax.f32 %v2310, %v2326
        %v2343 = vmax.f32 %v2311, %v2327
        %v2344 = vmax.f32 %v2312, %v2328
        %v2345 = vmax.f32 %v2313, %v2329
        %v2346 = vmax.f32 %v2314, %v2330
        %v2347 = vmax.f32 %v2315, %v2331
        %v2348 = vmax.f32 %v2316, %v2332
        %v2349 = vmax.f32 %v2317, %v2333
        %v2350 = vmax.f32 %v2318, %v2334
        %v2351 = vmax.f32 %v2319, %v2335
        %v2352 = vmax.f32 %v2320, %v2336
        %v2353 = vmax.f32 %v2321, %v2337
        %v2354 = vmax.f32 %v2322, %v2338
        %v2355 = vmax.f32 %v2323, %v2339
        %v2356 = vmax.f32 %v2324, %v2340
        %v2357 = vld [vmem:[#allocation9] sm:$0xff]
        %v2358 = vld [vmem:[#allocation9 + $0x8] sm:$0xff]
        %v2359 = vld [vmem:[#allocation9 + $0x10] sm:$0xff]
        %v2360 = vld [vmem:[#allocation9 + $0x18] sm:$0xff]
        %v2361 = vld [vmem:[#allocation9 + $0x20] sm:$0xff]
        %v2362 = vld [vmem:[#allocation9 + $0x28] sm:$0xff]
        %v2363 = vld [vmem:[#allocation9 + $0x30] sm:$0xff]
        %v2364 = vld [vmem:[#allocation9 + $0x38] sm:$0xff]
        %v2365 = vld [vmem:[#allocation9 + $0x40] sm:$0xff]
        %v2366 = vld [vmem:[#allocation9 + $0x48] sm:$0xff]
        %v2367 = vld [vmem:[#allocation9 + $0x50] sm:$0xff]
        %v2368 = vld [vmem:[#allocation9 + $0x58] sm:$0xff]
        %v2369 = vld [vmem:[#allocation9 + $0x60] sm:$0xff]
        %v2370 = vld [vmem:[#allocation9 + $0x68] sm:$0xff]
        %v2371 = vld [vmem:[#allocation9 + $0x70] sm:$0xff]
        %v2372 = vld [vmem:[#allocation9 + $0x78] sm:$0xff]
        %v2373 = vld [vmem:[#allocation10] sm:$0x1]
        %v2375 = vlaneseq
        %v2376 = vshrl.u32 %v2375, 7
        %v2377 = vsub.s32 0, %v2376
        %v2378 = vrot.slane %v2373, %v2377
        %2380 = vmatprep.subr.mxu0 0.0
        %2381 = vmatpush1.msra.mxu0 %v2357
        %2382 = vmatprep.subr.mxu0 0.0
        %2383 = vmatpush1.msra.mxu0 %v2358
        %2384 = vmatprep.subr.mxu0 0.0
        %2385 = vmatpush1.msra.mxu0 %v2359
        %2386 = vmatprep.subr.mxu0 0.0
        %2387 = vmatpush1.msra.mxu0 %v2360
        %2388 = vmatprep.subr.mxu0 0.0
        %2389 = vmatpush1.msra.mxu0 %v2361
        %2390 = vmatprep.subr.mxu0 0.0
        %2391 = vmatpush1.msra.mxu0 %v2362
        %2392 = vmatprep.subr.mxu0 0.0
        %2393 = vmatpush1.msra.mxu0 %v2363
        %2394 = vmatprep.subr.mxu0 0.0
        %2395 = vmatpush1.msra.mxu0 %v2364
        %2396 = vmatprep.subr.mxu0 0.0
        %2397 = vmatpush1.msra.mxu0 %v2365
        %2398 = vmatprep.subr.mxu0 0.0
        %2399 = vmatpush1.msra.mxu0 %v2366
        %2400 = vmatprep.subr.mxu0 0.0
        %2401 = vmatpush1.msra.mxu0 %v2367
        %2402 = vmatprep.subr.mxu0 0.0
        %2403 = vmatpush1.msra.mxu0 %v2368
        %2404 = vmatprep.subr.mxu0 0.0
        %2405 = vmatpush1.msra.mxu0 %v2369
        %2406 = vmatprep.subr.mxu0 0.0
        %2407 = vmatpush1.msra.mxu0 %v2370
        %2408 = vmatprep.subr.mxu0 0.0
        %2409 = vmatpush1.msra.mxu0 %v2371
        %2410 = vmatprep.subr.mxu0 0.0
        %2411 = vmatpush1.msra.mxu0 %v2372
        %2412 = vmatprep.subr.mxu0 0.0
        %2413 = vmatpush1.msra.mxu0 0.0
        %2414 = vmatprep.subr.mxu0 0.0
        %2415 = vmatpush1.msra.mxu0 0.0
        %2416 = vmatprep.subr.mxu0 0.0
        %2417 = vmatpush1.msra.mxu0 0.0
        %2418 = vmatprep.subr.mxu0 0.0
        %2419 = vmatpush1.msra.mxu0 0.0
        %2420 = vmatprep.subr.mxu0 0.0
        %2421 = vmatpush1.msra.mxu0 0.0
        %2422 = vmatprep.subr.mxu0 0.0
        %2423 = vmatpush1.msra.mxu0 0.0
        %2424 = vmatprep.subr.mxu0 0.0
        %2425 = vmatpush1.msra.mxu0 0.0
        %2426 = vmatprep.subr.mxu0 0.0
        %2427 = vmatpush1.msra.mxu0 0.0
        %2428 = vmatprep.subr.mxu0 0.0
        %2429 = vmatpush1.msra.mxu0 0.0
        %2430 = vmatprep.subr.mxu0 0.0
        %2431 = vmatpush1.msra.mxu0 0.0
        %2432 = vmatprep.subr.mxu0 0.0
        %2433 = vmatpush1.msra.mxu0 0.0
        %2434 = vmatprep.subr.mxu0 0.0
        %2435 = vmatpush1.msra.mxu0 0.0
        %2436 = vmatprep.subr.mxu0 0.0
        %2437 = vmatpush1.msra.mxu0 0.0
        %2438 = vmatprep.subr.mxu0 0.0
        %2439 = vmatpush1.msra.mxu0 0.0
        %2440 = vmatprep.subr.mxu0 0.0
        %2441 = vmatpush1.msra.mxu0 0.0
        %2442 = vmatprep.subr.mxu0 0.0
        %2443 = vmatpush1.msra.mxu0 0.0
        %2444 = vmatprep.mubr.f32.mxu0 0.0
        %2445 = vmatmul.mubr.f32.gmra.mrb[0].mxu0 %v2341
        %v2446 = vpop.f32.mrb[0].mxu0
        %v2447 = vadd.f32 %v2378, %v2446
        %v2448 = vpop.f32.mrb[0].mxu0
        %2449 = vmatprep.mubr.f32.mxu0 0.0
        %2450 = vmatmul.mubr.f32.gmra.mrb[0].mxu0 %v2342
        %v2451 = vpop.f32.mrb[0].mxu0
        %v2452 = vadd.f32 %v2378, %v2451
        %v2453 = vpop.f32.mrb[0].mxu0
        %2454 = vmatprep.mubr.f32.mxu0 0.0
        %2455 = vmatmul.mubr.f32.gmra.mrb[0].mxu0 %v2343
        %v2456 = vpop.f32.mrb[0].mxu0
        %v2457 = vadd.f32 %v2378, %v2456
        %v2458 = vpop.f32.mrb[0].mxu0
        %2459 = vmatprep.mubr.f32.mxu0 0.0
        %2460 = vmatmul.mubr.f32.gmra.mrb[0].mxu0 %v2344
        %v2461 = vpop.f32.mrb[0].mxu0
        %v2462 = vadd.f32 %v2378, %v2461
        %v2463 = vpop.f32.mrb[0].mxu0
        %2464 = vmatprep.mubr.f32.mxu0 0.0
        %2465 = vmatmul.mubr.f32.gmra.mrb[0].mxu0 %v2345
        %v2466 = vpop.f32.mrb[0].mxu0
        %v2467 = vadd.f32 %v2378, %v2466
        %v2468 = vpop.f32.mrb[0].mxu0
        %2469 = vmatprep.mubr.f32.mxu0 0.0
        %2470 = vmatmul.mubr.f32.gmra.mrb[0].mxu0 %v2346
        %v2471 = vpop.f32.mrb[0].mxu0
        %v2472 = vadd.f32 %v2378, %v2471
        %v2473 = vpop.f32.mrb[0].mxu0
        %2474 = vmatprep.mubr.f32.mxu0 0.0
        %2475 = vmatmul.mubr.f32.gmra.mrb[0].mxu0 %v2347
        %v2476 = vpop.f32.mrb[0].mxu0
        %v2477 = vadd.f32 %v2378, %v2476
        %v2478 = vpop.f32.mrb[0].mxu0
        %2479 = vmatprep.mubr.f32.mxu0 0.0
        %2480 = vmatmul.mubr.f32.gmra.mrb[0].mxu0 %v2348
        %v2481 = vpop.f32.mrb[0].mxu0
        %v2482 = vadd.f32 %v2378, %v2481
        %v2483 = vpop.f32.mrb[0].mxu0
        %2484 = vmatprep.mubr.f32.mxu0 0.0
        %2485 = vmatmul.mubr.f32.gmra.mrb[0].mxu0 %v2349
        %v2486 = vpop.f32.mrb[0].mxu0
        %v2487 = vadd.f32 %v2378, %v2486
        %v2488 = vpop.f32.mrb[0].mxu0
        %2489 = vmatprep.mubr.f32.mxu0 0.0
        %2490 = vmatmul.mubr.f32.gmra.mrb[0].mxu0 %v2350
        %v2491 = vpop.f32.mrb[0].mxu0
        %v2492 = vadd.f32 %v2378, %v2491
        %v2493 = vpop.f32.mrb[0].mxu0
        %2494 = vmatprep.mubr.f32.mxu0 0.0
        %2495 = vmatmul.mubr.f32.gmra.mrb[0].mxu0 %v2351
        %v2496 = vpop.f32.mrb[0].mxu0
        %v2497 = vadd.f32 %v2378, %v2496
        %v2498 = vpop.f32.mrb[0].mxu0
        %2499 = vmatprep.mubr.f32.mxu0 0.0
        %2500 = vmatmul.mubr.f32.gmra.mrb[0].mxu0 %v2352
        %v2501 = vpop.f32.mrb[0].mxu0
        %v2502 = vadd.f32 %v2378, %v2501
        %v2503 = vpop.f32.mrb[0].mxu0
        %2504 = vmatprep.mubr.f32.mxu0 0.0
        %2505 = vmatmul.mubr.f32.gmra.mrb[0].mxu0 %v2353
        %v2506 = vpop.f32.mrb[0].mxu0
        %v2507 = vadd.f32 %v2378, %v2506
        %v2508 = vpop.f32.mrb[0].mxu0
        %2509 = vmatprep.mubr.f32.mxu0 0.0
        %2510 = vmatmul.mubr.f32.gmra.mrb[0].mxu0 %v2354
        %v2511 = vpop.f32.mrb[0].mxu0
        %v2512 = vadd.f32 %v2378, %v2511
        %v2513 = vpop.f32.mrb[0].mxu0
        %2514 = vmatprep.mubr.f32.mxu0 0.0
        %2515 = vmatmul.mubr.f32.gmra.mrb[0].mxu0 %v2355
        %v2516 = vpop.f32.mrb[0].mxu0
        %v2517 = vadd.f32 %v2378, %v2516
        %v2518 = vpop.f32.mrb[0].mxu0
        %2519 = vmatprep.mubr.f32.mxu0 0.0
        %2520 = vmatmul.mubr.f32.gmra.mrb[0].mxu0 %v2356
        %v2521 = vpop.f32.mrb[0].mxu0
        %v2522 = vadd.f32 %v2378, %v2521
        %v2523 = vpop.f32.mrb[0].mxu0
        %2524 = vdwg.mxu0
        %2525 = vst [vmem:[%s245] sm:$0xff] %v2447
        %2526 = vst [vmem:[%s245 + $0x8] sm:$0xff] %v2452
        %2527 = vst [vmem:[%s245 + $0x10] sm:$0xff] %v2457
        %2528 = vst [vmem:[%s245 + $0x18] sm:$0xff] %v2462
        %2529 = vst [vmem:[%s245 + $0x20] sm:$0xff] %v2467
        %2530 = vst [vmem:[%s245 + $0x28] sm:$0xff] %v2472
        %2531 = vst [vmem:[%s245 + $0x30] sm:$0xff] %v2477
        %2532 = vst [vmem:[%s245 + $0x38] sm:$0xff] %v2482
        %2533 = vst [vmem:[%s245 + $0x40] sm:$0xff] %v2487
        %2534 = vst [vmem:[%s245 + $0x48] sm:$0xff] %v2492
        %2535 = vst [vmem:[%s245 + $0x50] sm:$0xff] %v2497
        %2536 = vst [vmem:[%s245 + $0x58] sm:$0xff] %v2502
        %2537 = vst [vmem:[%s245 + $0x60] sm:$0xff] %v2507
        %2538 = vst [vmem:[%s245 + $0x68] sm:$0xff] %v2512
        %2539 = vst [vmem:[%s245 + $0x70] sm:$0xff] %v2517
        %2540 = vst [vmem:[%s245 + $0x78] sm:$0xff] %v2522
        %s2541 = sand.u32 %s128, 1
        %s2542 = scalar_lea.sflag [#allocation6], %s2541
        %s2543 = sand.u32 %s128, 1
        %s2544 = smul.addr %s2543, 128
        %s2545 = scalar_lea.vmem [#allocation12], %s2544
        // Predicated region
        $region69: #{_scale_prediction_impl.1} parent=35 // pred_check
          %p2546 = pneg %p138
        $region70: #{_scale_prediction_impl.1} parent=35 // pred_check_branch
          %2548 = sbr.rel (%p2546) target = $region72
        $region71: #{_scale_prediction_impl.1} parent=35 // pred_region
          %s2549 = smul.u32 16, %s27
          %s2551 = ssub.s32 2048, 2048
          %2552 = vsyncadd %s2542, %s2551
          %s2553 = smul.addr %s26, 32
          %s2554 = sadd.s32 %s2549, %s2553
          %s2555 = smul.addr %s2554, 128
          %s2556 = scalar_lea.hbm %s5, %s2555
          %s2557 = sshll.u32 %s2545, 4
          %s2558 = int_to_ptr.vmem [resolvable:$true] %s2557
          %2563 = dma.vmem_to_hbm [thread:$0]  %s2558, 2048, %s2556, %s2542, 128, 128, 8
        $region72: #{_scale_prediction_impl.1} parent=35 // pred_fallthru
          _
      $region36: #{_scale_prediction_impl.1} parent=5 // pred_fallthru
        _
      %p2564 = scmp.le.s32.totalorder 2, %s17
      // Predicated region
      $region73: #{_scale_prediction_impl.1} parent=5 // pred_check
        %p2565 = pneg %p2564
      $region74: #{_scale_prediction_impl.1} parent=5 // pred_check_branch
        %2567 = sbr.rel (%p2565) target = $region76
      $region75: #{_scale_prediction_impl.1} parent=5 // pred_region
        %s2568 = ssub.s32 %s17, 2
        // Predicated region
        $region77: #{_scale_prediction_impl.1} parent=75 // pred_check
          %p2569 = pneg %p144
        $region78: #{_scale_prediction_impl.1} parent=75 // pred_check_branch
          %2571 = sbr.rel (%p2569) target = $region80
        $region79: #{_scale_prediction_impl.1} parent=75 // pred_region
          %s2572 = sand.u32 %s129, 1
          %s2573 = scalar_lea.sflag [#allocation6], %s2572
          %s2574 = sand.u32 %s129, 1
          %s2575 = smul.addr %s2574, 128
          %s2576 = scalar_lea.vmem [#allocation12], %s2575
          %2577 = dma.done %s2573, 2048
        $region80: #{_scale_prediction_impl.1} parent=75 // pred_fallthru
          _
      $region76: #{_scale_prediction_impl.1} parent=5 // pred_fallthru
        _
    $region6: #{_scale_prediction_impl.1} parent=1 // loop_footer
      %s21 = sadd.s32 1, %s17
    $region7: #{_scale_prediction_impl.1} parent=1 // loop_footer_branch
      %16 = sbr.rel target = $region3
    $region8: #{_scale_prediction_impl.1} parent=1 // loop_exit
      _
    %2578 = vsyncpa [#allocation5], 1
    %s2579 = scalar_lea.sflag [#allocation5], 1
    %2580 = vsyncpa %s2579, 1
    %2581 = vsyncpa [#allocation8], 1
    %2582 = vsyncpa [#allocation11], 1
    %2583 = vsyncpa [#allocation6], 1
    %s2584 = scalar_lea.sflag [#allocation6], 1
    %2585 = vsyncpa %s2584, 1
  %2586 = vsyncmov [#allocation3]
  %s2587 = vpop.sfrf %2586
  %p2588 = scmp.eq.s32.totalorder %s2587, 0
  %p2589 = pneg %p2588
  %2591 = shalt.err (%p2589)
  %s2592 = scalar_lea.sflag [#allocation3], 1
  %2593 = vsyncmov %s2592
  %s2594 = vpop.sfrf %2593
  %p2595 = scmp.eq.s32.totalorder %s2594, 0
  %p2596 = pneg %p2595
  %2598 = shalt.err (%p2596)

</llo_original>
